<compile_context>
chip_gen: v7x
topology: tpu7x:2x2x1
jax: 0.10.0
libtpu: 0.0.40
codegen_flags: <defaults>
</compile_context>

<pallas_src>
import functools

import numpy as np

import jax
import jax.numpy as jnp
from jax import lax
from jax.experimental import pallas as pl
from jax.experimental.pallas import tpu as pltpu


# ----------------------------------------------------------------------------
# Helpers
# ----------------------------------------------------------------------------
def _bn_scale_shift(x2, gamma, beta, eps):
    """One-pass training-mode BN stats.  x2: [C, M]; gamma/beta: [C, 1]."""
    inv_m = 1.0 / float(x2.shape[1])
    mean = jnp.sum(x2, axis=1, keepdims=True) * inv_m            # [C,1]
    ex2 = jnp.sum(x2 * x2, axis=1, keepdims=True) * inv_m        # [C,1]
    var = ex2 - mean * mean                                      # biased var
    scale = gamma * lax.rsqrt(var + eps)
    shift = beta - mean * scale
    return scale, shift


def _conv_shift_masks(N, H, W, kh, kw):
    """Per-tap validity masks for the roll-based 'same' conv: [kh*kw, N*H*W]."""
    ph, pw = (kh - 1) // 2, (kw - 1) // 2
    p = np.arange(N * H * W)
    hh = (p % (H * W)) // W
    ww = p % W
    rows = []
    for dh in range(kh):
        for dw in range(kw):
            oh, ow = dh - ph, dw - pw
            valid = ((hh + oh >= 0) & (hh + oh < H)
                     & (ww + ow >= 0) & (ww + ow < W))
            rows.append(valid.astype(np.float32))
    return jnp.asarray(np.stack(rows, axis=0))


# ----------------------------------------------------------------------------
# Fused DenseBlock kernel (all layers + optional transition), lane-dense [C, M]
# ----------------------------------------------------------------------------
def _dense_block_kernel(*refs, n_layers, kh, kw, growth, eps, H, W,
                        has_transition):
    """refs = (x, masks, g0, b0, w0, ..., [gt, bt, wt], out, [concat_scratch])

    x      : [C0, M]                 block input, M = N*H*W (lane-dense)
    masks  : [kh*kw, M]              0/1 'same'-padding masks per conv tap
    g_i,b_i: [Cin_i, 1]              BN gamma/beta for layer i
    w_i    : [kh*kw*growth, Cin_i]   conv weight, per-tap transposed (y^T = w^T x)
    gt,bt  : [C_total, 1]            transition BN params (if has_transition)
    wt     : [Cout, C_total]         transition 1x1 conv weight (transposed)
    out    : [C_total, M] or [Cout, M]
    scratch: VMEM [C_total, M] f32   resident concat buffer (transition case only)
    """
    x_ref, mask_ref = refs[0], refs[1]
    layer_refs = refs[2:2 + 3 * n_layers]
    idx = 2 + 3 * n_layers
    if has_transition:
        tg_ref, tb_ref, tw_ref = refs[idx:idx + 3]
        idx += 3
    out_ref = refs[idx]
    buf_ref = refs[idx + 1] if has_transition else out_ref

    C0, M = x_ref.shape
    ph, pw = (kh - 1) // 2, (kw - 1) // 2
    taps = [(dh, dw) for dh in range(kh) for dw in range(kw)]

    # Seed the resident (on-chip) concat buffer with the block input.
    buf_ref[0:C0, :] = x_ref[...].astype(buf_ref.dtype)

    cin = C0
    for omega in range(n_layers):
        g_ref, b_ref, w_ref = layer_refs[3 * omega:3 * omega + 3]

        # ---- BatchNorm2d (training-mode batch stats, biased var), one pass ----
        x2 = buf_ref[0:cin, :].astype(jnp.float32)              # [cin, M]
        scale, shift = _bn_scale_shift(x2, g_ref[...], b_ref[...], eps)
        xbn = x2 * scale + shift                                 # [cin, M]

        # ---- 'same' conv as kh*kw per-tap matmuls with XLU lane rolls.
        #      Output is y^T [growth, M]: lane-dense MXU result, f32 accumulate.
        y = jnp.zeros((growth, M), jnp.float32)
        for t, (dh, dw) in enumerate(taps):
            off = (dh - ph) * W + (dw - pw)
            xs = xbn if off == 0 else pltpu.roll(xbn, shift=(-off) % M, axis=1)
            w_tap = w_ref[t * growth:(t + 1) * growth, :]        # [growth, cin]
            contrib = jnp.dot(w_tap, xs, preferred_element_type=jnp.float32)
            if dh == ph and dw == pw:                            # center tap: all valid
                y = y + contrib
            else:
                y = y + mask_ref[t:t + 1, :] * contrib

        # ---- activation AFTER the conv (BasicLayer order); last layer: None ----
        if omega < n_layers - 1:
            y = jnp.maximum(y, 0.0)

        # "concat": write this layer's output into its channel (sublane) slice.
        buf_ref[cin:cin + growth, :] = y.astype(buf_ref.dtype)
        cin += growth

    # ---- fused transition layer: BN -> 1x1 conv, no activation ----
    if has_transition:
        x2 = buf_ref[...].astype(jnp.float32)                    # [C_total, M]
        scale, shift = _bn_scale_shift(x2, tg_ref[...], tb_ref[...], eps)
        y = jnp.dot(tw_ref[...], x2 * scale + shift,
                    preferred_element_type=jnp.float32)          # [Cout, M]
        out_ref[...] = y.astype(out_ref.dtype)


# ----------------------------------------------------------------------------
# Wrappers
# ----------------------------------------------------------------------------
def dense_block_pallas(x_cm, layer_params, transi_params, *, growth, n_layers,
                       kernel, img_shape, eps=1e-5):
    kh, kw = kernel
    assert kh % 2 == 1 and kw % 2 == 1, "odd kernel required for 'same' padding"
    N, H, W = img_shape
    C0, M = x_cm.shape
    assert M == N * H * W
    c_total = C0 + growth * n_layers
    has_transition = transi_params is not None

    operands = [x_cm, _conv_shift_masks(N, H, W, kh, kw)]
    for p in layer_params:
        cin = p['w'].shape[2]
        operands.append(p['gamma'].reshape(cin, 1).astype(jnp.float32))
        operands.append(p['beta'].reshape(cin, 1).astype(jnp.float32))
        # HWIO [kh,kw,cin,growth] -> per-tap transposed rows [kh*kw*growth, cin]
        wt = jnp.transpose(p['w'].astype(jnp.float32), (0, 1, 3, 2))
        operands.append(wt.reshape(kh * kw * growth, cin))

    if has_transition:
        cout = transi_params['w'].shape[-1]
        operands.append(
            transi_params['gamma'].reshape(c_total, 1).astype(jnp.float32))
        operands.append(
            transi_params['beta'].reshape(c_total, 1).astype(jnp.float32))
        operands.append(
            transi_params['w'].astype(jnp.float32).reshape(c_total, cout).T)
        out_rows = cout
        scratch = [pltpu.VMEM((c_total, M), jnp.float32)]   # resident concat buf
    else:
        out_rows = c_total
        scratch = []

    kernel_fn = functools.partial(
        _dense_block_kernel, n_layers=n_layers, kh=kh, kw=kw, growth=growth,
        eps=eps, H=H, W=W, has_transition=has_transition)

    return pl.pallas_call(
        kernel_fn,
        out_shape=jax.ShapeDtypeStruct((out_rows, M), x_cm.dtype),
        scratch_shapes=scratch,
    )(*operands)


def dense_block_forward(x_nchw, layer_params, transi_params, *, growth,
                        n_layers, kernel, eps=1e-5):
    """PyTorch-layout entry point: NCHW in, NCHW out."""
    N, C, H, W = x_nchw.shape
    x_cm = jnp.transpose(x_nchw, (1, 0, 2, 3)).reshape(C, N * H * W)
    out_cm = dense_block_pallas(x_cm, layer_params, transi_params,
                                growth=growth, n_layers=n_layers,
                                kernel=kernel, img_shape=(N, H, W), eps=eps)
    c_out = out_cm.shape[0]
    return jnp.transpose(out_cm.reshape(c_out, N, H, W), (1, 0, 2, 3))


def init_dense_block(key, in_channels, growth, n_layers, kernel,
                     out_channels='all'):
    kh, kw = kernel
    layers = []
    for omega in range(n_layers):
        cin = in_channels + growth * omega
        key, wk = jax.random.split(key)
        w = 0.1 * jax.random.normal(wk, (kh, kw, cin, growth), jnp.float32)
        layers.append(dict(gamma=jnp.ones((cin,), jnp.float32),
                           beta=jnp.zeros((cin,), jnp.float32),
                           w=w))
    transi = None
    if out_channels != 'all':
        cin = in_channels + growth * n_layers
        key, wk = jax.random.split(key)
        w = 0.1 * jax.random.normal(wk, (1, 1, cin, out_channels), jnp.float32)
        transi = dict(gamma=jnp.ones((cin,), jnp.float32),
                      beta=jnp.zeros((cin,), jnp.float32),
                      w=w)
    return layers, transi


# ----------------------------------------------------------------------------
# Pure-JAX reference (matches BasicLayer.forward: BN -> conv -> activation)
# ----------------------------------------------------------------------------
def _ref_basic_layer(x, gamma, beta, w, apply_relu, eps=1e-5):
    mean = jnp.mean(x, axis=(0, 1, 2))
    var = jnp.mean((x - mean) ** 2, axis=(0, 1, 2))
    xn = (x - mean) / jnp.sqrt(var + eps) * gamma + beta
    y = lax.conv_general_dilated(
        xn, w, window_strides=(1, 1), padding='SAME',
        dimension_numbers=('NHWC', 'HWIO', 'NHWC'))
    if apply_relu:
        y = jnp.maximum(y, 0.0)
    return y


def _ref_dense_block(x_nhwc, layer_params, transi_params, n_layers):
    x = x_nhwc
    for omega, p in enumerate(layer_params):
        y = _ref_basic_layer(x, p['gamma'], p['beta'], p['w'],
                             apply_relu=omega < n_layers - 1)
        x = jnp.concatenate([x, y], axis=-1)
    if transi_params is not None:
        x = _ref_basic_layer(x, transi_params['gamma'], transi_params['beta'],
                             transi_params['w'], apply_relu=False)
    return x


if __name__ == "__main__":
    key = jax.random.PRNGKey(0)
    key, xk, pk1, pk2 = jax.random.split(key, 4)

    # DenseBlock(in_channels=4, growth=8, n_layers=3, kernel=(3, 3))
    N, C, H, W = 2, 4, 16, 16
    growth, n_layers, kernel = 8, 3, (3, 3)

    x_nchw = jax.random.normal(xk, (N, C, H, W), jnp.float32)   # PyTorch layout
    x_nhwc = jnp.transpose(x_nchw, (0, 2, 3, 1))                # reference layout

    # --- case 1: out_channels='all' (no transition layer) ---
    lp1, tp1 = init_dense_block(pk1, C, growth, n_layers, kernel, 'all')
    out1 = dense_block_forward(x_nchw, lp1, tp1, growth=growth,
                               n_layers=n_layers, kernel=kernel)
    jax.block_until_ready(out1)
    ref1 = jnp.transpose(_ref_dense_block(x_nhwc, lp1, tp1, n_layers),
                         (0, 3, 1, 2))
    assert out1.shape == (N, C + growth * n_layers, H, W), out1.shape
    err1 = float(jnp.max(jnp.abs(out1 - ref1)))
    assert jnp.allclose(out1, ref1, rtol=1e-4, atol=1e-4), err1

    # --- case 2: explicit out_channels=16 -> fused transition (BN + 1x1 conv) ---
    lp2, tp2 = init_dense_block(pk2, C, growth, n_layers, kernel, 16)
    out2 = dense_block_forward(x_nchw, lp2, tp2, growth=growth,
                               n_layers=n_layers, kernel=kernel)
    jax.block_until_ready(out2)
    ref2 = jnp.transpose(_ref_dense_block(x_nhwc, lp2, tp2, n_layers),
                         (0, 3, 1, 2))
    assert out2.shape == (N, 16, H, W), out2.shape
    err2 = float(jnp.max(jnp.abs(out2 - ref2)))
    assert jnp.allclose(out2, ref2, rtol=1e-4, atol=1e-4), err2

    print("KERNEL_OK")
</pallas_src>

<mosaic_0001>
module attributes {stable_mosaic.version = 11 : i64} {
  func.func @_dense_block_kernel(%arg0: memref<4x512xf32, #tpu.memory_space<vmem>>, %arg1: memref<9x512xf32, #tpu.memory_space<vmem>>, %arg2: memref<4x1xf32, #tpu.memory_space<vmem>>, %arg3: memref<4x1xf32, #tpu.memory_space<vmem>>, %arg4: memref<72x4xf32, #tpu.memory_space<vmem>>, %arg5: memref<12x1xf32, #tpu.memory_space<vmem>>, %arg6: memref<12x1xf32, #tpu.memory_space<vmem>>, %arg7: memref<72x12xf32, #tpu.memory_space<vmem>>, %arg8: memref<20x1xf32, #tpu.memory_space<vmem>>, %arg9: memref<20x1xf32, #tpu.memory_space<vmem>>, %arg10: memref<72x20xf32, #tpu.memory_space<vmem>>, %arg11: memref<28x512xf32, #tpu.memory_space<vmem>>) attributes {dimension_semantics = [], scalar_prefetch = 0 : i64, scratch_operands = 0 : i64, tpu.core_type = #tpu.core_type<tc>} {
    %c0 = arith.constant 0 : index
    %c0_0 = arith.constant 0 : index
    %0 = vector.load %arg0[%c0, %c0_0] : memref<4x512xf32, #tpu.memory_space<vmem>>, vector<4x512xf32>
    %c0_1 = arith.constant 0 : index
    %c0_2 = arith.constant 0 : index
    %1 = vector.load %arg11[%c0_1, %c0_2] : memref<28x512xf32, #tpu.memory_space<vmem>>, vector<4x512xf32>
    tpu.vector_store %arg11[%c0_1, %c0_2], %0 {strides = array<i32>} : memref<28x512xf32, #tpu.memory_space<vmem>>, vector<4x512xf32>,
    %c0_3 = arith.constant 0 : index
    %c0_4 = arith.constant 0 : index
    %2 = vector.load %arg11[%c0_3, %c0_4] : memref<28x512xf32, #tpu.memory_space<vmem>>, vector<4x512xf32>
    %c0_5 = arith.constant 0 : index
    %c0_6 = arith.constant 0 : index
    %3 = vector.load %arg2[%c0_5, %c0_6] : memref<4x1xf32, #tpu.memory_space<vmem>>, vector<4x1xf32>
    %c0_7 = arith.constant 0 : index
    %c0_8 = arith.constant 0 : index
    %4 = vector.load %arg3[%c0_7, %c0_8] : memref<4x1xf32, #tpu.memory_space<vmem>>, vector<4x1xf32>
    %cst = arith.constant dense<0.000000e+00> : vector<4xf32>
    %5 = vector.multi_reduction <add>, %2, %cst [1] : vector<4x512xf32> to vector<4xf32>
    %6 = vector.shape_cast %5 : vector<4xf32> to vector<4x1xf32>
    %cst_9 = arith.constant 0.001953125 : f32
    %7 = vector.broadcast %cst_9 : f32 to vector<4x1xf32>
    %8 = arith.mulf %6, %7 : vector<4x1xf32>
    %9 = arith.mulf %2, %2 : vector<4x512xf32>
    %cst_10 = arith.constant dense<0.000000e+00> : vector<4xf32>
    %10 = vector.multi_reduction <add>, %9, %cst_10 [1] : vector<4x512xf32> to vector<4xf32>
    %11 = vector.shape_cast %10 : vector<4xf32> to vector<4x1xf32>
    %cst_11 = arith.constant 0.001953125 : f32
    %12 = vector.broadcast %cst_11 : f32 to vector<4x1xf32>
    %13 = arith.mulf %11, %12 : vector<4x1xf32>
    %14 = arith.mulf %8, %8 : vector<4x1xf32>
    %15 = arith.subf %13, %14 : vector<4x1xf32>
    %cst_12 = arith.constant 9.99999974E-6 : f32
    %16 = vector.broadcast %cst_12 : f32 to vector<4x1xf32>
    %17 = arith.addf %15, %16 : vector<4x1xf32>
    %18 = math.rsqrt %17 : vector<4x1xf32>
    %19 = arith.mulf %3, %18 : vector<4x1xf32>
    %20 = arith.mulf %8, %19 : vector<4x1xf32>
    %21 = arith.subf %4, %20 : vector<4x1xf32>
    %22 = vector.broadcast %19 : vector<4x1xf32> to vector<4x512xf32>
    %23 = arith.mulf %2, %22 : vector<4x512xf32>
    %24 = vector.broadcast %21 : vector<4x1xf32> to vector<4x512xf32>
    %25 = arith.addf %23, %24 : vector<4x512xf32>
    %cst_13 = arith.constant 0.000000e+00 : f32
    %26 = vector.broadcast %cst_13 : f32 to vector<8x512xf32>
    %c17_i32 = arith.constant 17 : i32
    %27 = tpu.dynamic_rotate %25 by %c17_i32 dim 1 : vector<4x512xf32>, i32 -> vector<4x512xf32>
    %c0_14 = arith.constant 0 : index
    %c0_15 = arith.constant 0 : index
    %28 = vector.load %arg4[%c0_14, %c0_15] : memref<72x4xf32, #tpu.memory_space<vmem>>, vector<8x4xf32>
    %cst_16 = arith.constant dense<0.000000e+00> : vector<8x512xf32>
    %29 = tpu.matmul %28, %27, %cst_16 {dimension_numbers = #tpu.dot_dimension_numbers<[1], [0], [0], [1], [0, 0, 1, 1], [], []>} : vector<8x4xf32>, vector<4x512xf32>, vector<8x512xf32> -> vector<8x512xf32>
    %c0_17 = arith.constant 0 : index
    %c0_18 = arith.constant 0 : index
    %30 = vector.load %arg1[%c0_17, %c0_18] : memref<9x512xf32, #tpu.memory_space<vmem>>, vector<1x512xf32>
    %31 = vector.broadcast %30 : vector<1x512xf32> to vector<8x512xf32>
    %32 = arith.mulf %31, %29 : vector<8x512xf32>
    %33 = arith.addf %26, %32 : vector<8x512xf32>
    %c16_i32 = arith.constant 16 : i32
    %34 = tpu.dynamic_rotate %25 by %c16_i32 dim 1 : vector<4x512xf32>, i32 -> vector<4x512xf32>
    %c8 = arith.constant 8 : index
    %c0_19 = arith.constant 0 : index
    %35 = vector.load %arg4[%c8, %c0_19] : memref<72x4xf32, #tpu.memory_space<vmem>>, vector<8x4xf32>
    %cst_20 = arith.constant dense<0.000000e+00> : vector<8x512xf32>
    %36 = tpu.matmul %35, %34, %cst_20 {dimension_numbers = #tpu.dot_dimension_numbers<[1], [0], [0], [1], [0, 0, 1, 1], [], []>} : vector<8x4xf32>, vector<4x512xf32>, vector<8x512xf32> -> vector<8x512xf32>
    %c1 = arith.constant 1 : index
    %c0_21 = arith.constant 0 : index
    %37 = vector.load %arg1[%c1, %c0_21] : memref<9x512xf32, #tpu.memory_space<vmem>>, vector<1x512xf32>
    %38 = vector.broadcast %37 : vector<1x512xf32> to vector<8x512xf32>
    %39 = arith.mulf %38, %36 : vector<8x512xf32>
    %40 = arith.addf %33, %39 : vector<8x512xf32>
    %c15_i32 = arith.constant 15 : i32
    %41 = tpu.dynamic_rotate %25 by %c15_i32 dim 1 : vector<4x512xf32>, i32 -> vector<4x512xf32>
    %c16 = arith.constant 16 : index
    %c0_22 = arith.constant 0 : index
    %42 = vector.load %arg4[%c16, %c0_22] : memref<72x4xf32, #tpu.memory_space<vmem>>, vector<8x4xf32>
    %cst_23 = arith.constant dense<0.000000e+00> : vector<8x512xf32>
    %43 = tpu.matmul %42, %41, %cst_23 {dimension_numbers = #tpu.dot_dimension_numbers<[1], [0], [0], [1], [0, 0, 1, 1], [], []>} : vector<8x4xf32>, vector<4x512xf32>, vector<8x512xf32> -> vector<8x512xf32>
    %c2 = arith.constant 2 : index
    %c0_24 = arith.constant 0 : index
    %44 = vector.load %arg1[%c2, %c0_24] : memref<9x512xf32, #tpu.memory_space<vmem>>, vector<1x512xf32>
    %45 = vector.broadcast %44 : vector<1x512xf32> to vector<8x512xf32>
    %46 = arith.mulf %45, %43 : vector<8x512xf32>
    %47 = arith.addf %40, %46 : vector<8x512xf32>
    %c1_i32 = arith.constant 1 : i32
    %48 = tpu.dynamic_rotate %25 by %c1_i32 dim 1 : vector<4x512xf32>, i32 -> vector<4x512xf32>
    %c24 = arith.constant 24 : index
    %c0_25 = arith.constant 0 : index
    %49 = vector.load %arg4[%c24, %c0_25] : memref<72x4xf32, #tpu.memory_space<vmem>>, vector<8x4xf32>
    %cst_26 = arith.constant dense<0.000000e+00> : vector<8x512xf32>
    %50 = tpu.matmul %49, %48, %cst_26 {dimension_numbers = #tpu.dot_dimension_numbers<[1], [0], [0], [1], [0, 0, 1, 1], [], []>} : vector<8x4xf32>, vector<4x512xf32>, vector<8x512xf32> -> vector<8x512xf32>
    %c3 = arith.constant 3 : index
    %c0_27 = arith.constant 0 : index
    %51 = vector.load %arg1[%c3, %c0_27] : memref<9x512xf32, #tpu.memory_space<vmem>>, vector<1x512xf32>
    %52 = vector.broadcast %51 : vector<1x512xf32> to vector<8x512xf32>
    %53 = arith.mulf %52, %50 : vector<8x512xf32>
    %54 = arith.addf %47, %53 : vector<8x512xf32>
    %c32 = arith.constant 32 : index
    %c0_28 = arith.constant 0 : index
    %55 = vector.load %arg4[%c32, %c0_28] : memref<72x4xf32, #tpu.memory_space<vmem>>, vector<8x4xf32>
    %cst_29 = arith.constant dense<0.000000e+00> : vector<8x512xf32>
    %56 = tpu.matmul %55, %25, %cst_29 {dimension_numbers = #tpu.dot_dimension_numbers<[1], [0], [0], [1], [0, 0, 1, 1], [], []>} : vector<8x4xf32>, vector<4x512xf32>, vector<8x512xf32> -> vector<8x512xf32>
    %57 = arith.addf %54, %56 : vector<8x512xf32>
    %c511_i32 = arith.constant 511 : i32
    %58 = tpu.dynamic_rotate %25 by %c511_i32 dim 1 : vector<4x512xf32>, i32 -> vector<4x512xf32>
    %c40 = arith.constant 40 : index
    %c0_30 = arith.constant 0 : index
    %59 = vector.load %arg4[%c40, %c0_30] : memref<72x4xf32, #tpu.memory_space<vmem>>, vector<8x4xf32>
    %cst_31 = arith.constant dense<0.000000e+00> : vector<8x512xf32>
    %60 = tpu.matmul %59, %58, %cst_31 {dimension_numbers = #tpu.dot_dimension_numbers<[1], [0], [0], [1], [0, 0, 1, 1], [], []>} : vector<8x4xf32>, vector<4x512xf32>, vector<8x512xf32> -> vector<8x512xf32>
    %c5 = arith.constant 5 : index
    %c0_32 = arith.constant 0 : index
    %61 = vector.load %arg1[%c5, %c0_32] : memref<9x512xf32, #tpu.memory_space<vmem>>, vector<1x512xf32>
    %62 = vector.broadcast %61 : vector<1x512xf32> to vector<8x512xf32>
    %63 = arith.mulf %62, %60 : vector<8x512xf32>
    %64 = arith.addf %57, %63 : vector<8x512xf32>
    %c497_i32 = arith.constant 497 : i32
    %65 = tpu.dynamic_rotate %25 by %c497_i32 dim 1 : vector<4x512xf32>, i32 -> vector<4x512xf32>
    %c48 = arith.constant 48 : index
    %c0_33 = arith.constant 0 : index
    %66 = vector.load %arg4[%c48, %c0_33] : memref<72x4xf32, #tpu.memory_space<vmem>>, vector<8x4xf32>
    %cst_34 = arith.constant dense<0.000000e+00> : vector<8x512xf32>
    %67 = tpu.matmul %66, %65, %cst_34 {dimension_numbers = #tpu.dot_dimension_numbers<[1], [0], [0], [1], [0, 0, 1, 1], [], []>} : vector<8x4xf32>, vector<4x512xf32>, vector<8x512xf32> -> vector<8x512xf32>
    %c6 = arith.constant 6 : index
    %c0_35 = arith.constant 0 : index
    %68 = vector.load %arg1[%c6, %c0_35] : memref<9x512xf32, #tpu.memory_space<vmem>>, vector<1x512xf32>
    %69 = vector.broadcast %68 : vector<1x512xf32> to vector<8x512xf32>
    %70 = arith.mulf %69, %67 : vector<8x512xf32>
    %71 = arith.addf %64, %70 : vector<8x512xf32>
    %c496_i32 = arith.constant 496 : i32
    %72 = tpu.dynamic_rotate %25 by %c496_i32 dim 1 : vector<4x512xf32>, i32 -> vector<4x512xf32>
    %c56 = arith.constant 56 : index
    %c0_36 = arith.constant 0 : index
    %73 = vector.load %arg4[%c56, %c0_36] : memref<72x4xf32, #tpu.memory_space<vmem>>, vector<8x4xf32>
    %cst_37 = arith.constant dense<0.000000e+00> : vector<8x512xf32>
    %74 = tpu.matmul %73, %72, %cst_37 {dimension_numbers = #tpu.dot_dimension_numbers<[1], [0], [0], [1], [0, 0, 1, 1], [], []>} : vector<8x4xf32>, vector<4x512xf32>, vector<8x512xf32> -> vector<8x512xf32>
    %c7 = arith.constant 7 : index
    %c0_38 = arith.constant 0 : index
    %75 = vector.load %arg1[%c7, %c0_38] : memref<9x512xf32, #tpu.memory_space<vmem>>, vector<1x512xf32>
    %76 = vector.broadcast %75 : vector<1x512xf32> to vector<8x512xf32>
    %77 = arith.mulf %76, %74 : vector<8x512xf32>
    %78 = arith.addf %71, %77 : vector<8x512xf32>
    %c495_i32 = arith.constant 495 : i32
    %79 = tpu.dynamic_rotate %25 by %c495_i32 dim 1 : vector<4x512xf32>, i32 -> vector<4x512xf32>
    %c64 = arith.constant 64 : index
    %c0_39 = arith.constant 0 : index
    %80 = vector.load %arg4[%c64, %c0_39] : memref<72x4xf32, #tpu.memory_space<vmem>>, vector<8x4xf32>
    %cst_40 = arith.constant dense<0.000000e+00> : vector<8x512xf32>
    %81 = tpu.matmul %80, %79, %cst_40 {dimension_numbers = #tpu.dot_dimension_numbers<[1], [0], [0], [1], [0, 0, 1, 1], [], []>} : vector<8x4xf32>, vector<4x512xf32>, vector<8x512xf32> -> vector<8x512xf32>
    %c8_41 = arith.constant 8 : index
    %c0_42 = arith.constant 0 : index
    %82 = vector.load %arg1[%c8_41, %c0_42] : memref<9x512xf32, #tpu.memory_space<vmem>>, vector<1x512xf32>
    %83 = vector.broadcast %82 : vector<1x512xf32> to vector<8x512xf32>
    %84 = arith.mulf %83, %81 : vector<8x512xf32>
    %85 = arith.addf %78, %84 : vector<8x512xf32>
    %cst_43 = arith.constant 0.000000e+00 : f32
    %86 = vector.broadcast %cst_43 : f32 to vector<8x512xf32>
    %87 = arith.maximumf %85, %86 : vector<8x512xf32>
    %c4 = arith.constant 4 : index
    %c0_44 = arith.constant 0 : index
    %88 = vector.load %arg11[%c4, %c0_44] : memref<28x512xf32, #tpu.memory_space<vmem>>, vector<8x512xf32>
    tpu.vector_store %arg11[%c4, %c0_44], %87 {strides = array<i32>} : memref<28x512xf32, #tpu.memory_space<vmem>>, vector<8x512xf32>,
    %c0_45 = arith.constant 0 : index
    %c0_46 = arith.constant 0 : index
    %89 = vector.load %arg11[%c0_45, %c0_46] : memref<28x512xf32, #tpu.memory_space<vmem>>, vector<12x512xf32>
    %c0_47 = arith.constant 0 : index
    %c0_48 = arith.constant 0 : index
    %90 = vector.load %arg5[%c0_47, %c0_48] : memref<12x1xf32, #tpu.memory_space<vmem>>, vector<12x1xf32>
    %c0_49 = arith.constant 0 : index
    %c0_50 = arith.constant 0 : index
    %91 = vector.load %arg6[%c0_49, %c0_50] : memref<12x1xf32, #tpu.memory_space<vmem>>, vector<12x1xf32>
    %cst_51 = arith.constant dense<0.000000e+00> : vector<12xf32>
    %92 = vector.multi_reduction <add>, %89, %cst_51 [1] : vector<12x512xf32> to vector<12xf32>
    %93 = vector.shape_cast %92 : vector<12xf32> to vector<12x1xf32>
    %cst_52 = arith.constant 0.001953125 : f32
    %94 = vector.broadcast %cst_52 : f32 to vector<12x1xf32>
    %95 = arith.mulf %93, %94 : vector<12x1xf32>
    %96 = arith.mulf %89, %89 : vector<12x512xf32>
    %cst_53 = arith.constant dense<0.000000e+00> : vector<12xf32>
    %97 = vector.multi_reduction <add>, %96, %cst_53 [1] : vector<12x512xf32> to vector<12xf32>
    %98 = vector.shape_cast %97 : vector<12xf32> to vector<12x1xf32>
    %cst_54 = arith.constant 0.001953125 : f32
    %99 = vector.broadcast %cst_54 : f32 to vector<12x1xf32>
    %100 = arith.mulf %98, %99 : vector<12x1xf32>
    %101 = arith.mulf %95, %95 : vector<12x1xf32>
    %102 = arith.subf %100, %101 : vector<12x1xf32>
    %cst_55 = arith.constant 9.99999974E-6 : f32
    %103 = vector.broadcast %cst_55 : f32 to vector<12x1xf32>
    %104 = arith.addf %102, %103 : vector<12x1xf32>
    %105 = math.rsqrt %104 : vector<12x1xf32>
    %106 = arith.mulf %90, %105 : vector<12x1xf32>
    %107 = arith.mulf %95, %106 : vector<12x1xf32>
    %108 = arith.subf %91, %107 : vector<12x1xf32>
    %109 = vector.broadcast %106 : vector<12x1xf32> to vector<12x512xf32>
    %110 = arith.mulf %89, %109 : vector<12x512xf32>
    %111 = vector.broadcast %108 : vector<12x1xf32> to vector<12x512xf32>
    %112 = arith.addf %110, %111 : vector<12x512xf32>
    %cst_56 = arith.constant 0.000000e+00 : f32
    %113 = vector.broadcast %cst_56 : f32 to vector<8x512xf32>
    %c17_i32_57 = arith.constant 17 : i32
    %114 = tpu.dynamic_rotate %112 by %c17_i32_57 dim 1 : vector<12x512xf32>, i32 -> vector<12x512xf32>
    %c0_58 = arith.constant 0 : index
    %c0_59 = arith.constant 0 : index
    %115 = vector.load %arg7[%c0_58, %c0_59] : memref<72x12xf32, #tpu.memory_space<vmem>>, vector<8x12xf32>
    %cst_60 = arith.constant dense<0.000000e+00> : vector<8x512xf32>
    %116 = tpu.matmul %115, %114, %cst_60 {dimension_numbers = #tpu.dot_dimension_numbers<[1], [0], [0], [1], [0, 0, 1, 1], [], []>} : vector<8x12xf32>, vector<12x512xf32>, vector<8x512xf32> -> vector<8x512xf32>
    %c0_61 = arith.constant 0 : index
    %c0_62 = arith.constant 0 : index
    %117 = vector.load %arg1[%c0_61, %c0_62] : memref<9x512xf32, #tpu.memory_space<vmem>>, vector<1x512xf32>
    %118 = vector.broadcast %117 : vector<1x512xf32> to vector<8x512xf32>
    %119 = arith.mulf %118, %116 : vector<8x512xf32>
    %120 = arith.addf %113, %119 : vector<8x512xf32>
    %c16_i32_63 = arith.constant 16 : i32
    %121 = tpu.dynamic_rotate %112 by %c16_i32_63 dim 1 : vector<12x512xf32>, i32 -> vector<12x512xf32>
    %c8_64 = arith.constant 8 : index
    %c0_65 = arith.constant 0 : index
    %122 = vector.load %arg7[%c8_64, %c0_65] : memref<72x12xf32, #tpu.memory_space<vmem>>, vector<8x12xf32>
    %cst_66 = arith.constant dense<0.000000e+00> : vector<8x512xf32>
    %123 = tpu.matmul %122, %121, %cst_66 {dimension_numbers = #tpu.dot_dimension_numbers<[1], [0], [0], [1], [0, 0, 1, 1], [], []>} : vector<8x12xf32>, vector<12x512xf32>, vector<8x512xf32> -> vector<8x512xf32>
    %c1_67 = arith.constant 1 : index
    %c0_68 = arith.constant 0 : index
    %124 = vector.load %arg1[%c1_67, %c0_68] : memref<9x512xf32, #tpu.memory_space<vmem>>, vector<1x512xf32>
    %125 = vector.broadcast %124 : vector<1x512xf32> to vector<8x512xf32>
    %126 = arith.mulf %125, %123 : vector<8x512xf32>
    %127 = arith.addf %120, %126 : vector<8x512xf32>
    %c15_i32_69 = arith.constant 15 : i32
    %128 = tpu.dynamic_rotate %112 by %c15_i32_69 dim 1 : vector<12x512xf32>, i32 -> vector<12x512xf32>
    %c16_70 = arith.constant 16 : index
    %c0_71 = arith.constant 0 : index
    %129 = vector.load %arg7[%c16_70, %c0_71] : memref<72x12xf32, #tpu.memory_space<vmem>>, vector<8x12xf32>
    %cst_72 = arith.constant dense<0.000000e+00> : vector<8x512xf32>
    %130 = tpu.matmul %129, %128, %cst_72 {dimension_numbers = #tpu.dot_dimension_numbers<[1], [0], [0], [1], [0, 0, 1, 1], [], []>} : vector<8x12xf32>, vector<12x512xf32>, vector<8x512xf32> -> vector<8x512xf32>
    %c2_73 = arith.constant 2 : index
    %c0_74 = arith.constant 0 : index
    %131 = vector.load %arg1[%c2_73, %c0_74] : memref<9x512xf32, #tpu.memory_space<vmem>>, vector<1x512xf32>
    %132 = vector.broadcast %131 : vector<1x512xf32> to vector<8x512xf32>
    %133 = arith.mulf %132, %130 : vector<8x512xf32>
    %134 = arith.addf %127, %133 : vector<8x512xf32>
    %c1_i32_75 = arith.constant 1 : i32
    %135 = tpu.dynamic_rotate %112 by %c1_i32_75 dim 1 : vector<12x512xf32>, i32 -> vector<12x512xf32>
    %c24_76 = arith.constant 24 : index
    %c0_77 = arith.constant 0 : index
    %136 = vector.load %arg7[%c24_76, %c0_77] : memref<72x12xf32, #tpu.memory_space<vmem>>, vector<8x12xf32>
    %cst_78 = arith.constant dense<0.000000e+00> : vector<8x512xf32>
    %137 = tpu.matmul %136, %135, %cst_78 {dimension_numbers = #tpu.dot_dimension_numbers<[1], [0], [0], [1], [0, 0, 1, 1], [], []>} : vector<8x12xf32>, vector<12x512xf32>, vector<8x512xf32> -> vector<8x512xf32>
    %c3_79 = arith.constant 3 : index
    %c0_80 = arith.constant 0 : index
    %138 = vector.load %arg1[%c3_79, %c0_80] : memref<9x512xf32, #tpu.memory_space<vmem>>, vector<1x512xf32>
    %139 = vector.broadcast %138 : vector<1x512xf32> to vector<8x512xf32>
    %140 = arith.mulf %139, %137 : vector<8x512xf32>
    %141 = arith.addf %134, %140 : vector<8x512xf32>
    %c32_81 = arith.constant 32 : index
    %c0_82 = arith.constant 0 : index
    %142 = vector.load %arg7[%c32_81, %c0_82] : memref<72x12xf32, #tpu.memory_space<vmem>>, vector<8x12xf32>
    %cst_83 = arith.constant dense<0.000000e+00> : vector<8x512xf32>
    %143 = tpu.matmul %142, %112, %cst_83 {dimension_numbers = #tpu.dot_dimension_numbers<[1], [0], [0], [1], [0, 0, 1, 1], [], []>} : vector<8x12xf32>, vector<12x512xf32>, vector<8x512xf32> -> vector<8x512xf32>
    %144 = arith.addf %141, %143 : vector<8x512xf32>
    %c511_i32_84 = arith.constant 511 : i32
    %145 = tpu.dynamic_rotate %112 by %c511_i32_84 dim 1 : vector<12x512xf32>, i32 -> vector<12x512xf32>
    %c40_85 = arith.constant 40 : index
    %c0_86 = arith.constant 0 : index
    %146 = vector.load %arg7[%c40_85, %c0_86] : memref<72x12xf32, #tpu.memory_space<vmem>>, vector<8x12xf32>
    %cst_87 = arith.constant dense<0.000000e+00> : vector<8x512xf32>
    %147 = tpu.matmul %146, %145, %cst_87 {dimension_numbers = #tpu.dot_dimension_numbers<[1], [0], [0], [1], [0, 0, 1, 1], [], []>} : vector<8x12xf32>, vector<12x512xf32>, vector<8x512xf32> -> vector<8x512xf32>
    %c5_88 = arith.constant 5 : index
    %c0_89 = arith.constant 0 : index
    %148 = vector.load %arg1[%c5_88, %c0_89] : memref<9x512xf32, #tpu.memory_space<vmem>>, vector<1x512xf32>
    %149 = vector.broadcast %148 : vector<1x512xf32> to vector<8x512xf32>
    %150 = arith.mulf %149, %147 : vector<8x512xf32>
    %151 = arith.addf %144, %150 : vector<8x512xf32>
    %c497_i32_90 = arith.constant 497 : i32
    %152 = tpu.dynamic_rotate %112 by %c497_i32_90 dim 1 : vector<12x512xf32>, i32 -> vector<12x512xf32>
    %c48_91 = arith.constant 48 : index
    %c0_92 = arith.constant 0 : index
    %153 = vector.load %arg7[%c48_91, %c0_92] : memref<72x12xf32, #tpu.memory_space<vmem>>, vector<8x12xf32>
    %cst_93 = arith.constant dense<0.000000e+00> : vector<8x512xf32>
    %154 = tpu.matmul %153, %152, %cst_93 {dimension_numbers = #tpu.dot_dimension_numbers<[1], [0], [0], [1], [0, 0, 1, 1], [], []>} : vector<8x12xf32>, vector<12x512xf32>, vector<8x512xf32> -> vector<8x512xf32>
    %c6_94 = arith.constant 6 : index
    %c0_95 = arith.constant 0 : index
    %155 = vector.load %arg1[%c6_94, %c0_95] : memref<9x512xf32, #tpu.memory_space<vmem>>, vector<1x512xf32>
    %156 = vector.broadcast %155 : vector<1x512xf32> to vector<8x512xf32>
    %157 = arith.mulf %156, %154 : vector<8x512xf32>
    %158 = arith.addf %151, %157 : vector<8x512xf32>
    %c496_i32_96 = arith.constant 496 : i32
    %159 = tpu.dynamic_rotate %112 by %c496_i32_96 dim 1 : vector<12x512xf32>, i32 -> vector<12x512xf32>
    %c56_97 = arith.constant 56 : index
    %c0_98 = arith.constant 0 : index
    %160 = vector.load %arg7[%c56_97, %c0_98] : memref<72x12xf32, #tpu.memory_space<vmem>>, vector<8x12xf32>
    %cst_99 = arith.constant dense<0.000000e+00> : vector<8x512xf32>
    %161 = tpu.matmul %160, %159, %cst_99 {dimension_numbers = #tpu.dot_dimension_numbers<[1], [0], [0], [1], [0, 0, 1, 1], [], []>} : vector<8x12xf32>, vector<12x512xf32>, vector<8x512xf32> -> vector<8x512xf32>
    %c7_100 = arith.constant 7 : index
    %c0_101 = arith.constant 0 : index
    %162 = vector.load %arg1[%c7_100, %c0_101] : memref<9x512xf32, #tpu.memory_space<vmem>>, vector<1x512xf32>
    %163 = vector.broadcast %162 : vector<1x512xf32> to vector<8x512xf32>
    %164 = arith.mulf %163, %161 : vector<8x512xf32>
    %165 = arith.addf %158, %164 : vector<8x512xf32>
    %c495_i32_102 = arith.constant 495 : i32
    %166 = tpu.dynamic_rotate %112 by %c495_i32_102 dim 1 : vector<12x512xf32>, i32 -> vector<12x512xf32>
    %c64_103 = arith.constant 64 : index
    %c0_104 = arith.constant 0 : index
    %167 = vector.load %arg7[%c64_103, %c0_104] : memref<72x12xf32, #tpu.memory_space<vmem>>, vector<8x12xf32>
    %cst_105 = arith.constant dense<0.000000e+00> : vector<8x512xf32>
    %168 = tpu.matmul %167, %166, %cst_105 {dimension_numbers = #tpu.dot_dimension_numbers<[1], [0], [0], [1], [0, 0, 1, 1], [], []>} : vector<8x12xf32>, vector<12x512xf32>, vector<8x512xf32> -> vector<8x512xf32>
    %c8_106 = arith.constant 8 : index
    %c0_107 = arith.constant 0 : index
    %169 = vector.load %arg1[%c8_106, %c0_107] : memref<9x512xf32, #tpu.memory_space<vmem>>, vector<1x512xf32>
    %170 = vector.broadcast %169 : vector<1x512xf32> to vector<8x512xf32>
    %171 = arith.mulf %170, %168 : vector<8x512xf32>
    %172 = arith.addf %165, %171 : vector<8x512xf32>
    %cst_108 = arith.constant 0.000000e+00 : f32
    %173 = vector.broadcast %cst_108 : f32 to vector<8x512xf32>
    %174 = arith.maximumf %172, %173 : vector<8x512xf32>
    %c12 = arith.constant 12 : index
    %c0_109 = arith.constant 0 : index
    %175 = vector.load %arg11[%c12, %c0_109] : memref<28x512xf32, #tpu.memory_space<vmem>>, vector<8x512xf32>
    tpu.vector_store %arg11[%c12, %c0_109], %174 {strides = array<i32>} : memref<28x512xf32, #tpu.memory_space<vmem>>, vector<8x512xf32>,
    %c0_110 = arith.constant 0 : index
    %c0_111 = arith.constant 0 : index
    %176 = vector.load %arg11[%c0_110, %c0_111] : memref<28x512xf32, #tpu.memory_space<vmem>>, vector<20x512xf32>
    %c0_112 = arith.constant 0 : index
    %c0_113 = arith.constant 0 : index
    %177 = vector.load %arg8[%c0_112, %c0_113] : memref<20x1xf32, #tpu.memory_space<vmem>>, vector<20x1xf32>
    %c0_114 = arith.constant 0 : index
    %c0_115 = arith.constant 0 : index
    %178 = vector.load %arg9[%c0_114, %c0_115] : memref<20x1xf32, #tpu.memory_space<vmem>>, vector<20x1xf32>
    %cst_116 = arith.constant dense<0.000000e+00> : vector<20xf32>
    %179 = vector.multi_reduction <add>, %176, %cst_116 [1] : vector<20x512xf32> to vector<20xf32>
    %180 = vector.shape_cast %179 : vector<20xf32> to vector<20x1xf32>
    %cst_117 = arith.constant 0.001953125 : f32
    %181 = vector.broadcast %cst_117 : f32 to vector<20x1xf32>
    %182 = arith.mulf %180, %181 : vector<20x1xf32>
    %183 = arith.mulf %176, %176 : vector<20x512xf32>
    %cst_118 = arith.constant dense<0.000000e+00> : vector<20xf32>
    %184 = vector.multi_reduction <add>, %183, %cst_118 [1] : vector<20x512xf32> to vector<20xf32>
    %185 = vector.shape_cast %184 : vector<20xf32> to vector<20x1xf32>
    %cst_119 = arith.constant 0.001953125 : f32
    %186 = vector.broadcast %cst_119 : f32 to vector<20x1xf32>
    %187 = arith.mulf %185, %186 : vector<20x1xf32>
    %188 = arith.mulf %182, %182 : vector<20x1xf32>
    %189 = arith.subf %187, %188 : vector<20x1xf32>
    %cst_120 = arith.constant 9.99999974E-6 : f32
    %190 = vector.broadcast %cst_120 : f32 to vector<20x1xf32>
    %191 = arith.addf %189, %190 : vector<20x1xf32>
    %192 = math.rsqrt %191 : vector<20x1xf32>
    %193 = arith.mulf %177, %192 : vector<20x1xf32>
    %194 = arith.mulf %182, %193 : vector<20x1xf32>
    %195 = arith.subf %178, %194 : vector<20x1xf32>
    %196 = vector.broadcast %193 : vector<20x1xf32> to vector<20x512xf32>
    %197 = arith.mulf %176, %196 : vector<20x512xf32>
    %198 = vector.broadcast %195 : vector<20x1xf32> to vector<20x512xf32>
    %199 = arith.addf %197, %198 : vector<20x512xf32>
    %cst_121 = arith.constant 0.000000e+00 : f32
    %200 = vector.broadcast %cst_121 : f32 to vector<8x512xf32>
    %c17_i32_122 = arith.constant 17 : i32
    %201 = tpu.dynamic_rotate %199 by %c17_i32_122 dim 1 : vector<20x512xf32>, i32 -> vector<20x512xf32>
    %c0_123 = arith.constant 0 : index
    %c0_124 = arith.constant 0 : index
    %202 = vector.load %arg10[%c0_123, %c0_124] : memref<72x20xf32, #tpu.memory_space<vmem>>, vector<8x20xf32>
    %cst_125 = arith.constant dense<0.000000e+00> : vector<8x512xf32>
    %203 = tpu.matmul %202, %201, %cst_125 {dimension_numbers = #tpu.dot_dimension_numbers<[1], [0], [0], [1], [0, 0, 1, 1], [], []>} : vector<8x20xf32>, vector<20x512xf32>, vector<8x512xf32> -> vector<8x512xf32>
    %c0_126 = arith.constant 0 : index
    %c0_127 = arith.constant 0 : index
    %204 = vector.load %arg1[%c0_126, %c0_127] : memref<9x512xf32, #tpu.memory_space<vmem>>, vector<1x512xf32>
    %205 = vector.broadcast %204 : vector<1x512xf32> to vector<8x512xf32>
    %206 = arith.mulf %205, %203 : vector<8x512xf32>
    %207 = arith.addf %200, %206 : vector<8x512xf32>
    %c16_i32_128 = arith.constant 16 : i32
    %208 = tpu.dynamic_rotate %199 by %c16_i32_128 dim 1 : vector<20x512xf32>, i32 -> vector<20x512xf32>
    %c8_129 = arith.constant 8 : index
    %c0_130 = arith.constant 0 : index
    %209 = vector.load %arg10[%c8_129, %c0_130] : memref<72x20xf32, #tpu.memory_space<vmem>>, vector<8x20xf32>
    %cst_131 = arith.constant dense<0.000000e+00> : vector<8x512xf32>
    %210 = tpu.matmul %209, %208, %cst_131 {dimension_numbers = #tpu.dot_dimension_numbers<[1], [0], [0], [1], [0, 0, 1, 1], [], []>} : vector<8x20xf32>, vector<20x512xf32>, vector<8x512xf32> -> vector<8x512xf32>
    %c1_132 = arith.constant 1 : index
    %c0_133 = arith.constant 0 : index
    %211 = vector.load %arg1[%c1_132, %c0_133] : memref<9x512xf32, #tpu.memory_space<vmem>>, vector<1x512xf32>
    %212 = vector.broadcast %211 : vector<1x512xf32> to vector<8x512xf32>
    %213 = arith.mulf %212, %210 : vector<8x512xf32>
    %214 = arith.addf %207, %213 : vector<8x512xf32>
    %c15_i32_134 = arith.constant 15 : i32
    %215 = tpu.dynamic_rotate %199 by %c15_i32_134 dim 1 : vector<20x512xf32>, i32 -> vector<20x512xf32>
    %c16_135 = arith.constant 16 : index
    %c0_136 = arith.constant 0 : index
    %216 = vector.load %arg10[%c16_135, %c0_136] : memref<72x20xf32, #tpu.memory_space<vmem>>, vector<8x20xf32>
    %cst_137 = arith.constant dense<0.000000e+00> : vector<8x512xf32>
    %217 = tpu.matmul %216, %215, %cst_137 {dimension_numbers = #tpu.dot_dimension_numbers<[1], [0], [0], [1], [0, 0, 1, 1], [], []>} : vector<8x20xf32>, vector<20x512xf32>, vector<8x512xf32> -> vector<8x512xf32>
    %c2_138 = arith.constant 2 : index
    %c0_139 = arith.constant 0 : index
    %218 = vector.load %arg1[%c2_138, %c0_139] : memref<9x512xf32, #tpu.memory_space<vmem>>, vector<1x512xf32>
    %219 = vector.broadcast %218 : vector<1x512xf32> to vector<8x512xf32>
    %220 = arith.mulf %219, %217 : vector<8x512xf32>
    %221 = arith.addf %214, %220 : vector<8x512xf32>
    %c1_i32_140 = arith.constant 1 : i32
    %222 = tpu.dynamic_rotate %199 by %c1_i32_140 dim 1 : vector<20x512xf32>, i32 -> vector<20x512xf32>
    %c24_141 = arith.constant 24 : index
    %c0_142 = arith.constant 0 : index
    %223 = vector.load %arg10[%c24_141, %c0_142] : memref<72x20xf32, #tpu.memory_space<vmem>>, vector<8x20xf32>
    %cst_143 = arith.constant dense<0.000000e+00> : vector<8x512xf32>
    %224 = tpu.matmul %223, %222, %cst_143 {dimension_numbers = #tpu.dot_dimension_numbers<[1], [0], [0], [1], [0, 0, 1, 1], [], []>} : vector<8x20xf32>, vector<20x512xf32>, vector<8x512xf32> -> vector<8x512xf32>
    %c3_144 = arith.constant 3 : index
    %c0_145 = arith.constant 0 : index
    %225 = vector.load %arg1[%c3_144, %c0_145] : memref<9x512xf32, #tpu.memory_space<vmem>>, vector<1x512xf32>
    %226 = vector.broadcast %225 : vector<1x512xf32> to vector<8x512xf32>
    %227 = arith.mulf %226, %224 : vector<8x512xf32>
    %228 = arith.addf %221, %227 : vector<8x512xf32>
    %c32_146 = arith.constant 32 : index
    %c0_147 = arith.constant 0 : index
    %229 = vector.load %arg10[%c32_146, %c0_147] : memref<72x20xf32, #tpu.memory_space<vmem>>, vector<8x20xf32>
    %cst_148 = arith.constant dense<0.000000e+00> : vector<8x512xf32>
    %230 = tpu.matmul %229, %199, %cst_148 {dimension_numbers = #tpu.dot_dimension_numbers<[1], [0], [0], [1], [0, 0, 1, 1], [], []>} : vector<8x20xf32>, vector<20x512xf32>, vector<8x512xf32> -> vector<8x512xf32>
    %231 = arith.addf %228, %230 : vector<8x512xf32>
    %c511_i32_149 = arith.constant 511 : i32
    %232 = tpu.dynamic_rotate %199 by %c511_i32_149 dim 1 : vector<20x512xf32>, i32 -> vector<20x512xf32>
    %c40_150 = arith.constant 40 : index
    %c0_151 = arith.constant 0 : index
    %233 = vector.load %arg10[%c40_150, %c0_151] : memref<72x20xf32, #tpu.memory_space<vmem>>, vector<8x20xf32>
    %cst_152 = arith.constant dense<0.000000e+00> : vector<8x512xf32>
    %234 = tpu.matmul %233, %232, %cst_152 {dimension_numbers = #tpu.dot_dimension_numbers<[1], [0], [0], [1], [0, 0, 1, 1], [], []>} : vector<8x20xf32>, vector<20x512xf32>, vector<8x512xf32> -> vector<8x512xf32>
    %c5_153 = arith.constant 5 : index
    %c0_154 = arith.constant 0 : index
    %235 = vector.load %arg1[%c5_153, %c0_154] : memref<9x512xf32, #tpu.memory_space<vmem>>, vector<1x512xf32>
    %236 = vector.broadcast %235 : vector<1x512xf32> to vector<8x512xf32>
    %237 = arith.mulf %236, %234 : vector<8x512xf32>
    %238 = arith.addf %231, %237 : vector<8x512xf32>
    %c497_i32_155 = arith.constant 497 : i32
    %239 = tpu.dynamic_rotate %199 by %c497_i32_155 dim 1 : vector<20x512xf32>, i32 -> vector<20x512xf32>
    %c48_156 = arith.constant 48 : index
    %c0_157 = arith.constant 0 : index
    %240 = vector.load %arg10[%c48_156, %c0_157] : memref<72x20xf32, #tpu.memory_space<vmem>>, vector<8x20xf32>
    %cst_158 = arith.constant dense<0.000000e+00> : vector<8x512xf32>
    %241 = tpu.matmul %240, %239, %cst_158 {dimension_numbers = #tpu.dot_dimension_numbers<[1], [0], [0], [1], [0, 0, 1, 1], [], []>} : vector<8x20xf32>, vector<20x512xf32>, vector<8x512xf32> -> vector<8x512xf32>
    %c6_159 = arith.constant 6 : index
    %c0_160 = arith.constant 0 : index
    %242 = vector.load %arg1[%c6_159, %c0_160] : memref<9x512xf32, #tpu.memory_space<vmem>>, vector<1x512xf32>
    %243 = vector.broadcast %242 : vector<1x512xf32> to vector<8x512xf32>
    %244 = arith.mulf %243, %241 : vector<8x512xf32>
    %245 = arith.addf %238, %244 : vector<8x512xf32>
    %c496_i32_161 = arith.constant 496 : i32
    %246 = tpu.dynamic_rotate %199 by %c496_i32_161 dim 1 : vector<20x512xf32>, i32 -> vector<20x512xf32>
    %c56_162 = arith.constant 56 : index
    %c0_163 = arith.constant 0 : index
    %247 = vector.load %arg10[%c56_162, %c0_163] : memref<72x20xf32, #tpu.memory_space<vmem>>, vector<8x20xf32>
    %cst_164 = arith.constant dense<0.000000e+00> : vector<8x512xf32>
    %248 = tpu.matmul %247, %246, %cst_164 {dimension_numbers = #tpu.dot_dimension_numbers<[1], [0], [0], [1], [0, 0, 1, 1], [], []>} : vector<8x20xf32>, vector<20x512xf32>, vector<8x512xf32> -> vector<8x512xf32>
    %c7_165 = arith.constant 7 : index
    %c0_166 = arith.constant 0 : index
    %249 = vector.load %arg1[%c7_165, %c0_166] : memref<9x512xf32, #tpu.memory_space<vmem>>, vector<1x512xf32>
    %250 = vector.broadcast %249 : vector<1x512xf32> to vector<8x512xf32>
    %251 = arith.mulf %250, %248 : vector<8x512xf32>
    %252 = arith.addf %245, %251 : vector<8x512xf32>
    %c495_i32_167 = arith.constant 495 : i32
    %253 = tpu.dynamic_rotate %199 by %c495_i32_167 dim 1 : vector<20x512xf32>, i32 -> vector<20x512xf32>
    %c64_168 = arith.constant 64 : index
    %c0_169 = arith.constant 0 : index
    %254 = vector.load %arg10[%c64_168, %c0_169] : memref<72x20xf32, #tpu.memory_space<vmem>>, vector<8x20xf32>
    %cst_170 = arith.constant dense<0.000000e+00> : vector<8x512xf32>
    %255 = tpu.matmul %254, %253, %cst_170 {dimension_numbers = #tpu.dot_dimension_numbers<[1], [0], [0], [1], [0, 0, 1, 1], [], []>} : vector<8x20xf32>, vector<20x512xf32>, vector<8x512xf32> -> vector<8x512xf32>
    %c8_171 = arith.constant 8 : index
    %c0_172 = arith.constant 0 : index
    %256 = vector.load %arg1[%c8_171, %c0_172] : memref<9x512xf32, #tpu.memory_space<vmem>>, vector<1x512xf32>
    %257 = vector.broadcast %256 : vector<1x512xf32> to vector<8x512xf32>
    %258 = arith.mulf %257, %255 : vector<8x512xf32>
    %259 = arith.addf %252, %258 : vector<8x512xf32>
    %c20 = arith.constant 20 : index
    %c0_173 = arith.constant 0 : index
    %260 = vector.load %arg11[%c20, %c0_173] : memref<28x512xf32, #tpu.memory_space<vmem>>, vector<8x512xf32>
    tpu.vector_store %arg11[%c20, %c0_173], %259 {strides = array<i32>} : memref<28x512xf32, #tpu.memory_space<vmem>>, vector<8x512xf32>,
    return
  }
}

</mosaic_0001>

<llo_original>
// kernel: tpu_custom_call.1
$region0: #{tpu_custom_call.1}
  #allocation0 [shape = 'u32[]', space=smem, size = 0x4, offset = 0x4, fixed_abs, tag = 'smem constant byte address 0x4 - core index']
  #allocation1 [shape = 'u32[144,128]{1,0:T(1,128)}', space=vmem, size = 0x12000, scoped, tag = 'internal scratch']
  %s0 = inlined_call_operand.vmem [shape: f32[4,512], index: 0, kind: input, shape index: {}]
  %s1 = inlined_call_operand.vmem [shape: f32[9,512], index: 1, kind: input, shape index: {}]
  %s2 = inlined_call_operand.vmem [shape: f32[4,1], index: 2, kind: input, shape index: {}]
  %s3 = inlined_call_operand.vmem [shape: f32[4,1], index: 3, kind: input, shape index: {}]
  %s4 = inlined_call_operand.vmem [shape: f32[72,4], index: 4, kind: input, shape index: {}]
  %s5 = inlined_call_operand.vmem [shape: f32[12,1], index: 5, kind: input, shape index: {}]
  %s6 = inlined_call_operand.vmem [shape: f32[12,1], index: 6, kind: input, shape index: {}]
  %s7 = inlined_call_operand.vmem [shape: f32[72,12], index: 7, kind: input, shape index: {}]
  %s8 = inlined_call_operand.vmem [shape: f32[20,1], index: 8, kind: input, shape index: {}]
  %s9 = inlined_call_operand.vmem [shape: f32[20,1], index: 9, kind: input, shape index: {}]
  %s10 = inlined_call_operand.vmem [shape: f32[72,20], index: 10, kind: input, shape index: {}]
  %s11 = inlined_call_operand.hbm [shape: f32[28,512], index: 11, kind: output, shape index: {}]
  %s12 = sld [smem:[#allocation0]]
  $region54: #{tpu_custom_call.1} parent=0
    _
  %s14 = ssub.s32 1, %s12
  %s15 = scalar_select 0, %s14, %s12
  $region1: #{tpu_custom_call.1} parent=0
    #allocation2 [shape = 'u8[65536]{0}', space=vmem, size = 0x10000, scoped, tag = 'output window, operand 0, single buffered']
    #allocation3 [shape = 's32[1]{0}', space=sflag, size = 0x4, scoped, tag = 'scoped memory for tpu_custom_call.1']
    %16 = vsyncpa [#allocation3], 0
    // Predicated region
    $region2: #{tpu_custom_call.1} parent=1 // pred_check
      _
    $region3: #{tpu_custom_call.1} parent=1 // pred_check_branch
      %18 = sbr.rel (0) target = $region5
    $region4: #{tpu_custom_call.1} parent=1 // pred_region
      _
    $region5: #{tpu_custom_call.1} parent=1 // pred_fallthru
      _
    // Predicated region
    $region6: #{tpu_custom_call.1} parent=1 // pred_check
      _
    $region7: #{tpu_custom_call.1} parent=1 // pred_check_branch
      %20 = sbr.rel (0) target = $region9
    $region8: #{tpu_custom_call.1} parent=1 // pred_region
      _
    $region9: #{tpu_custom_call.1} parent=1 // pred_fallthru
      _
    // Predicated region
    $region10: #{tpu_custom_call.1} parent=1 // pred_check
      _
    $region11: #{tpu_custom_call.1} parent=1 // pred_check_branch
      %22 = sbr.rel (0) target = $region13
    $region12: #{tpu_custom_call.1} parent=1 // pred_region
      _
    $region13: #{tpu_custom_call.1} parent=1 // pred_fallthru
      _
    // Predicated region
    $region14: #{tpu_custom_call.1} parent=1 // pred_check
      _
    $region15: #{tpu_custom_call.1} parent=1 // pred_check_branch
      %24 = sbr.rel (0) target = $region17
    $region16: #{tpu_custom_call.1} parent=1 // pred_region
      _
    $region17: #{tpu_custom_call.1} parent=1 // pred_fallthru
      _
    // Predicated region
    $region18: #{tpu_custom_call.1} parent=1 // pred_check
      _
    $region19: #{tpu_custom_call.1} parent=1 // pred_check_branch
      %26 = sbr.rel (0) target = $region21
    $region20: #{tpu_custom_call.1} parent=1 // pred_region
      _
    $region21: #{tpu_custom_call.1} parent=1 // pred_fallthru
      _
    // Predicated region
    $region22: #{tpu_custom_call.1} parent=1 // pred_check
      _
    $region23: #{tpu_custom_call.1} parent=1 // pred_check_branch
      %28 = sbr.rel (0) target = $region25
    $region24: #{tpu_custom_call.1} parent=1 // pred_region
      _
    $region25: #{tpu_custom_call.1} parent=1 // pred_fallthru
      _
    // Predicated region
    $region26: #{tpu_custom_call.1} parent=1 // pred_check
      _
    $region27: #{tpu_custom_call.1} parent=1 // pred_check_branch
      %30 = sbr.rel (0) target = $region29
    $region28: #{tpu_custom_call.1} parent=1 // pred_region
      _
    $region29: #{tpu_custom_call.1} parent=1 // pred_fallthru
      _
    // Predicated region
    $region30: #{tpu_custom_call.1} parent=1 // pred_check
      _
    $region31: #{tpu_custom_call.1} parent=1 // pred_check_branch
      %32 = sbr.rel (0) target = $region33
    $region32: #{tpu_custom_call.1} parent=1 // pred_region
      _
    $region33: #{tpu_custom_call.1} parent=1 // pred_fallthru
      _
    // Predicated region
    $region34: #{tpu_custom_call.1} parent=1 // pred_check
      _
    $region35: #{tpu_custom_call.1} parent=1 // pred_check_branch
      %34 = sbr.rel (0) target = $region37
    $region36: #{tpu_custom_call.1} parent=1 // pred_region
      _
    $region37: #{tpu_custom_call.1} parent=1 // pred_fallthru
      _
    // Predicated region
    $region38: #{tpu_custom_call.1} parent=1 // pred_check
      _
    $region39: #{tpu_custom_call.1} parent=1 // pred_check_branch
      %36 = sbr.rel (0) target = $region41
    $region40: #{tpu_custom_call.1} parent=1 // pred_region
      _
    $region41: #{tpu_custom_call.1} parent=1 // pred_fallthru
      _
    // Predicated region
    $region42: #{tpu_custom_call.1} parent=1 // pred_check
      _
    $region43: #{tpu_custom_call.1} parent=1 // pred_check_branch
      %38 = sbr.rel (0) target = $region45
    $region44: #{tpu_custom_call.1} parent=1 // pred_region
      _
    $region45: #{tpu_custom_call.1} parent=1 // pred_fallthru
      _
    %v39 = vld [vmem:[%s0] sm:$0xff]
    %v40 = vld [vmem:[%s0 + $0x8] sm:$0xff]
    %v43 = vcombine.high %v39, %v39
    %v44 = vcombine.high %v40, %v40
    %47 = vst [vmem:[#allocation2] sm:$0xf] %v39
    %48 = vst [vmem:[#allocation2 + $0x8] sm:$0xf] %v43
    %49 = vst [vmem:[#allocation2 + $0x10] sm:$0xf] %v40
    %50 = vst [vmem:[#allocation2 + $0x18] sm:$0xf] %v44
    %v51 = vld [vmem:[#allocation2] sm:$0xf]
    %v52 = vld [vmem:[#allocation2 + $0x8] sm:$0xf]
    %v53 = vld [vmem:[#allocation2 + $0x10] sm:$0xf]
    %v54 = vld [vmem:[#allocation2 + $0x18] sm:$0xf]
    %v55 = vld [vmem:[%s2] sm:$0xf]
    %v56 = vld [vmem:[%s3] sm:$0xf]
    %vm57 = vcmask 1043456
    %v58 = vsel %vm57, %v51, 0.0
    %v59 = vsel %vm57, %v52, 0.0
    %v60 = vadd.f32 %v58, %v59
    %v61 = vsel %vm57, %v53, 0.0
    %v62 = vadd.f32 %v60, %v61
    %v63 = vsel %vm57, %v54, 0.0
    %v64 = vadd.f32 %v62, %v63
    %65 = vadd.xlane.f32.xlu0 %v64
    %v66 = vpop.xlane.xlu0 %65
    %v67 = vmul.f32 %v66, 0.001953125
    %v68 = vmul.f32 %v51, %v51
    %v69 = vmul.f32 %v52, %v52
    %v70 = vmul.f32 %v53, %v53
    %v71 = vmul.f32 %v54, %v54
    %v72 = vsel %vm57, %v68, 0.0
    %v73 = vsel %vm57, %v69, 0.0
    %v74 = vadd.f32 %v72, %v73
    %v75 = vsel %vm57, %v70, 0.0
    %v76 = vadd.f32 %v74, %v75
    %v77 = vsel %vm57, %v71, 0.0
    %v78 = vadd.f32 %v76, %v77
    %79 = vadd.xlane.f32.xlu0 %v78
    %v80 = vpop.xlane.xlu0 %79
    %v81 = vmul.f32 %v80, 0.001953125
    %v82 = vmul.f32 %v67, %v67
    %v83 = vsub.f32 %v81, %v82
    %v84 = vadd.f32 %v83, 1e-05
    %v85 = vrsqrt.pop %v84
    %v86 = vmul.f32 %v55, %v85
    %v87 = vmul.f32 %v67, %v86
    %v88 = vsub.f32 %v56, %v87
    %90 = vset.pattern.permute.xlu0 0
    %91 = vperm.xlu0 %90, %v86
    %v92 = vpop.permute.xlu0 %91
    %v94 = vmul.f32 %v51, %v92
    %v95 = vmul.f32 %v52, %v92
    %v96 = vmul.f32 %v53, %v92
    %v97 = vmul.f32 %v54, %v92
    %99 = vset.pattern.permute.xlu0 0
    %100 = vperm.xlu0 %99, %v88
    %v101 = vpop.permute.xlu0 %100
    %v103 = vadd.f32 %v94, %v101
    %v104 = vadd.f32 %v95, %v101
    %v105 = vadd.f32 %v96, %v101
    %v106 = vadd.f32 %v97, %v101
    %107 = vrot.lane.b32.xlu0 %v103, 17
    %v108 = vpop.permute.xlu0 %107
    %109 = vrot.lane.b32.xlu0 %v104, 17
    %v110 = vpop.permute.xlu0 %109
    %111 = vrot.lane.b32.xlu0 %v105, 17
    %v112 = vpop.permute.xlu0 %111
    %113 = vrot.lane.b32.xlu0 %v106, 17
    %v114 = vpop.permute.xlu0 %113
    %v115 = vlaneseq
    %v116 = vand.u32 %v115, 127
    %vm117 = vcmp.lt.s32.totalorder %v116, 17
    %v118 = vsel %vm117, %v112, %v114
    %v119 = vsel %vm117, %v110, %v112
    %v120 = vsel %vm117, %v108, %v110
    %v121 = vsel %vm117, %v114, %v108
    %v122 = vld [vmem:[%s4] sm:$0xff]
    %vm123 = vcmask 31744
    %v125 = vsel %vm123, %v122, 0
    %v128 = vsel %vm57, %v121, 0
    %v131 = vsel %vm57, %v120, 0
    %v134 = vsel %vm57, %v119, 0
    %v137 = vsel %vm57, %v118, 0
    %139 = vmatprep.subr.mxu0 %v131
    %140 = vmatpush1.msra.mxu0 %v128
    %141 = vmatprep.subr.mxu0 0.0
    %142 = vmatpush1.msra.mxu0 0.0
    %143 = vmatprep.subr.mxu0 0.0
    %144 = vmatpush1.msra.mxu0 0.0
    %145 = vmatprep.subr.mxu0 0.0
    %146 = vmatpush1.msra.mxu0 0.0
    %147 = vmatprep.subr.mxu0 0.0
    %148 = vmatpush1.msra.mxu0 0.0
    %149 = vmatprep.subr.mxu0 0.0
    %150 = vmatpush1.msra.mxu0 0.0
    %151 = vmatprep.subr.mxu0 0.0
    %152 = vmatpush1.msra.mxu0 0.0
    %153 = vmatprep.subr.mxu0 0.0
    %154 = vmatpush1.msra.mxu0 0.0
    %155 = vmatprep.subr.mxu0 0.0
    %156 = vmatpush1.msra.mxu0 0.0
    %157 = vmatprep.subr.mxu0 0.0
    %158 = vmatpush1.msra.mxu0 0.0
    %159 = vmatprep.subr.mxu0 0.0
    %160 = vmatpush1.msra.mxu0 0.0
    %161 = vmatprep.subr.mxu0 0.0
    %162 = vmatpush1.msra.mxu0 0.0
    %163 = vmatprep.subr.mxu0 0.0
    %164 = vmatpush1.msra.mxu0 0.0
    %165 = vmatprep.subr.mxu0 0.0
    %166 = vmatpush1.msra.mxu0 0.0
    %167 = vmatprep.subr.mxu0 0.0
    %168 = vmatpush1.msra.mxu0 0.0
    %169 = vmatprep.subr.mxu0 0.0
    %170 = vmatpush1.msra.mxu0 0.0
    %171 = vmatprep.subr.mxu0 0.0
    %172 = vmatpush1.msra.mxu0 0.0
    %173 = vmatprep.subr.mxu0 0.0
    %174 = vmatpush1.msra.mxu0 0.0
    %175 = vmatprep.subr.mxu0 0.0
    %176 = vmatpush1.msra.mxu0 0.0
    %177 = vmatprep.subr.mxu0 0.0
    %178 = vmatpush1.msra.mxu0 0.0
    %179 = vmatprep.subr.mxu0 0.0
    %180 = vmatpush1.msra.mxu0 0.0
    %181 = vmatprep.subr.mxu0 0.0
    %182 = vmatpush1.msra.mxu0 0.0
    %183 = vmatprep.subr.mxu0 0.0
    %184 = vmatpush1.msra.mxu0 0.0
    %185 = vmatprep.subr.mxu0 0.0
    %186 = vmatpush1.msra.mxu0 0.0
    %187 = vmatprep.subr.mxu0 0.0
    %188 = vmatpush1.msra.mxu0 0.0
    %189 = vmatprep.subr.mxu0 0.0
    %190 = vmatpush1.msra.mxu0 0.0
    %191 = vmatprep.subr.mxu0 0.0
    %192 = vmatpush1.msra.mxu0 0.0
    %193 = vmatprep.subr.mxu0 0.0
    %194 = vmatpush1.msra.mxu0 0.0
    %195 = vmatprep.subr.mxu0 0.0
    %196 = vmatpush1.msra.mxu0 0.0
    %197 = vmatprep.subr.mxu0 0.0
    %198 = vmatpush1.msra.mxu0 0.0
    %199 = vmatprep.subr.mxu0 0.0
    %200 = vmatpush1.msra.mxu0 0.0
    %201 = vmatprep.subr.mxu0 0.0
    %202 = vmatpush1.msra.mxu0 0.0
    %203 = vmatprep.mubr.f32.mxu0 0.0
    %204 = vmatmul.mubr.f32.gmra.mrb[0].mxu0 %v125
    %v205 = vpop.f32.mrb[0].mxu0
    %v206 = vadd.f32 0.0, %v205
    %v207 = vpop.f32.mrb[0].mxu0
    %v208 = vadd.f32 0.0, %v207
    %209 = vdwg.mxu0
    %210 = vmatprep.subr.mxu0 %v137
    %211 = vmatpush1.msra.mxu0 %v134
    %212 = vmatprep.subr.mxu0 0.0
    %213 = vmatpush1.msra.mxu0 0.0
    %214 = vmatprep.subr.mxu0 0.0
    %215 = vmatpush1.msra.mxu0 0.0
    %216 = vmatprep.subr.mxu0 0.0
    %217 = vmatpush1.msra.mxu0 0.0
    %218 = vmatprep.subr.mxu0 0.0
    %219 = vmatpush1.msra.mxu0 0.0
    %220 = vmatprep.subr.mxu0 0.0
    %221 = vmatpush1.msra.mxu0 0.0
    %222 = vmatprep.subr.mxu0 0.0
    %223 = vmatpush1.msra.mxu0 0.0
    %224 = vmatprep.subr.mxu0 0.0
    %225 = vmatpush1.msra.mxu0 0.0
    %226 = vmatprep.subr.mxu0 0.0
    %227 = vmatpush1.msra.mxu0 0.0
    %228 = vmatprep.subr.mxu0 0.0
    %229 = vmatpush1.msra.mxu0 0.0
    %230 = vmatprep.subr.mxu0 0.0
    %231 = vmatpush1.msra.mxu0 0.0
    %232 = vmatprep.subr.mxu0 0.0
    %233 = vmatpush1.msra.mxu0 0.0
    %234 = vmatprep.subr.mxu0 0.0
    %235 = vmatpush1.msra.mxu0 0.0
    %236 = vmatprep.subr.mxu0 0.0
    %237 = vmatpush1.msra.mxu0 0.0
    %238 = vmatprep.subr.mxu0 0.0
    %239 = vmatpush1.msra.mxu0 0.0
    %240 = vmatprep.subr.mxu0 0.0
    %241 = vmatpush1.msra.mxu0 0.0
    %242 = vmatprep.subr.mxu0 0.0
    %243 = vmatpush1.msra.mxu0 0.0
    %244 = vmatprep.subr.mxu0 0.0
    %245 = vmatpush1.msra.mxu0 0.0
    %246 = vmatprep.subr.mxu0 0.0
    %247 = vmatpush1.msra.mxu0 0.0
    %248 = vmatprep.subr.mxu0 0.0
    %249 = vmatpush1.msra.mxu0 0.0
    %250 = vmatprep.subr.mxu0 0.0
    %251 = vmatpush1.msra.mxu0 0.0
    %252 = vmatprep.subr.mxu0 0.0
    %253 = vmatpush1.msra.mxu0 0.0
    %254 = vmatprep.subr.mxu0 0.0
    %255 = vmatpush1.msra.mxu0 0.0
    %256 = vmatprep.subr.mxu0 0.0
    %257 = vmatpush1.msra.mxu0 0.0
    %258 = vmatprep.subr.mxu0 0.0
    %259 = vmatpush1.msra.mxu0 0.0
    %260 = vmatprep.subr.mxu0 0.0
    %261 = vmatpush1.msra.mxu0 0.0
    %262 = vmatprep.subr.mxu0 0.0
    %263 = vmatpush1.msra.mxu0 0.0
    %264 = vmatprep.subr.mxu0 0.0
    %265 = vmatpush1.msra.mxu0 0.0
    %266 = vmatprep.subr.mxu0 0.0
    %267 = vmatpush1.msra.mxu0 0.0
    %268 = vmatprep.subr.mxu0 0.0
    %269 = vmatpush1.msra.mxu0 0.0
    %270 = vmatprep.subr.mxu0 0.0
    %271 = vmatpush1.msra.mxu0 0.0
    %272 = vmatprep.subr.mxu0 0.0
    %273 = vmatpush1.msra.mxu0 0.0
    %274 = vmatprep.mubr.f32.mxu0 0.0
    %275 = vmatmul.mubr.f32.gmra.mrb[0].mxu0 %v125
    %v276 = vpop.f32.mrb[0].mxu0
    %v277 = vadd.f32 0.0, %v276
    %v278 = vpop.f32.mrb[0].mxu0
    %v279 = vadd.f32 0.0, %v278
    %280 = vdwg.mxu0
    %v281 = vld [vmem:[%s1] ss:$8 sm:$0xf]
    %v283 = vlaneseq
    %v284 = vshrl.u32 %v283, 7
    %v285 = vsub.s32 0, %v284
    %v286 = vrot.slane %v281, %v285
    %v287 = vlaneseq
    %v288 = vshrl.u32 %v287, 7
    %v289 = vsub.s32 1, %v288
    %v290 = vrot.slane %v281, %v289
    %v291 = vlaneseq
    %v292 = vshrl.u32 %v291, 7
    %v293 = vsub.s32 2, %v292
    %v294 = vrot.slane %v281, %v293
    %v295 = vlaneseq
    %v296 = vshrl.u32 %v295, 7
    %v297 = vsub.s32 3, %v296
    %v298 = vrot.slane %v281, %v297
    %v303 = vmul.f32 %v286, %v206
    %v304 = vmul.f32 %v290, %v208
    %v305 = vmul.f32 %v294, %v277
    %v306 = vmul.f32 %v298, %v279
    %v307 = vadd.f32 %v303, 0.0
    %v308 = vadd.f32 %v304, 0.0
    %v309 = vadd.f32 %v305, 0.0
    %v310 = vadd.f32 %v306, 0.0
    %311 = vrot.lane.b32.xlu0 %v103, 16
    %v312 = vpop.permute.xlu0 %311
    %313 = vrot.lane.b32.xlu0 %v104, 16
    %v314 = vpop.permute.xlu0 %313
    %315 = vrot.lane.b32.xlu0 %v105, 16
    %v316 = vpop.permute.xlu0 %315
    %317 = vrot.lane.b32.xlu0 %v106, 16
    %v318 = vpop.permute.xlu0 %317
    %vm319 = vcmp.lt.s32.totalorder %v116, 16
    %v320 = vsel %vm319, %v316, %v318
    %v321 = vsel %vm319, %v314, %v316
    %v322 = vsel %vm319, %v312, %v314
    %v323 = vsel %vm319, %v318, %v312
    %v324 = vld [vmem:[%s4 + $0x8] sm:$0xff]
    %v326 = vsel %vm123, %v324, 0
    %v329 = vsel %vm57, %v323, 0
    %v332 = vsel %vm57, %v322, 0
    %v335 = vsel %vm57, %v321, 0
    %v338 = vsel %vm57, %v320, 0
    %340 = vmatprep.subr.mxu0 %v332
    %341 = vmatpush1.msra.mxu0 %v329
    %342 = vmatprep.subr.mxu0 0.0
    %343 = vmatpush1.msra.mxu0 0.0
    %344 = vmatprep.subr.mxu0 0.0
    %345 = vmatpush1.msra.mxu0 0.0
    %346 = vmatprep.subr.mxu0 0.0
    %347 = vmatpush1.msra.mxu0 0.0
    %348 = vmatprep.subr.mxu0 0.0
    %349 = vmatpush1.msra.mxu0 0.0
    %350 = vmatprep.subr.mxu0 0.0
    %351 = vmatpush1.msra.mxu0 0.0
    %352 = vmatprep.subr.mxu0 0.0
    %353 = vmatpush1.msra.mxu0 0.0
    %354 = vmatprep.subr.mxu0 0.0
    %355 = vmatpush1.msra.mxu0 0.0
    %356 = vmatprep.subr.mxu0 0.0
    %357 = vmatpush1.msra.mxu0 0.0
    %358 = vmatprep.subr.mxu0 0.0
    %359 = vmatpush1.msra.mxu0 0.0
    %360 = vmatprep.subr.mxu0 0.0
    %361 = vmatpush1.msra.mxu0 0.0
    %362 = vmatprep.subr.mxu0 0.0
    %363 = vmatpush1.msra.mxu0 0.0
    %364 = vmatprep.subr.mxu0 0.0
    %365 = vmatpush1.msra.mxu0 0.0
    %366 = vmatprep.subr.mxu0 0.0
    %367 = vmatpush1.msra.mxu0 0.0
    %368 = vmatprep.subr.mxu0 0.0
    %369 = vmatpush1.msra.mxu0 0.0
    %370 = vmatprep.subr.mxu0 0.0
    %371 = vmatpush1.msra.mxu0 0.0
    %372 = vmatprep.subr.mxu0 0.0
    %373 = vmatpush1.msra.mxu0 0.0
    %374 = vmatprep.subr.mxu0 0.0
    %375 = vmatpush1.msra.mxu0 0.0
    %376 = vmatprep.subr.mxu0 0.0
    %377 = vmatpush1.msra.mxu0 0.0
    %378 = vmatprep.subr.mxu0 0.0
    %379 = vmatpush1.msra.mxu0 0.0
    %380 = vmatprep.subr.mxu0 0.0
    %381 = vmatpush1.msra.mxu0 0.0
    %382 = vmatprep.subr.mxu0 0.0
    %383 = vmatpush1.msra.mxu0 0.0
    %384 = vmatprep.subr.mxu0 0.0
    %385 = vmatpush1.msra.mxu0 0.0
    %386 = vmatprep.subr.mxu0 0.0
    %387 = vmatpush1.msra.mxu0 0.0
    %388 = vmatprep.subr.mxu0 0.0
    %389 = vmatpush1.msra.mxu0 0.0
    %390 = vmatprep.subr.mxu0 0.0
    %391 = vmatpush1.msra.mxu0 0.0
    %392 = vmatprep.subr.mxu0 0.0
    %393 = vmatpush1.msra.mxu0 0.0
    %394 = vmatprep.subr.mxu0 0.0
    %395 = vmatpush1.msra.mxu0 0.0
    %396 = vmatprep.subr.mxu0 0.0
    %397 = vmatpush1.msra.mxu0 0.0
    %398 = vmatprep.subr.mxu0 0.0
    %399 = vmatpush1.msra.mxu0 0.0
    %400 = vmatprep.subr.mxu0 0.0
    %401 = vmatpush1.msra.mxu0 0.0
    %402 = vmatprep.subr.mxu0 0.0
    %403 = vmatpush1.msra.mxu0 0.0
    %404 = vmatprep.mubr.f32.mxu0 0.0
    %405 = vmatmul.mubr.f32.gmra.mrb[0].mxu0 %v326
    %v406 = vpop.f32.mrb[0].mxu0
    %v407 = vadd.f32 0.0, %v406
    %v408 = vpop.f32.mrb[0].mxu0
    %v409 = vadd.f32 0.0, %v408
    %410 = vdwg.mxu0
    %411 = vmatprep.subr.mxu0 %v338
    %412 = vmatpush1.msra.mxu0 %v335
    %413 = vmatprep.subr.mxu0 0.0
    %414 = vmatpush1.msra.mxu0 0.0
    %415 = vmatprep.subr.mxu0 0.0
    %416 = vmatpush1.msra.mxu0 0.0
    %417 = vmatprep.subr.mxu0 0.0
    %418 = vmatpush1.msra.mxu0 0.0
    %419 = vmatprep.subr.mxu0 0.0
    %420 = vmatpush1.msra.mxu0 0.0
    %421 = vmatprep.subr.mxu0 0.0
    %422 = vmatpush1.msra.mxu0 0.0
    %423 = vmatprep.subr.mxu0 0.0
    %424 = vmatpush1.msra.mxu0 0.0
    %425 = vmatprep.subr.mxu0 0.0
    %426 = vmatpush1.msra.mxu0 0.0
    %427 = vmatprep.subr.mxu0 0.0
    %428 = vmatpush1.msra.mxu0 0.0
    %429 = vmatprep.subr.mxu0 0.0
    %430 = vmatpush1.msra.mxu0 0.0
    %431 = vmatprep.subr.mxu0 0.0
    %432 = vmatpush1.msra.mxu0 0.0
    %433 = vmatprep.subr.mxu0 0.0
    %434 = vmatpush1.msra.mxu0 0.0
    %435 = vmatprep.subr.mxu0 0.0
    %436 = vmatpush1.msra.mxu0 0.0
    %437 = vmatprep.subr.mxu0 0.0
    %438 = vmatpush1.msra.mxu0 0.0
    %439 = vmatprep.subr.mxu0 0.0
    %440 = vmatpush1.msra.mxu0 0.0
    %441 = vmatprep.subr.mxu0 0.0
    %442 = vmatpush1.msra.mxu0 0.0
    %443 = vmatprep.subr.mxu0 0.0
    %444 = vmatpush1.msra.mxu0 0.0
    %445 = vmatprep.subr.mxu0 0.0
    %446 = vmatpush1.msra.mxu0 0.0
    %447 = vmatprep.subr.mxu0 0.0
    %448 = vmatpush1.msra.mxu0 0.0
    %449 = vmatprep.subr.mxu0 0.0
    %450 = vmatpush1.msra.mxu0 0.0
    %451 = vmatprep.subr.mxu0 0.0
    %452 = vmatpush1.msra.mxu0 0.0
    %453 = vmatprep.subr.mxu0 0.0
    %454 = vmatpush1.msra.mxu0 0.0
    %455 = vmatprep.subr.mxu0 0.0
    %456 = vmatpush1.msra.mxu0 0.0
    %457 = vmatprep.subr.mxu0 0.0
    %458 = vmatpush1.msra.mxu0 0.0
    %459 = vmatprep.subr.mxu0 0.0
    %460 = vmatpush1.msra.mxu0 0.0
    %461 = vmatprep.subr.mxu0 0.0
    %462 = vmatpush1.msra.mxu0 0.0
    %463 = vmatprep.subr.mxu0 0.0
    %464 = vmatpush1.msra.mxu0 0.0
    %465 = vmatprep.subr.mxu0 0.0
    %466 = vmatpush1.msra.mxu0 0.0
    %467 = vmatprep.subr.mxu0 0.0
    %468 = vmatpush1.msra.mxu0 0.0
    %469 = vmatprep.subr.mxu0 0.0
    %470 = vmatpush1.msra.mxu0 0.0
    %471 = vmatprep.subr.mxu0 0.0
    %472 = vmatpush1.msra.mxu0 0.0
    %473 = vmatprep.subr.mxu0 0.0
    %474 = vmatpush1.msra.mxu0 0.0
    %475 = vmatprep.mubr.f32.mxu0 0.0
    %476 = vmatmul.mubr.f32.gmra.mrb[0].mxu0 %v326
    %v477 = vpop.f32.mrb[0].mxu0
    %v478 = vadd.f32 0.0, %v477
    %v479 = vpop.f32.mrb[0].mxu0
    %v480 = vadd.f32 0.0, %v479
    %481 = vdwg.mxu0
    %s482 = scalar_lea.vmem %s1, 1
    %v483 = vld [vmem:[%s482] ss:$8 sm:$0xf]
    %v485 = vlaneseq
    %v486 = vshrl.u32 %v485, 7
    %v487 = vsub.s32 0, %v486
    %v488 = vrot.slane %v483, %v487
    %v489 = vlaneseq
    %v490 = vshrl.u32 %v489, 7
    %v491 = vsub.s32 1, %v490
    %v492 = vrot.slane %v483, %v491
    %v493 = vlaneseq
    %v494 = vshrl.u32 %v493, 7
    %v495 = vsub.s32 2, %v494
    %v496 = vrot.slane %v483, %v495
    %v497 = vlaneseq
    %v498 = vshrl.u32 %v497, 7
    %v499 = vsub.s32 3, %v498
    %v500 = vrot.slane %v483, %v499
    %v505 = vmul.f32 %v488, %v407
    %v506 = vmul.f32 %v492, %v409
    %v507 = vmul.f32 %v496, %v478
    %v508 = vmul.f32 %v500, %v480
    %v509 = vadd.f32 %v307, %v505
    %v510 = vadd.f32 %v308, %v506
    %v511 = vadd.f32 %v309, %v507
    %v512 = vadd.f32 %v310, %v508
    %513 = vrot.lane.b32.xlu0 %v103, 15
    %v514 = vpop.permute.xlu0 %513
    %515 = vrot.lane.b32.xlu0 %v104, 15
    %v516 = vpop.permute.xlu0 %515
    %517 = vrot.lane.b32.xlu0 %v105, 15
    %v518 = vpop.permute.xlu0 %517
    %519 = vrot.lane.b32.xlu0 %v106, 15
    %v520 = vpop.permute.xlu0 %519
    %vm521 = vcmp.lt.s32.totalorder %v116, 15
    %v522 = vsel %vm521, %v518, %v520
    %v523 = vsel %vm521, %v516, %v518
    %v524 = vsel %vm521, %v514, %v516
    %v525 = vsel %vm521, %v520, %v514
    %v526 = vld [vmem:[%s4 + $0x10] sm:$0xff]
    %v528 = vsel %vm123, %v526, 0
    %v531 = vsel %vm57, %v525, 0
    %v534 = vsel %vm57, %v524, 0
    %v537 = vsel %vm57, %v523, 0
    %v540 = vsel %vm57, %v522, 0
    %542 = vmatprep.subr.mxu0 %v534
    %543 = vmatpush1.msra.mxu0 %v531
    %544 = vmatprep.subr.mxu0 0.0
    %545 = vmatpush1.msra.mxu0 0.0
    %546 = vmatprep.subr.mxu0 0.0
    %547 = vmatpush1.msra.mxu0 0.0
    %548 = vmatprep.subr.mxu0 0.0
    %549 = vmatpush1.msra.mxu0 0.0
    %550 = vmatprep.subr.mxu0 0.0
    %551 = vmatpush1.msra.mxu0 0.0
    %552 = vmatprep.subr.mxu0 0.0
    %553 = vmatpush1.msra.mxu0 0.0
    %554 = vmatprep.subr.mxu0 0.0
    %555 = vmatpush1.msra.mxu0 0.0
    %556 = vmatprep.subr.mxu0 0.0
    %557 = vmatpush1.msra.mxu0 0.0
    %558 = vmatprep.subr.mxu0 0.0
    %559 = vmatpush1.msra.mxu0 0.0
    %560 = vmatprep.subr.mxu0 0.0
    %561 = vmatpush1.msra.mxu0 0.0
    %562 = vmatprep.subr.mxu0 0.0
    %563 = vmatpush1.msra.mxu0 0.0
    %564 = vmatprep.subr.mxu0 0.0
    %565 = vmatpush1.msra.mxu0 0.0
    %566 = vmatprep.subr.mxu0 0.0
    %567 = vmatpush1.msra.mxu0 0.0
    %568 = vmatprep.subr.mxu0 0.0
    %569 = vmatpush1.msra.mxu0 0.0
    %570 = vmatprep.subr.mxu0 0.0
    %571 = vmatpush1.msra.mxu0 0.0
    %572 = vmatprep.subr.mxu0 0.0
    %573 = vmatpush1.msra.mxu0 0.0
    %574 = vmatprep.subr.mxu0 0.0
    %575 = vmatpush1.msra.mxu0 0.0
    %576 = vmatprep.subr.mxu0 0.0
    %577 = vmatpush1.msra.mxu0 0.0
    %578 = vmatprep.subr.mxu0 0.0
    %579 = vmatpush1.msra.mxu0 0.0
    %580 = vmatprep.subr.mxu0 0.0
    %581 = vmatpush1.msra.mxu0 0.0
    %582 = vmatprep.subr.mxu0 0.0
    %583 = vmatpush1.msra.mxu0 0.0
    %584 = vmatprep.subr.mxu0 0.0
    %585 = vmatpush1.msra.mxu0 0.0
    %586 = vmatprep.subr.mxu0 0.0
    %587 = vmatpush1.msra.mxu0 0.0
    %588 = vmatprep.subr.mxu0 0.0
    %589 = vmatpush1.msra.mxu0 0.0
    %590 = vmatprep.subr.mxu0 0.0
    %591 = vmatpush1.msra.mxu0 0.0
    %592 = vmatprep.subr.mxu0 0.0
    %593 = vmatpush1.msra.mxu0 0.0
    %594 = vmatprep.subr.mxu0 0.0
    %595 = vmatpush1.msra.mxu0 0.0
    %596 = vmatprep.subr.mxu0 0.0
    %597 = vmatpush1.msra.mxu0 0.0
    %598 = vmatprep.subr.mxu0 0.0
    %599 = vmatpush1.msra.mxu0 0.0
    %600 = vmatprep.subr.mxu0 0.0
    %601 = vmatpush1.msra.mxu0 0.0
    %602 = vmatprep.subr.mxu0 0.0
    %603 = vmatpush1.msra.mxu0 0.0
    %604 = vmatprep.subr.mxu0 0.0
    %605 = vmatpush1.msra.mxu0 0.0
    %606 = vmatprep.mubr.f32.mxu0 0.0
    %607 = vmatmul.mubr.f32.gmra.mrb[0].mxu0 %v528
    %v608 = vpop.f32.mrb[0].mxu0
    %v609 = vadd.f32 0.0, %v608
    %v610 = vpop.f32.mrb[0].mxu0
    %v611 = vadd.f32 0.0, %v610
    %612 = vdwg.mxu0
    %613 = vmatprep.subr.mxu0 %v540
    %614 = vmatpush1.msra.mxu0 %v537
    %615 = vmatprep.subr.mxu0 0.0
    %616 = vmatpush1.msra.mxu0 0.0
    %617 = vmatprep.subr.mxu0 0.0
    %618 = vmatpush1.msra.mxu0 0.0
    %619 = vmatprep.subr.mxu0 0.0
    %620 = vmatpush1.msra.mxu0 0.0
    %621 = vmatprep.subr.mxu0 0.0
    %622 = vmatpush1.msra.mxu0 0.0
    %623 = vmatprep.subr.mxu0 0.0
    %624 = vmatpush1.msra.mxu0 0.0
    %625 = vmatprep.subr.mxu0 0.0
    %626 = vmatpush1.msra.mxu0 0.0
    %627 = vmatprep.subr.mxu0 0.0
    %628 = vmatpush1.msra.mxu0 0.0
    %629 = vmatprep.subr.mxu0 0.0
    %630 = vmatpush1.msra.mxu0 0.0
    %631 = vmatprep.subr.mxu0 0.0
    %632 = vmatpush1.msra.mxu0 0.0
    %633 = vmatprep.subr.mxu0 0.0
    %634 = vmatpush1.msra.mxu0 0.0
    %635 = vmatprep.subr.mxu0 0.0
    %636 = vmatpush1.msra.mxu0 0.0
    %637 = vmatprep.subr.mxu0 0.0
    %638 = vmatpush1.msra.mxu0 0.0
    %639 = vmatprep.subr.mxu0 0.0
    %640 = vmatpush1.msra.mxu0 0.0
    %641 = vmatprep.subr.mxu0 0.0
    %642 = vmatpush1.msra.mxu0 0.0
    %643 = vmatprep.subr.mxu0 0.0
    %644 = vmatpush1.msra.mxu0 0.0
    %645 = vmatprep.subr.mxu0 0.0
    %646 = vmatpush1.msra.mxu0 0.0
    %647 = vmatprep.subr.mxu0 0.0
    %648 = vmatpush1.msra.mxu0 0.0
    %649 = vmatprep.subr.mxu0 0.0
    %650 = vmatpush1.msra.mxu0 0.0
    %651 = vmatprep.subr.mxu0 0.0
    %652 = vmatpush1.msra.mxu0 0.0
    %653 = vmatprep.subr.mxu0 0.0
    %654 = vmatpush1.msra.mxu0 0.0
    %655 = vmatprep.subr.mxu0 0.0
    %656 = vmatpush1.msra.mxu0 0.0
    %657 = vmatprep.subr.mxu0 0.0
    %658 = vmatpush1.msra.mxu0 0.0
    %659 = vmatprep.subr.mxu0 0.0
    %660 = vmatpush1.msra.mxu0 0.0
    %661 = vmatprep.subr.mxu0 0.0
    %662 = vmatpush1.msra.mxu0 0.0
    %663 = vmatprep.subr.mxu0 0.0
    %664 = vmatpush1.msra.mxu0 0.0
    %665 = vmatprep.subr.mxu0 0.0
    %666 = vmatpush1.msra.mxu0 0.0
    %667 = vmatprep.subr.mxu0 0.0
    %668 = vmatpush1.msra.mxu0 0.0
    %669 = vmatprep.subr.mxu0 0.0
    %670 = vmatpush1.msra.mxu0 0.0
    %671 = vmatprep.subr.mxu0 0.0
    %672 = vmatpush1.msra.mxu0 0.0
    %673 = vmatprep.subr.mxu0 0.0
    %674 = vmatpush1.msra.mxu0 0.0
    %675 = vmatprep.subr.mxu0 0.0
    %676 = vmatpush1.msra.mxu0 0.0
    %677 = vmatprep.mubr.f32.mxu0 0.0
    %678 = vmatmul.mubr.f32.gmra.mrb[0].mxu0 %v528
    %v679 = vpop.f32.mrb[0].mxu0
    %v680 = vadd.f32 0.0, %v679
    %v681 = vpop.f32.mrb[0].mxu0
    %v682 = vadd.f32 0.0, %v681
    %683 = vdwg.mxu0
    %s684 = scalar_lea.vmem %s1, 2
    %v685 = vld [vmem:[%s684] ss:$8 sm:$0xf]
    %v687 = vlaneseq
    %v688 = vshrl.u32 %v687, 7
    %v689 = vsub.s32 0, %v688
    %v690 = vrot.slane %v685, %v689
    %v691 = vlaneseq
    %v692 = vshrl.u32 %v691, 7
    %v693 = vsub.s32 1, %v692
    %v694 = vrot.slane %v685, %v693
    %v695 = vlaneseq
    %v696 = vshrl.u32 %v695, 7
    %v697 = vsub.s32 2, %v696
    %v698 = vrot.slane %v685, %v697
    %v699 = vlaneseq
    %v700 = vshrl.u32 %v699, 7
    %v701 = vsub.s32 3, %v700
    %v702 = vrot.slane %v685, %v701
    %v707 = vmul.f32 %v690, %v609
    %v708 = vmul.f32 %v694, %v611
    %v709 = vmul.f32 %v698, %v680
    %v710 = vmul.f32 %v702, %v682
    %v711 = vadd.f32 %v509, %v707
    %v712 = vadd.f32 %v510, %v708
    %v713 = vadd.f32 %v511, %v709
    %v714 = vadd.f32 %v512, %v710
    %715 = vrot.lane.b32.xlu0 %v103, 1
    %v716 = vpop.permute.xlu0 %715
    %717 = vrot.lane.b32.xlu0 %v104, 1
    %v718 = vpop.permute.xlu0 %717
    %719 = vrot.lane.b32.xlu0 %v105, 1
    %v720 = vpop.permute.xlu0 %719
    %721 = vrot.lane.b32.xlu0 %v106, 1
    %v722 = vpop.permute.xlu0 %721
    %vm723 = vcmp.lt.s32.totalorder %v116, 1
    %v724 = vsel %vm723, %v720, %v722
    %v725 = vsel %vm723, %v718, %v720
    %v726 = vsel %vm723, %v716, %v718
    %v727 = vsel %vm723, %v722, %v716
    %v728 = vld [vmem:[%s4 + $0x18] sm:$0xff]
    %v730 = vsel %vm123, %v728, 0
    %v733 = vsel %vm57, %v727, 0
    %v736 = vsel %vm57, %v726, 0
    %v739 = vsel %vm57, %v725, 0
    %v742 = vsel %vm57, %v724, 0
    %744 = vmatprep.subr.mxu0 %v736
    %745 = vmatpush1.msra.mxu0 %v733
    %746 = vmatprep.subr.mxu0 0.0
    %747 = vmatpush1.msra.mxu0 0.0
    %748 = vmatprep.subr.mxu0 0.0
    %749 = vmatpush1.msra.mxu0 0.0
    %750 = vmatprep.subr.mxu0 0.0
    %751 = vmatpush1.msra.mxu0 0.0
    %752 = vmatprep.subr.mxu0 0.0
    %753 = vmatpush1.msra.mxu0 0.0
    %754 = vmatprep.subr.mxu0 0.0
    %755 = vmatpush1.msra.mxu0 0.0
    %756 = vmatprep.subr.mxu0 0.0
    %757 = vmatpush1.msra.mxu0 0.0
    %758 = vmatprep.subr.mxu0 0.0
    %759 = vmatpush1.msra.mxu0 0.0
    %760 = vmatprep.subr.mxu0 0.0
    %761 = vmatpush1.msra.mxu0 0.0
    %762 = vmatprep.subr.mxu0 0.0
    %763 = vmatpush1.msra.mxu0 0.0
    %764 = vmatprep.subr.mxu0 0.0
    %765 = vmatpush1.msra.mxu0 0.0
    %766 = vmatprep.subr.mxu0 0.0
    %767 = vmatpush1.msra.mxu0 0.0
    %768 = vmatprep.subr.mxu0 0.0
    %769 = vmatpush1.msra.mxu0 0.0
    %770 = vmatprep.subr.mxu0 0.0
    %771 = vmatpush1.msra.mxu0 0.0
    %772 = vmatprep.subr.mxu0 0.0
    %773 = vmatpush1.msra.mxu0 0.0
    %774 = vmatprep.subr.mxu0 0.0
    %775 = vmatpush1.msra.mxu0 0.0
    %776 = vmatprep.subr.mxu0 0.0
    %777 = vmatpush1.msra.mxu0 0.0
    %778 = vmatprep.subr.mxu0 0.0
    %779 = vmatpush1.msra.mxu0 0.0
    %780 = vmatprep.subr.mxu0 0.0
    %781 = vmatpush1.msra.mxu0 0.0
    %782 = vmatprep.subr.mxu0 0.0
    %783 = vmatpush1.msra.mxu0 0.0
    %784 = vmatprep.subr.mxu0 0.0
    %785 = vmatpush1.msra.mxu0 0.0
    %786 = vmatprep.subr.mxu0 0.0
    %787 = vmatpush1.msra.mxu0 0.0
    %788 = vmatprep.subr.mxu0 0.0
    %789 = vmatpush1.msra.mxu0 0.0
    %790 = vmatprep.subr.mxu0 0.0
    %791 = vmatpush1.msra.mxu0 0.0
    %792 = vmatprep.subr.mxu0 0.0
    %793 = vmatpush1.msra.mxu0 0.0
    %794 = vmatprep.subr.mxu0 0.0
    %795 = vmatpush1.msra.mxu0 0.0
    %796 = vmatprep.subr.mxu0 0.0
    %797 = vmatpush1.msra.mxu0 0.0
    %798 = vmatprep.subr.mxu0 0.0
    %799 = vmatpush1.msra.mxu0 0.0
    %800 = vmatprep.subr.mxu0 0.0
    %801 = vmatpush1.msra.mxu0 0.0
    %802 = vmatprep.subr.mxu0 0.0
    %803 = vmatpush1.msra.mxu0 0.0
    %804 = vmatprep.subr.mxu0 0.0
    %805 = vmatpush1.msra.mxu0 0.0
    %806 = vmatprep.subr.mxu0 0.0
    %807 = vmatpush1.msra.mxu0 0.0
    %808 = vmatprep.mubr.f32.mxu0 0.0
    %809 = vmatmul.mubr.f32.gmra.mrb[0].mxu0 %v730
    %v810 = vpop.f32.mrb[0].mxu0
    %v811 = vadd.f32 0.0, %v810
    %v812 = vpop.f32.mrb[0].mxu0
    %v813 = vadd.f32 0.0, %v812
    %814 = vdwg.mxu0
    %815 = vmatprep.subr.mxu0 %v742
    %816 = vmatpush1.msra.mxu0 %v739
    %817 = vmatprep.subr.mxu0 0.0
    %818 = vmatpush1.msra.mxu0 0.0
    %819 = vmatprep.subr.mxu0 0.0
    %820 = vmatpush1.msra.mxu0 0.0
    %821 = vmatprep.subr.mxu0 0.0
    %822 = vmatpush1.msra.mxu0 0.0
    %823 = vmatprep.subr.mxu0 0.0
    %824 = vmatpush1.msra.mxu0 0.0
    %825 = vmatprep.subr.mxu0 0.0
    %826 = vmatpush1.msra.mxu0 0.0
    %827 = vmatprep.subr.mxu0 0.0
    %828 = vmatpush1.msra.mxu0 0.0
    %829 = vmatprep.subr.mxu0 0.0
    %830 = vmatpush1.msra.mxu0 0.0
    %831 = vmatprep.subr.mxu0 0.0
    %832 = vmatpush1.msra.mxu0 0.0
    %833 = vmatprep.subr.mxu0 0.0
    %834 = vmatpush1.msra.mxu0 0.0
    %835 = vmatprep.subr.mxu0 0.0
    %836 = vmatpush1.msra.mxu0 0.0
    %837 = vmatprep.subr.mxu0 0.0
    %838 = vmatpush1.msra.mxu0 0.0
    %839 = vmatprep.subr.mxu0 0.0
    %840 = vmatpush1.msra.mxu0 0.0
    %841 = vmatprep.subr.mxu0 0.0
    %842 = vmatpush1.msra.mxu0 0.0
    %843 = vmatprep.subr.mxu0 0.0
    %844 = vmatpush1.msra.mxu0 0.0
    %845 = vmatprep.subr.mxu0 0.0
    %846 = vmatpush1.msra.mxu0 0.0
    %847 = vmatprep.subr.mxu0 0.0
    %848 = vmatpush1.msra.mxu0 0.0
    %849 = vmatprep.subr.mxu0 0.0
    %850 = vmatpush1.msra.mxu0 0.0
    %851 = vmatprep.subr.mxu0 0.0
    %852 = vmatpush1.msra.mxu0 0.0
    %853 = vmatprep.subr.mxu0 0.0
    %854 = vmatpush1.msra.mxu0 0.0
    %855 = vmatprep.subr.mxu0 0.0
    %856 = vmatpush1.msra.mxu0 0.0
    %857 = vmatprep.subr.mxu0 0.0
    %858 = vmatpush1.msra.mxu0 0.0
    %859 = vmatprep.subr.mxu0 0.0
    %860 = vmatpush1.msra.mxu0 0.0
    %861 = vmatprep.subr.mxu0 0.0
    %862 = vmatpush1.msra.mxu0 0.0
    %863 = vmatprep.subr.mxu0 0.0
    %864 = vmatpush1.msra.mxu0 0.0
    %865 = vmatprep.subr.mxu0 0.0
    %866 = vmatpush1.msra.mxu0 0.0
    %867 = vmatprep.subr.mxu0 0.0
    %868 = vmatpush1.msra.mxu0 0.0
    %869 = vmatprep.subr.mxu0 0.0
    %870 = vmatpush1.msra.mxu0 0.0
    %871 = vmatprep.subr.mxu0 0.0
    %872 = vmatpush1.msra.mxu0 0.0
    %873 = vmatprep.subr.mxu0 0.0
    %874 = vmatpush1.msra.mxu0 0.0
    %875 = vmatprep.subr.mxu0 0.0
    %876 = vmatpush1.msra.mxu0 0.0
    %877 = vmatprep.subr.mxu0 0.0
    %878 = vmatpush1.msra.mxu0 0.0
    %879 = vmatprep.mubr.f32.mxu0 0.0
    %880 = vmatmul.mubr.f32.gmra.mrb[0].mxu0 %v730
    %v881 = vpop.f32.mrb[0].mxu0
    %v882 = vadd.f32 0.0, %v881
    %v883 = vpop.f32.mrb[0].mxu0
    %v884 = vadd.f32 0.0, %v883
    %885 = vdwg.mxu0
    %s886 = scalar_lea.vmem %s1, 3
    %v887 = vld [vmem:[%s886] ss:$8 sm:$0xf]
    %v889 = vlaneseq
    %v890 = vshrl.u32 %v889, 7
    %v891 = vsub.s32 0, %v890
    %v892 = vrot.slane %v887, %v891
    %v893 = vlaneseq
    %v894 = vshrl.u32 %v893, 7
    %v895 = vsub.s32 1, %v894
    %v896 = vrot.slane %v887, %v895
    %v897 = vlaneseq
    %v898 = vshrl.u32 %v897, 7
    %v899 = vsub.s32 2, %v898
    %v900 = vrot.slane %v887, %v899
    %v901 = vlaneseq
    %v902 = vshrl.u32 %v901, 7
    %v903 = vsub.s32 3, %v902
    %v904 = vrot.slane %v887, %v903
    %v909 = vmul.f32 %v892, %v811
    %v910 = vmul.f32 %v896, %v813
    %v911 = vmul.f32 %v900, %v882
    %v912 = vmul.f32 %v904, %v884
    %v913 = vadd.f32 %v711, %v909
    %v914 = vadd.f32 %v712, %v910
    %v915 = vadd.f32 %v713, %v911
    %v916 = vadd.f32 %v714, %v912
    %v917 = vld [vmem:[%s4 + $0x20] sm:$0xff]
    %v919 = vsel %vm123, %v917, 0
    %v922 = vsel %vm57, %v103, 0
    %v925 = vsel %vm57, %v104, 0
    %v928 = vsel %vm57, %v105, 0
    %v931 = vsel %vm57, %v106, 0
    %933 = vmatprep.subr.mxu0 %v925
    %934 = vmatpush1.msra.mxu0 %v922
    %935 = vmatprep.subr.mxu0 0.0
    %936 = vmatpush1.msra.mxu0 0.0
    %937 = vmatprep.subr.mxu0 0.0
    %938 = vmatpush1.msra.mxu0 0.0
    %939 = vmatprep.subr.mxu0 0.0
    %940 = vmatpush1.msra.mxu0 0.0
    %941 = vmatprep.subr.mxu0 0.0
    %942 = vmatpush1.msra.mxu0 0.0
    %943 = vmatprep.subr.mxu0 0.0
    %944 = vmatpush1.msra.mxu0 0.0
    %945 = vmatprep.subr.mxu0 0.0
    %946 = vmatpush1.msra.mxu0 0.0
    %947 = vmatprep.subr.mxu0 0.0
    %948 = vmatpush1.msra.mxu0 0.0
    %949 = vmatprep.subr.mxu0 0.0
    %950 = vmatpush1.msra.mxu0 0.0
    %951 = vmatprep.subr.mxu0 0.0
    %952 = vmatpush1.msra.mxu0 0.0
    %953 = vmatprep.subr.mxu0 0.0
    %954 = vmatpush1.msra.mxu0 0.0
    %955 = vmatprep.subr.mxu0 0.0
    %956 = vmatpush1.msra.mxu0 0.0
    %957 = vmatprep.subr.mxu0 0.0
    %958 = vmatpush1.msra.mxu0 0.0
    %959 = vmatprep.subr.mxu0 0.0
    %960 = vmatpush1.msra.mxu0 0.0
    %961 = vmatprep.subr.mxu0 0.0
    %962 = vmatpush1.msra.mxu0 0.0
    %963 = vmatprep.subr.mxu0 0.0
    %964 = vmatpush1.msra.mxu0 0.0
    %965 = vmatprep.subr.mxu0 0.0
    %966 = vmatpush1.msra.mxu0 0.0
    %967 = vmatprep.subr.mxu0 0.0
    %968 = vmatpush1.msra.mxu0 0.0
    %969 = vmatprep.subr.mxu0 0.0
    %970 = vmatpush1.msra.mxu0 0.0
    %971 = vmatprep.subr.mxu0 0.0
    %972 = vmatpush1.msra.mxu0 0.0
    %973 = vmatprep.subr.mxu0 0.0
    %974 = vmatpush1.msra.mxu0 0.0
    %975 = vmatprep.subr.mxu0 0.0
    %976 = vmatpush1.msra.mxu0 0.0
    %977 = vmatprep.subr.mxu0 0.0
    %978 = vmatpush1.msra.mxu0 0.0
    %979 = vmatprep.subr.mxu0 0.0
    %980 = vmatpush1.msra.mxu0 0.0
    %981 = vmatprep.subr.mxu0 0.0
    %982 = vmatpush1.msra.mxu0 0.0
    %983 = vmatprep.subr.mxu0 0.0
    %984 = vmatpush1.msra.mxu0 0.0
    %985 = vmatprep.subr.mxu0 0.0
    %986 = vmatpush1.msra.mxu0 0.0
    %987 = vmatprep.subr.mxu0 0.0
    %988 = vmatpush1.msra.mxu0 0.0
    %989 = vmatprep.subr.mxu0 0.0
    %990 = vmatpush1.msra.mxu0 0.0
    %991 = vmatprep.subr.mxu0 0.0
    %992 = vmatpush1.msra.mxu0 0.0
    %993 = vmatprep.subr.mxu0 0.0
    %994 = vmatpush1.msra.mxu0 0.0
    %995 = vmatprep.subr.mxu0 0.0
    %996 = vmatpush1.msra.mxu0 0.0
    %997 = vmatprep.mubr.f32.mxu0 0.0
    %998 = vmatmul.mubr.f32.gmra.mrb[0].mxu0 %v919
    %v999 = vpop.f32.mrb[0].mxu0
    %v1000 = vadd.f32 0.0, %v999
    %v1001 = vpop.f32.mrb[0].mxu0
    %v1002 = vadd.f32 0.0, %v1001
    %1003 = vdwg.mxu0
    %1004 = vmatprep.subr.mxu0 %v931
    %1005 = vmatpush1.msra.mxu0 %v928
    %1006 = vmatprep.subr.mxu0 0.0
    %1007 = vmatpush1.msra.mxu0 0.0
    %1008 = vmatprep.subr.mxu0 0.0
    %1009 = vmatpush1.msra.mxu0 0.0
    %1010 = vmatprep.subr.mxu0 0.0
    %1011 = vmatpush1.msra.mxu0 0.0
    %1012 = vmatprep.subr.mxu0 0.0
    %1013 = vmatpush1.msra.mxu0 0.0
    %1014 = vmatprep.subr.mxu0 0.0
    %1015 = vmatpush1.msra.mxu0 0.0
    %1016 = vmatprep.subr.mxu0 0.0
    %1017 = vmatpush1.msra.mxu0 0.0
    %1018 = vmatprep.subr.mxu0 0.0
    %1019 = vmatpush1.msra.mxu0 0.0
    %1020 = vmatprep.subr.mxu0 0.0
    %1021 = vmatpush1.msra.mxu0 0.0
    %1022 = vmatprep.subr.mxu0 0.0
    %1023 = vmatpush1.msra.mxu0 0.0
    %1024 = vmatprep.subr.mxu0 0.0
    %1025 = vmatpush1.msra.mxu0 0.0
    %1026 = vmatprep.subr.mxu0 0.0
    %1027 = vmatpush1.msra.mxu0 0.0
    %1028 = vmatprep.subr.mxu0 0.0
    %1029 = vmatpush1.msra.mxu0 0.0
    %1030 = vmatprep.subr.mxu0 0.0
    %1031 = vmatpush1.msra.mxu0 0.0
    %1032 = vmatprep.subr.mxu0 0.0
    %1033 = vmatpush1.msra.mxu0 0.0
    %1034 = vmatprep.subr.mxu0 0.0
    %1035 = vmatpush1.msra.mxu0 0.0
    %1036 = vmatprep.subr.mxu0 0.0
    %1037 = vmatpush1.msra.mxu0 0.0
    %1038 = vmatprep.subr.mxu0 0.0
    %1039 = vmatpush1.msra.mxu0 0.0
    %1040 = vmatprep.subr.mxu0 0.0
    %1041 = vmatpush1.msra.mxu0 0.0
    %1042 = vmatprep.subr.mxu0 0.0
    %1043 = vmatpush1.msra.mxu0 0.0
    %1044 = vmatprep.subr.mxu0 0.0
    %1045 = vmatpush1.msra.mxu0 0.0
    %1046 = vmatprep.subr.mxu0 0.0
    %1047 = vmatpush1.msra.mxu0 0.0
    %1048 = vmatprep.subr.mxu0 0.0
    %1049 = vmatpush1.msra.mxu0 0.0
    %1050 = vmatprep.subr.mxu0 0.0
    %1051 = vmatpush1.msra.mxu0 0.0
    %1052 = vmatprep.subr.mxu0 0.0
    %1053 = vmatpush1.msra.mxu0 0.0
    %1054 = vmatprep.subr.mxu0 0.0
    %1055 = vmatpush1.msra.mxu0 0.0
    %1056 = vmatprep.subr.mxu0 0.0
    %1057 = vmatpush1.msra.mxu0 0.0
    %1058 = vmatprep.subr.mxu0 0.0
    %1059 = vmatpush1.msra.mxu0 0.0
    %1060 = vmatprep.subr.mxu0 0.0
    %1061 = vmatpush1.msra.mxu0 0.0
    %1062 = vmatprep.subr.mxu0 0.0
    %1063 = vmatpush1.msra.mxu0 0.0
    %1064 = vmatprep.subr.mxu0 0.0
    %1065 = vmatpush1.msra.mxu0 0.0
    %1066 = vmatprep.subr.mxu0 0.0
    %1067 = vmatpush1.msra.mxu0 0.0
    %1068 = vmatprep.mubr.f32.mxu0 0.0
    %1069 = vmatmul.mubr.f32.gmra.mrb[0].mxu0 %v919
    %v1070 = vpop.f32.mrb[0].mxu0
    %v1071 = vadd.f32 0.0, %v1070
    %v1072 = vpop.f32.mrb[0].mxu0
    %v1073 = vadd.f32 0.0, %v1072
    %1074 = vdwg.mxu0
    %v1075 = vadd.f32 %v913, %v1000
    %v1076 = vadd.f32 %v914, %v1002
    %v1077 = vadd.f32 %v915, %v1071
    %v1078 = vadd.f32 %v916, %v1073
    %1079 = vrot.lane.b32.xlu0 %v103, 127
    %v1080 = vpop.permute.xlu0 %1079
    %1081 = vrot.lane.b32.xlu0 %v104, 127
    %v1082 = vpop.permute.xlu0 %1081
    %1083 = vrot.lane.b32.xlu0 %v105, 127
    %v1084 = vpop.permute.xlu0 %1083
    %1085 = vrot.lane.b32.xlu0 %v106, 127
    %v1086 = vpop.permute.xlu0 %1085
    %vm1087 = vcmp.lt.s32.totalorder %v116, 127
    %v1088 = vsel %vm1087, %v1084, %v1086
    %v1089 = vsel %vm1087, %v1082, %v1084
    %v1090 = vsel %vm1087, %v1080, %v1082
    %v1091 = vsel %vm1087, %v1086, %v1080
    %v1092 = vld [vmem:[%s4 + $0x28] sm:$0xff]
    %v1094 = vsel %vm123, %v1092, 0
    %v1097 = vsel %vm57, %v1090, 0
    %v1100 = vsel %vm57, %v1089, 0
    %v1103 = vsel %vm57, %v1088, 0
    %v1106 = vsel %vm57, %v1091, 0
    %1108 = vmatprep.subr.mxu0 %v1100
    %1109 = vmatpush1.msra.mxu0 %v1097
    %1110 = vmatprep.subr.mxu0 0.0
    %1111 = vmatpush1.msra.mxu0 0.0
    %1112 = vmatprep.subr.mxu0 0.0
    %1113 = vmatpush1.msra.mxu0 0.0
    %1114 = vmatprep.subr.mxu0 0.0
    %1115 = vmatpush1.msra.mxu0 0.0
    %1116 = vmatprep.subr.mxu0 0.0
    %1117 = vmatpush1.msra.mxu0 0.0
    %1118 = vmatprep.subr.mxu0 0.0
    %1119 = vmatpush1.msra.mxu0 0.0
    %1120 = vmatprep.subr.mxu0 0.0
    %1121 = vmatpush1.msra.mxu0 0.0
    %1122 = vmatprep.subr.mxu0 0.0
    %1123 = vmatpush1.msra.mxu0 0.0
    %1124 = vmatprep.subr.mxu0 0.0
    %1125 = vmatpush1.msra.mxu0 0.0
    %1126 = vmatprep.subr.mxu0 0.0
    %1127 = vmatpush1.msra.mxu0 0.0
    %1128 = vmatprep.subr.mxu0 0.0
    %1129 = vmatpush1.msra.mxu0 0.0
    %1130 = vmatprep.subr.mxu0 0.0
    %1131 = vmatpush1.msra.mxu0 0.0
    %1132 = vmatprep.subr.mxu0 0.0
    %1133 = vmatpush1.msra.mxu0 0.0
    %1134 = vmatprep.subr.mxu0 0.0
    %1135 = vmatpush1.msra.mxu0 0.0
    %1136 = vmatprep.subr.mxu0 0.0
    %1137 = vmatpush1.msra.mxu0 0.0
    %1138 = vmatprep.subr.mxu0 0.0
    %1139 = vmatpush1.msra.mxu0 0.0
    %1140 = vmatprep.subr.mxu0 0.0
    %1141 = vmatpush1.msra.mxu0 0.0
    %1142 = vmatprep.subr.mxu0 0.0
    %1143 = vmatpush1.msra.mxu0 0.0
    %1144 = vmatprep.subr.mxu0 0.0
    %1145 = vmatpush1.msra.mxu0 0.0
    %1146 = vmatprep.subr.mxu0 0.0
    %1147 = vmatpush1.msra.mxu0 0.0
    %1148 = vmatprep.subr.mxu0 0.0
    %1149 = vmatpush1.msra.mxu0 0.0
    %1150 = vmatprep.subr.mxu0 0.0
    %1151 = vmatpush1.msra.mxu0 0.0
    %1152 = vmatprep.subr.mxu0 0.0
    %1153 = vmatpush1.msra.mxu0 0.0
    %1154 = vmatprep.subr.mxu0 0.0
    %1155 = vmatpush1.msra.mxu0 0.0
    %1156 = vmatprep.subr.mxu0 0.0
    %1157 = vmatpush1.msra.mxu0 0.0
    %1158 = vmatprep.subr.mxu0 0.0
    %1159 = vmatpush1.msra.mxu0 0.0
    %1160 = vmatprep.subr.mxu0 0.0
    %1161 = vmatpush1.msra.mxu0 0.0
    %1162 = vmatprep.subr.mxu0 0.0
    %1163 = vmatpush1.msra.mxu0 0.0
    %1164 = vmatprep.subr.mxu0 0.0
    %1165 = vmatpush1.msra.mxu0 0.0
    %1166 = vmatprep.subr.mxu0 0.0
    %1167 = vmatpush1.msra.mxu0 0.0
    %1168 = vmatprep.subr.mxu0 0.0
    %1169 = vmatpush1.msra.mxu0 0.0
    %1170 = vmatprep.subr.mxu0 0.0
    %1171 = vmatpush1.msra.mxu0 0.0
    %1172 = vmatprep.mubr.f32.mxu0 0.0
    %1173 = vmatmul.mubr.f32.gmra.mrb[0].mxu0 %v1094
    %v1174 = vpop.f32.mrb[0].mxu0
    %v1175 = vadd.f32 0.0, %v1174
    %v1176 = vpop.f32.mrb[0].mxu0
    %v1177 = vadd.f32 0.0, %v1176
    %1178 = vdwg.mxu0
    %1179 = vmatprep.subr.mxu0 %v1106
    %1180 = vmatpush1.msra.mxu0 %v1103
    %1181 = vmatprep.subr.mxu0 0.0
    %1182 = vmatpush1.msra.mxu0 0.0
    %1183 = vmatprep.subr.mxu0 0.0
    %1184 = vmatpush1.msra.mxu0 0.0
    %1185 = vmatprep.subr.mxu0 0.0
    %1186 = vmatpush1.msra.mxu0 0.0
    %1187 = vmatprep.subr.mxu0 0.0
    %1188 = vmatpush1.msra.mxu0 0.0
    %1189 = vmatprep.subr.mxu0 0.0
    %1190 = vmatpush1.msra.mxu0 0.0
    %1191 = vmatprep.subr.mxu0 0.0
    %1192 = vmatpush1.msra.mxu0 0.0
    %1193 = vmatprep.subr.mxu0 0.0
    %1194 = vmatpush1.msra.mxu0 0.0
    %1195 = vmatprep.subr.mxu0 0.0
    %1196 = vmatpush1.msra.mxu0 0.0
    %1197 = vmatprep.subr.mxu0 0.0
    %1198 = vmatpush1.msra.mxu0 0.0
    %1199 = vmatprep.subr.mxu0 0.0
    %1200 = vmatpush1.msra.mxu0 0.0
    %1201 = vmatprep.subr.mxu0 0.0
    %1202 = vmatpush1.msra.mxu0 0.0
    %1203 = vmatprep.subr.mxu0 0.0
    %1204 = vmatpush1.msra.mxu0 0.0
    %1205 = vmatprep.subr.mxu0 0.0
    %1206 = vmatpush1.msra.mxu0 0.0
    %1207 = vmatprep.subr.mxu0 0.0
    %1208 = vmatpush1.msra.mxu0 0.0
    %1209 = vmatprep.subr.mxu0 0.0
    %1210 = vmatpush1.msra.mxu0 0.0
    %1211 = vmatprep.subr.mxu0 0.0
    %1212 = vmatpush1.msra.mxu0 0.0
    %1213 = vmatprep.subr.mxu0 0.0
    %1214 = vmatpush1.msra.mxu0 0.0
    %1215 = vmatprep.subr.mxu0 0.0
    %1216 = vmatpush1.msra.mxu0 0.0
    %1217 = vmatprep.subr.mxu0 0.0
    %1218 = vmatpush1.msra.mxu0 0.0
    %1219 = vmatprep.subr.mxu0 0.0
    %1220 = vmatpush1.msra.mxu0 0.0
    %1221 = vmatprep.subr.mxu0 0.0
    %1222 = vmatpush1.msra.mxu0 0.0
    %1223 = vmatprep.subr.mxu0 0.0
    %1224 = vmatpush1.msra.mxu0 0.0
    %1225 = vmatprep.subr.mxu0 0.0
    %1226 = vmatpush1.msra.mxu0 0.0
    %1227 = vmatprep.subr.mxu0 0.0
    %1228 = vmatpush1.msra.mxu0 0.0
    %1229 = vmatprep.subr.mxu0 0.0
    %1230 = vmatpush1.msra.mxu0 0.0
    %1231 = vmatprep.subr.mxu0 0.0
    %1232 = vmatpush1.msra.mxu0 0.0
    %1233 = vmatprep.subr.mxu0 0.0
    %1234 = vmatpush1.msra.mxu0 0.0
    %1235 = vmatprep.subr.mxu0 0.0
    %1236 = vmatpush1.msra.mxu0 0.0
    %1237 = vmatprep.subr.mxu0 0.0
    %1238 = vmatpush1.msra.mxu0 0.0
    %1239 = vmatprep.subr.mxu0 0.0
    %1240 = vmatpush1.msra.mxu0 0.0
    %1241 = vmatprep.subr.mxu0 0.0
    %1242 = vmatpush1.msra.mxu0 0.0
    %1243 = vmatprep.mubr.f32.mxu0 0.0
    %1244 = vmatmul.mubr.f32.gmra.mrb[0].mxu0 %v1094
    %v1245 = vpop.f32.mrb[0].mxu0
    %v1246 = vadd.f32 0.0, %v1245
    %v1247 = vpop.f32.mrb[0].mxu0
    %v1248 = vadd.f32 0.0, %v1247
    %1249 = vdwg.mxu0
    %s1250 = scalar_lea.vmem %s1, 5
    %v1251 = vld [vmem:[%s1250] ss:$8 sm:$0xf]
    %v1253 = vlaneseq
    %v1254 = vshrl.u32 %v1253, 7
    %v1255 = vsub.s32 0, %v1254
    %v1256 = vrot.slane %v1251, %v1255
    %v1257 = vlaneseq
    %v1258 = vshrl.u32 %v1257, 7
    %v1259 = vsub.s32 1, %v1258
    %v1260 = vrot.slane %v1251, %v1259
    %v1261 = vlaneseq
    %v1262 = vshrl.u32 %v1261, 7
    %v1263 = vsub.s32 2, %v1262
    %v1264 = vrot.slane %v1251, %v1263
    %v1265 = vlaneseq
    %v1266 = vshrl.u32 %v1265, 7
    %v1267 = vsub.s32 3, %v1266
    %v1268 = vrot.slane %v1251, %v1267
    %v1273 = vmul.f32 %v1256, %v1175
    %v1274 = vmul.f32 %v1260, %v1177
    %v1275 = vmul.f32 %v1264, %v1246
    %v1276 = vmul.f32 %v1268, %v1248
    %v1277 = vadd.f32 %v1075, %v1273
    %v1278 = vadd.f32 %v1076, %v1274
    %v1279 = vadd.f32 %v1077, %v1275
    %v1280 = vadd.f32 %v1078, %v1276
    %1281 = vrot.lane.b32.xlu0 %v103, 113
    %v1282 = vpop.permute.xlu0 %1281
    %1283 = vrot.lane.b32.xlu0 %v104, 113
    %v1284 = vpop.permute.xlu0 %1283
    %1285 = vrot.lane.b32.xlu0 %v105, 113
    %v1286 = vpop.permute.xlu0 %1285
    %1287 = vrot.lane.b32.xlu0 %v106, 113
    %v1288 = vpop.permute.xlu0 %1287
    %vm1289 = vcmp.lt.s32.totalorder %v116, 113
    %v1290 = vsel %vm1289, %v1286, %v1288
    %v1291 = vsel %vm1289, %v1284, %v1286
    %v1292 = vsel %vm1289, %v1282, %v1284
    %v1293 = vsel %vm1289, %v1288, %v1282
    %v1294 = vld [vmem:[%s4 + $0x30] sm:$0xff]
    %v1296 = vsel %vm123, %v1294, 0
    %v1299 = vsel %vm57, %v1292, 0
    %v1302 = vsel %vm57, %v1291, 0
    %v1305 = vsel %vm57, %v1290, 0
    %v1308 = vsel %vm57, %v1293, 0
    %1310 = vmatprep.subr.mxu0 %v1302
    %1311 = vmatpush1.msra.mxu0 %v1299
    %1312 = vmatprep.subr.mxu0 0.0
    %1313 = vmatpush1.msra.mxu0 0.0
    %1314 = vmatprep.subr.mxu0 0.0
    %1315 = vmatpush1.msra.mxu0 0.0
    %1316 = vmatprep.subr.mxu0 0.0
    %1317 = vmatpush1.msra.mxu0 0.0
    %1318 = vmatprep.subr.mxu0 0.0
    %1319 = vmatpush1.msra.mxu0 0.0
    %1320 = vmatprep.subr.mxu0 0.0
    %1321 = vmatpush1.msra.mxu0 0.0
    %1322 = vmatprep.subr.mxu0 0.0
    %1323 = vmatpush1.msra.mxu0 0.0
    %1324 = vmatprep.subr.mxu0 0.0
    %1325 = vmatpush1.msra.mxu0 0.0
    %1326 = vmatprep.subr.mxu0 0.0
    %1327 = vmatpush1.msra.mxu0 0.0
    %1328 = vmatprep.subr.mxu0 0.0
    %1329 = vmatpush1.msra.mxu0 0.0
    %1330 = vmatprep.subr.mxu0 0.0
    %1331 = vmatpush1.msra.mxu0 0.0
    %1332 = vmatprep.subr.mxu0 0.0
    %1333 = vmatpush1.msra.mxu0 0.0
    %1334 = vmatprep.subr.mxu0 0.0
    %1335 = vmatpush1.msra.mxu0 0.0
    %1336 = vmatprep.subr.mxu0 0.0
    %1337 = vmatpush1.msra.mxu0 0.0
    %1338 = vmatprep.subr.mxu0 0.0
    %1339 = vmatpush1.msra.mxu0 0.0
    %1340 = vmatprep.subr.mxu0 0.0
    %1341 = vmatpush1.msra.mxu0 0.0
    %1342 = vmatprep.subr.mxu0 0.0
    %1343 = vmatpush1.msra.mxu0 0.0
    %1344 = vmatprep.subr.mxu0 0.0
    %1345 = vmatpush1.msra.mxu0 0.0
    %1346 = vmatprep.subr.mxu0 0.0
    %1347 = vmatpush1.msra.mxu0 0.0
    %1348 = vmatprep.subr.mxu0 0.0
    %1349 = vmatpush1.msra.mxu0 0.0
    %1350 = vmatprep.subr.mxu0 0.0
    %1351 = vmatpush1.msra.mxu0 0.0
    %1352 = vmatprep.subr.mxu0 0.0
    %1353 = vmatpush1.msra.mxu0 0.0
    %1354 = vmatprep.subr.mxu0 0.0
    %1355 = vmatpush1.msra.mxu0 0.0
    %1356 = vmatprep.subr.mxu0 0.0
    %1357 = vmatpush1.msra.mxu0 0.0
    %1358 = vmatprep.subr.mxu0 0.0
    %1359 = vmatpush1.msra.mxu0 0.0
    %1360 = vmatprep.subr.mxu0 0.0
    %1361 = vmatpush1.msra.mxu0 0.0
    %1362 = vmatprep.subr.mxu0 0.0
    %1363 = vmatpush1.msra.mxu0 0.0
    %1364 = vmatprep.subr.mxu0 0.0
    %1365 = vmatpush1.msra.mxu0 0.0
    %1366 = vmatprep.subr.mxu0 0.0
    %1367 = vmatpush1.msra.mxu0 0.0
    %1368 = vmatprep.subr.mxu0 0.0
    %1369 = vmatpush1.msra.mxu0 0.0
    %1370 = vmatprep.subr.mxu0 0.0
    %1371 = vmatpush1.msra.mxu0 0.0
    %1372 = vmatprep.subr.mxu0 0.0
    %1373 = vmatpush1.msra.mxu0 0.0
    %1374 = vmatprep.mubr.f32.mxu0 0.0
    %1375 = vmatmul.mubr.f32.gmra.mrb[0].mxu0 %v1296
    %v1376 = vpop.f32.mrb[0].mxu0
    %v1377 = vadd.f32 0.0, %v1376
    %v1378 = vpop.f32.mrb[0].mxu0
    %v1379 = vadd.f32 0.0, %v1378
    %1380 = vdwg.mxu0
    %1381 = vmatprep.subr.mxu0 %v1308
    %1382 = vmatpush1.msra.mxu0 %v1305
    %1383 = vmatprep.subr.mxu0 0.0
    %1384 = vmatpush1.msra.mxu0 0.0
    %1385 = vmatprep.subr.mxu0 0.0
    %1386 = vmatpush1.msra.mxu0 0.0
    %1387 = vmatprep.subr.mxu0 0.0
    %1388 = vmatpush1.msra.mxu0 0.0
    %1389 = vmatprep.subr.mxu0 0.0
    %1390 = vmatpush1.msra.mxu0 0.0
    %1391 = vmatprep.subr.mxu0 0.0
    %1392 = vmatpush1.msra.mxu0 0.0
    %1393 = vmatprep.subr.mxu0 0.0
    %1394 = vmatpush1.msra.mxu0 0.0
    %1395 = vmatprep.subr.mxu0 0.0
    %1396 = vmatpush1.msra.mxu0 0.0
    %1397 = vmatprep.subr.mxu0 0.0
    %1398 = vmatpush1.msra.mxu0 0.0
    %1399 = vmatprep.subr.mxu0 0.0
    %1400 = vmatpush1.msra.mxu0 0.0
    %1401 = vmatprep.subr.mxu0 0.0
    %1402 = vmatpush1.msra.mxu0 0.0
    %1403 = vmatprep.subr.mxu0 0.0
    %1404 = vmatpush1.msra.mxu0 0.0
    %1405 = vmatprep.subr.mxu0 0.0
    %1406 = vmatpush1.msra.mxu0 0.0
    %1407 = vmatprep.subr.mxu0 0.0
    %1408 = vmatpush1.msra.mxu0 0.0
    %1409 = vmatprep.subr.mxu0 0.0
    %1410 = vmatpush1.msra.mxu0 0.0
    %1411 = vmatprep.subr.mxu0 0.0
    %1412 = vmatpush1.msra.mxu0 0.0
    %1413 = vmatprep.subr.mxu0 0.0
    %1414 = vmatpush1.msra.mxu0 0.0
    %1415 = vmatprep.subr.mxu0 0.0
    %1416 = vmatpush1.msra.mxu0 0.0
    %1417 = vmatprep.subr.mxu0 0.0
    %1418 = vmatpush1.msra.mxu0 0.0
    %1419 = vmatprep.subr.mxu0 0.0
    %1420 = vmatpush1.msra.mxu0 0.0
    %1421 = vmatprep.subr.mxu0 0.0
    %1422 = vmatpush1.msra.mxu0 0.0
    %1423 = vmatprep.subr.mxu0 0.0
    %1424 = vmatpush1.msra.mxu0 0.0
    %1425 = vmatprep.subr.mxu0 0.0
    %1426 = vmatpush1.msra.mxu0 0.0
    %1427 = vmatprep.subr.mxu0 0.0
    %1428 = vmatpush1.msra.mxu0 0.0
    %1429 = vmatprep.subr.mxu0 0.0
    %1430 = vmatpush1.msra.mxu0 0.0
    %1431 = vmatprep.subr.mxu0 0.0
    %1432 = vmatpush1.msra.mxu0 0.0
    %1433 = vmatprep.subr.mxu0 0.0
    %1434 = vmatpush1.msra.mxu0 0.0
    %1435 = vmatprep.subr.mxu0 0.0
    %1436 = vmatpush1.msra.mxu0 0.0
    %1437 = vmatprep.subr.mxu0 0.0
    %1438 = vmatpush1.msra.mxu0 0.0
    %1439 = vmatprep.subr.mxu0 0.0
    %1440 = vmatpush1.msra.mxu0 0.0
    %1441 = vmatprep.subr.mxu0 0.0
    %1442 = vmatpush1.msra.mxu0 0.0
    %1443 = vmatprep.subr.mxu0 0.0
    %1444 = vmatpush1.msra.mxu0 0.0
    %1445 = vmatprep.mubr.f32.mxu0 0.0
    %1446 = vmatmul.mubr.f32.gmra.mrb[0].mxu0 %v1296
    %v1447 = vpop.f32.mrb[0].mxu0
    %v1448 = vadd.f32 0.0, %v1447
    %v1449 = vpop.f32.mrb[0].mxu0
    %v1450 = vadd.f32 0.0, %v1449
    %1451 = vdwg.mxu0
    %s1452 = scalar_lea.vmem %s1, 6
    %v1453 = vld [vmem:[%s1452] ss:$8 sm:$0xf]
    %v1455 = vlaneseq
    %v1456 = vshrl.u32 %v1455, 7
    %v1457 = vsub.s32 0, %v1456
    %v1458 = vrot.slane %v1453, %v1457
    %v1459 = vlaneseq
    %v1460 = vshrl.u32 %v1459, 7
    %v1461 = vsub.s32 1, %v1460
    %v1462 = vrot.slane %v1453, %v1461
    %v1463 = vlaneseq
    %v1464 = vshrl.u32 %v1463, 7
    %v1465 = vsub.s32 2, %v1464
    %v1466 = vrot.slane %v1453, %v1465
    %v1467 = vlaneseq
    %v1468 = vshrl.u32 %v1467, 7
    %v1469 = vsub.s32 3, %v1468
    %v1470 = vrot.slane %v1453, %v1469
    %v1475 = vmul.f32 %v1458, %v1377
    %v1476 = vmul.f32 %v1462, %v1379
    %v1477 = vmul.f32 %v1466, %v1448
    %v1478 = vmul.f32 %v1470, %v1450
    %v1479 = vadd.f32 %v1277, %v1475
    %v1480 = vadd.f32 %v1278, %v1476
    %v1481 = vadd.f32 %v1279, %v1477
    %v1482 = vadd.f32 %v1280, %v1478
    %1483 = vrot.lane.b32.xlu0 %v103, 112
    %v1484 = vpop.permute.xlu0 %1483
    %1485 = vrot.lane.b32.xlu0 %v104, 112
    %v1486 = vpop.permute.xlu0 %1485
    %1487 = vrot.lane.b32.xlu0 %v105, 112
    %v1488 = vpop.permute.xlu0 %1487
    %1489 = vrot.lane.b32.xlu0 %v106, 112
    %v1490 = vpop.permute.xlu0 %1489
    %vm1491 = vcmp.lt.s32.totalorder %v116, 112
    %v1492 = vsel %vm1491, %v1488, %v1490
    %v1493 = vsel %vm1491, %v1486, %v1488
    %v1494 = vsel %vm1491, %v1484, %v1486
    %v1495 = vsel %vm1491, %v1490, %v1484
    %v1496 = vld [vmem:[%s4 + $0x38] sm:$0xff]
    %v1498 = vsel %vm123, %v1496, 0
    %v1501 = vsel %vm57, %v1494, 0
    %v1504 = vsel %vm57, %v1493, 0
    %v1507 = vsel %vm57, %v1492, 0
    %v1510 = vsel %vm57, %v1495, 0
    %1512 = vmatprep.subr.mxu0 %v1504
    %1513 = vmatpush1.msra.mxu0 %v1501
    %1514 = vmatprep.subr.mxu0 0.0
    %1515 = vmatpush1.msra.mxu0 0.0
    %1516 = vmatprep.subr.mxu0 0.0
    %1517 = vmatpush1.msra.mxu0 0.0
    %1518 = vmatprep.subr.mxu0 0.0
    %1519 = vmatpush1.msra.mxu0 0.0
    %1520 = vmatprep.subr.mxu0 0.0
    %1521 = vmatpush1.msra.mxu0 0.0
    %1522 = vmatprep.subr.mxu0 0.0
    %1523 = vmatpush1.msra.mxu0 0.0
    %1524 = vmatprep.subr.mxu0 0.0
    %1525 = vmatpush1.msra.mxu0 0.0
    %1526 = vmatprep.subr.mxu0 0.0
    %1527 = vmatpush1.msra.mxu0 0.0
    %1528 = vmatprep.subr.mxu0 0.0
    %1529 = vmatpush1.msra.mxu0 0.0
    %1530 = vmatprep.subr.mxu0 0.0
    %1531 = vmatpush1.msra.mxu0 0.0
    %1532 = vmatprep.subr.mxu0 0.0
    %1533 = vmatpush1.msra.mxu0 0.0
    %1534 = vmatprep.subr.mxu0 0.0
    %1535 = vmatpush1.msra.mxu0 0.0
    %1536 = vmatprep.subr.mxu0 0.0
    %1537 = vmatpush1.msra.mxu0 0.0
    %1538 = vmatprep.subr.mxu0 0.0
    %1539 = vmatpush1.msra.mxu0 0.0
    %1540 = vmatprep.subr.mxu0 0.0
    %1541 = vmatpush1.msra.mxu0 0.0
    %1542 = vmatprep.subr.mxu0 0.0
    %1543 = vmatpush1.msra.mxu0 0.0
    %1544 = vmatprep.subr.mxu0 0.0
    %1545 = vmatpush1.msra.mxu0 0.0
    %1546 = vmatprep.subr.mxu0 0.0
    %1547 = vmatpush1.msra.mxu0 0.0
    %1548 = vmatprep.subr.mxu0 0.0
    %1549 = vmatpush1.msra.mxu0 0.0
    %1550 = vmatprep.subr.mxu0 0.0
    %1551 = vmatpush1.msra.mxu0 0.0
    %1552 = vmatprep.subr.mxu0 0.0
    %1553 = vmatpush1.msra.mxu0 0.0
    %1554 = vmatprep.subr.mxu0 0.0
    %1555 = vmatpush1.msra.mxu0 0.0
    %1556 = vmatprep.subr.mxu0 0.0
    %1557 = vmatpush1.msra.mxu0 0.0
    %1558 = vmatprep.subr.mxu0 0.0
    %1559 = vmatpush1.msra.mxu0 0.0
    %1560 = vmatprep.subr.mxu0 0.0
    %1561 = vmatpush1.msra.mxu0 0.0
    %1562 = vmatprep.subr.mxu0 0.0
    %1563 = vmatpush1.msra.mxu0 0.0
    %1564 = vmatprep.subr.mxu0 0.0
    %1565 = vmatpush1.msra.mxu0 0.0
    %1566 = vmatprep.subr.mxu0 0.0
    %1567 = vmatpush1.msra.mxu0 0.0
    %1568 = vmatprep.subr.mxu0 0.0
    %1569 = vmatpush1.msra.mxu0 0.0
    %1570 = vmatprep.subr.mxu0 0.0
    %1571 = vmatpush1.msra.mxu0 0.0
    %1572 = vmatprep.subr.mxu0 0.0
    %1573 = vmatpush1.msra.mxu0 0.0
    %1574 = vmatprep.subr.mxu0 0.0
    %1575 = vmatpush1.msra.mxu0 0.0
    %1576 = vmatprep.mubr.f32.mxu0 0.0
    %1577 = vmatmul.mubr.f32.gmra.mrb[0].mxu0 %v1498
    %v1578 = vpop.f32.mrb[0].mxu0
    %v1579 = vadd.f32 0.0, %v1578
    %v1580 = vpop.f32.mrb[0].mxu0
    %v1581 = vadd.f32 0.0, %v1580
    %1582 = vdwg.mxu0
    %1583 = vmatprep.subr.mxu0 %v1510
    %1584 = vmatpush1.msra.mxu0 %v1507
    %1585 = vmatprep.subr.mxu0 0.0
    %1586 = vmatpush1.msra.mxu0 0.0
    %1587 = vmatprep.subr.mxu0 0.0
    %1588 = vmatpush1.msra.mxu0 0.0
    %1589 = vmatprep.subr.mxu0 0.0
    %1590 = vmatpush1.msra.mxu0 0.0
    %1591 = vmatprep.subr.mxu0 0.0
    %1592 = vmatpush1.msra.mxu0 0.0
    %1593 = vmatprep.subr.mxu0 0.0
    %1594 = vmatpush1.msra.mxu0 0.0
    %1595 = vmatprep.subr.mxu0 0.0
    %1596 = vmatpush1.msra.mxu0 0.0
    %1597 = vmatprep.subr.mxu0 0.0
    %1598 = vmatpush1.msra.mxu0 0.0
    %1599 = vmatprep.subr.mxu0 0.0
    %1600 = vmatpush1.msra.mxu0 0.0
    %1601 = vmatprep.subr.mxu0 0.0
    %1602 = vmatpush1.msra.mxu0 0.0
    %1603 = vmatprep.subr.mxu0 0.0
    %1604 = vmatpush1.msra.mxu0 0.0
    %1605 = vmatprep.subr.mxu0 0.0
    %1606 = vmatpush1.msra.mxu0 0.0
    %1607 = vmatprep.subr.mxu0 0.0
    %1608 = vmatpush1.msra.mxu0 0.0
    %1609 = vmatprep.subr.mxu0 0.0
    %1610 = vmatpush1.msra.mxu0 0.0
    %1611 = vmatprep.subr.mxu0 0.0
    %1612 = vmatpush1.msra.mxu0 0.0
    %1613 = vmatprep.subr.mxu0 0.0
    %1614 = vmatpush1.msra.mxu0 0.0
    %1615 = vmatprep.subr.mxu0 0.0
    %1616 = vmatpush1.msra.mxu0 0.0
    %1617 = vmatprep.subr.mxu0 0.0
    %1618 = vmatpush1.msra.mxu0 0.0
    %1619 = vmatprep.subr.mxu0 0.0
    %1620 = vmatpush1.msra.mxu0 0.0
    %1621 = vmatprep.subr.mxu0 0.0
    %1622 = vmatpush1.msra.mxu0 0.0
    %1623 = vmatprep.subr.mxu0 0.0
    %1624 = vmatpush1.msra.mxu0 0.0
    %1625 = vmatprep.subr.mxu0 0.0
    %1626 = vmatpush1.msra.mxu0 0.0
    %1627 = vmatprep.subr.mxu0 0.0
    %1628 = vmatpush1.msra.mxu0 0.0
    %1629 = vmatprep.subr.mxu0 0.0
    %1630 = vmatpush1.msra.mxu0 0.0
    %1631 = vmatprep.subr.mxu0 0.0
    %1632 = vmatpush1.msra.mxu0 0.0
    %1633 = vmatprep.subr.mxu0 0.0
    %1634 = vmatpush1.msra.mxu0 0.0
    %1635 = vmatprep.subr.mxu0 0.0
    %1636 = vmatpush1.msra.mxu0 0.0
    %1637 = vmatprep.subr.mxu0 0.0
    %1638 = vmatpush1.msra.mxu0 0.0
    %1639 = vmatprep.subr.mxu0 0.0
    %1640 = vmatpush1.msra.mxu0 0.0
    %1641 = vmatprep.subr.mxu0 0.0
    %1642 = vmatpush1.msra.mxu0 0.0
    %1643 = vmatprep.subr.mxu0 0.0
    %1644 = vmatpush1.msra.mxu0 0.0
    %1645 = vmatprep.subr.mxu0 0.0
    %1646 = vmatpush1.msra.mxu0 0.0
    %1647 = vmatprep.mubr.f32.mxu0 0.0
    %1648 = vmatmul.mubr.f32.gmra.mrb[0].mxu0 %v1498
    %v1649 = vpop.f32.mrb[0].mxu0
    %v1650 = vadd.f32 0.0, %v1649
    %v1651 = vpop.f32.mrb[0].mxu0
    %v1652 = vadd.f32 0.0, %v1651
    %1653 = vdwg.mxu0
    %s1654 = scalar_lea.vmem %s1, 7
    %v1655 = vld [vmem:[%s1654] ss:$8 sm:$0xf]
    %v1657 = vlaneseq
    %v1658 = vshrl.u32 %v1657, 7
    %v1659 = vsub.s32 0, %v1658
    %v1660 = vrot.slane %v1655, %v1659
    %v1661 = vlaneseq
    %v1662 = vshrl.u32 %v1661, 7
    %v1663 = vsub.s32 1, %v1662
    %v1664 = vrot.slane %v1655, %v1663
    %v1665 = vlaneseq
    %v1666 = vshrl.u32 %v1665, 7
    %v1667 = vsub.s32 2, %v1666
    %v1668 = vrot.slane %v1655, %v1667
    %v1669 = vlaneseq
    %v1670 = vshrl.u32 %v1669, 7
    %v1671 = vsub.s32 3, %v1670
    %v1672 = vrot.slane %v1655, %v1671
    %v1677 = vmul.f32 %v1660, %v1579
    %v1678 = vmul.f32 %v1664, %v1581
    %v1679 = vmul.f32 %v1668, %v1650
    %v1680 = vmul.f32 %v1672, %v1652
    %v1681 = vadd.f32 %v1479, %v1677
    %v1682 = vadd.f32 %v1480, %v1678
    %v1683 = vadd.f32 %v1481, %v1679
    %v1684 = vadd.f32 %v1482, %v1680
    %1685 = vrot.lane.b32.xlu0 %v103, 111
    %v1686 = vpop.permute.xlu0 %1685
    %1687 = vrot.lane.b32.xlu0 %v104, 111
    %v1688 = vpop.permute.xlu0 %1687
    %1689 = vrot.lane.b32.xlu0 %v105, 111
    %v1690 = vpop.permute.xlu0 %1689
    %1691 = vrot.lane.b32.xlu0 %v106, 111
    %v1692 = vpop.permute.xlu0 %1691
    %vm1693 = vcmp.lt.s32.totalorder %v116, 111
    %v1694 = vsel %vm1693, %v1690, %v1692
    %v1695 = vsel %vm1693, %v1688, %v1690
    %v1696 = vsel %vm1693, %v1686, %v1688
    %v1697 = vsel %vm1693, %v1692, %v1686
    %v1698 = vld [vmem:[%s4 + $0x40] sm:$0xff]
    %v1700 = vsel %vm123, %v1698, 0
    %v1703 = vsel %vm57, %v1696, 0
    %v1706 = vsel %vm57, %v1695, 0
    %v1709 = vsel %vm57, %v1694, 0
    %v1712 = vsel %vm57, %v1697, 0
    %1714 = vmatprep.subr.mxu0 %v1706
    %1715 = vmatpush1.msra.mxu0 %v1703
    %1716 = vmatprep.subr.mxu0 0.0
    %1717 = vmatpush1.msra.mxu0 0.0
    %1718 = vmatprep.subr.mxu0 0.0
    %1719 = vmatpush1.msra.mxu0 0.0
    %1720 = vmatprep.subr.mxu0 0.0
    %1721 = vmatpush1.msra.mxu0 0.0
    %1722 = vmatprep.subr.mxu0 0.0
    %1723 = vmatpush1.msra.mxu0 0.0
    %1724 = vmatprep.subr.mxu0 0.0
    %1725 = vmatpush1.msra.mxu0 0.0
    %1726 = vmatprep.subr.mxu0 0.0
    %1727 = vmatpush1.msra.mxu0 0.0
    %1728 = vmatprep.subr.mxu0 0.0
    %1729 = vmatpush1.msra.mxu0 0.0
    %1730 = vmatprep.subr.mxu0 0.0
    %1731 = vmatpush1.msra.mxu0 0.0
    %1732 = vmatprep.subr.mxu0 0.0
    %1733 = vmatpush1.msra.mxu0 0.0
    %1734 = vmatprep.subr.mxu0 0.0
    %1735 = vmatpush1.msra.mxu0 0.0
    %1736 = vmatprep.subr.mxu0 0.0
    %1737 = vmatpush1.msra.mxu0 0.0
    %1738 = vmatprep.subr.mxu0 0.0
    %1739 = vmatpush1.msra.mxu0 0.0
    %1740 = vmatprep.subr.mxu0 0.0
    %1741 = vmatpush1.msra.mxu0 0.0
    %1742 = vmatprep.subr.mxu0 0.0
    %1743 = vmatpush1.msra.mxu0 0.0
    %1744 = vmatprep.subr.mxu0 0.0
    %1745 = vmatpush1.msra.mxu0 0.0
    %1746 = vmatprep.subr.mxu0 0.0
    %1747 = vmatpush1.msra.mxu0 0.0
    %1748 = vmatprep.subr.mxu0 0.0
    %1749 = vmatpush1.msra.mxu0 0.0
    %1750 = vmatprep.subr.mxu0 0.0
    %1751 = vmatpush1.msra.mxu0 0.0
    %1752 = vmatprep.subr.mxu0 0.0
    %1753 = vmatpush1.msra.mxu0 0.0
    %1754 = vmatprep.subr.mxu0 0.0
    %1755 = vmatpush1.msra.mxu0 0.0
    %1756 = vmatprep.subr.mxu0 0.0
    %1757 = vmatpush1.msra.mxu0 0.0
    %1758 = vmatprep.subr.mxu0 0.0
    %1759 = vmatpush1.msra.mxu0 0.0
    %1760 = vmatprep.subr.mxu0 0.0
    %1761 = vmatpush1.msra.mxu0 0.0
    %1762 = vmatprep.subr.mxu0 0.0
    %1763 = vmatpush1.msra.mxu0 0.0
    %1764 = vmatprep.subr.mxu0 0.0
    %1765 = vmatpush1.msra.mxu0 0.0
    %1766 = vmatprep.subr.mxu0 0.0
    %1767 = vmatpush1.msra.mxu0 0.0
    %1768 = vmatprep.subr.mxu0 0.0
    %1769 = vmatpush1.msra.mxu0 0.0
    %1770 = vmatprep.subr.mxu0 0.0
    %1771 = vmatpush1.msra.mxu0 0.0
    %1772 = vmatprep.subr.mxu0 0.0
    %1773 = vmatpush1.msra.mxu0 0.0
    %1774 = vmatprep.subr.mxu0 0.0
    %1775 = vmatpush1.msra.mxu0 0.0
    %1776 = vmatprep.subr.mxu0 0.0
    %1777 = vmatpush1.msra.mxu0 0.0
    %1778 = vmatprep.mubr.f32.mxu0 0.0
    %1779 = vmatmul.mubr.f32.gmra.mrb[0].mxu0 %v1700
    %v1780 = vpop.f32.mrb[0].mxu0
    %v1781 = vadd.f32 0.0, %v1780
    %v1782 = vpop.f32.mrb[0].mxu0
    %v1783 = vadd.f32 0.0, %v1782
    %1784 = vdwg.mxu0
    %1785 = vmatprep.subr.mxu0 %v1712
    %1786 = vmatpush1.msra.mxu0 %v1709
    %1787 = vmatprep.subr.mxu0 0.0
    %1788 = vmatpush1.msra.mxu0 0.0
    %1789 = vmatprep.subr.mxu0 0.0
    %1790 = vmatpush1.msra.mxu0 0.0
    %1791 = vmatprep.subr.mxu0 0.0
    %1792 = vmatpush1.msra.mxu0 0.0
    %1793 = vmatprep.subr.mxu0 0.0
    %1794 = vmatpush1.msra.mxu0 0.0
    %1795 = vmatprep.subr.mxu0 0.0
    %1796 = vmatpush1.msra.mxu0 0.0
    %1797 = vmatprep.subr.mxu0 0.0
    %1798 = vmatpush1.msra.mxu0 0.0
    %1799 = vmatprep.subr.mxu0 0.0
    %1800 = vmatpush1.msra.mxu0 0.0
    %1801 = vmatprep.subr.mxu0 0.0
    %1802 = vmatpush1.msra.mxu0 0.0
    %1803 = vmatprep.subr.mxu0 0.0
    %1804 = vmatpush1.msra.mxu0 0.0
    %1805 = vmatprep.subr.mxu0 0.0
    %1806 = vmatpush1.msra.mxu0 0.0
    %1807 = vmatprep.subr.mxu0 0.0
    %1808 = vmatpush1.msra.mxu0 0.0
    %1809 = vmatprep.subr.mxu0 0.0
    %1810 = vmatpush1.msra.mxu0 0.0
    %1811 = vmatprep.subr.mxu0 0.0
    %1812 = vmatpush1.msra.mxu0 0.0
    %1813 = vmatprep.subr.mxu0 0.0
    %1814 = vmatpush1.msra.mxu0 0.0
    %1815 = vmatprep.subr.mxu0 0.0
    %1816 = vmatpush1.msra.mxu0 0.0
    %1817 = vmatprep.subr.mxu0 0.0
    %1818 = vmatpush1.msra.mxu0 0.0
    %1819 = vmatprep.subr.mxu0 0.0
    %1820 = vmatpush1.msra.mxu0 0.0
    %1821 = vmatprep.subr.mxu0 0.0
    %1822 = vmatpush1.msra.mxu0 0.0
    %1823 = vmatprep.subr.mxu0 0.0
    %1824 = vmatpush1.msra.mxu0 0.0
    %1825 = vmatprep.subr.mxu0 0.0
    %1826 = vmatpush1.msra.mxu0 0.0
    %1827 = vmatprep.subr.mxu0 0.0
    %1828 = vmatpush1.msra.mxu0 0.0
    %1829 = vmatprep.subr.mxu0 0.0
    %1830 = vmatpush1.msra.mxu0 0.0
    %1831 = vmatprep.subr.mxu0 0.0
    %1832 = vmatpush1.msra.mxu0 0.0
    %1833 = vmatprep.subr.mxu0 0.0
    %1834 = vmatpush1.msra.mxu0 0.0
    %1835 = vmatprep.subr.mxu0 0.0
    %1836 = vmatpush1.msra.mxu0 0.0
    %1837 = vmatprep.subr.mxu0 0.0
    %1838 = vmatpush1.msra.mxu0 0.0
    %1839 = vmatprep.subr.mxu0 0.0
    %1840 = vmatpush1.msra.mxu0 0.0
    %1841 = vmatprep.subr.mxu0 0.0
    %1842 = vmatpush1.msra.mxu0 0.0
    %1843 = vmatprep.subr.mxu0 0.0
    %1844 = vmatpush1.msra.mxu0 0.0
    %1845 = vmatprep.subr.mxu0 0.0
    %1846 = vmatpush1.msra.mxu0 0.0
    %1847 = vmatprep.subr.mxu0 0.0
    %1848 = vmatpush1.msra.mxu0 0.0
    %1849 = vmatprep.mubr.f32.mxu0 0.0
    %1850 = vmatmul.mubr.f32.gmra.mrb[0].mxu0 %v1700
    %v1851 = vpop.f32.mrb[0].mxu0
    %v1852 = vadd.f32 0.0, %v1851
    %v1853 = vpop.f32.mrb[0].mxu0
    %v1854 = vadd.f32 0.0, %v1853
    %1855 = vdwg.mxu0
    %s1856 = scalar_lea.vmem %s1, 32
    %v1857 = vld [vmem:[%s1856] ss:$8 sm:$0xf]
    %v1859 = vlaneseq
    %v1860 = vshrl.u32 %v1859, 7
    %v1861 = vsub.s32 0, %v1860
    %v1862 = vrot.slane %v1857, %v1861
    %v1863 = vlaneseq
    %v1864 = vshrl.u32 %v1863, 7
    %v1865 = vsub.s32 1, %v1864
    %v1866 = vrot.slane %v1857, %v1865
    %v1867 = vlaneseq
    %v1868 = vshrl.u32 %v1867, 7
    %v1869 = vsub.s32 2, %v1868
    %v1870 = vrot.slane %v1857, %v1869
    %v1871 = vlaneseq
    %v1872 = vshrl.u32 %v1871, 7
    %v1873 = vsub.s32 3, %v1872
    %v1874 = vrot.slane %v1857, %v1873
    %v1879 = vmul.f32 %v1862, %v1781
    %v1880 = vmul.f32 %v1866, %v1783
    %v1881 = vmul.f32 %v1870, %v1852
    %v1882 = vmul.f32 %v1874, %v1854
    %v1883 = vadd.f32 %v1681, %v1879
    %v1884 = vadd.f32 %v1682, %v1880
    %v1885 = vadd.f32 %v1683, %v1881
    %v1886 = vadd.f32 %v1684, %v1882
    %v1887 = vmax.f32 %v1883, 0.0
    %v1888 = vmax.f32 %v1884, 0.0
    %v1889 = vmax.f32 %v1885, 0.0
    %v1890 = vmax.f32 %v1886, 0.0
    %v1895 = vrot.slane %v1887, 4
    %v1896 = vrot.slane %v1888, 4
    %v1897 = vrot.slane %v1889, 4
    %v1898 = vrot.slane %v1890, 4
    %1903 = vst [vmem:[#allocation2] sm:$0xf0] %v1895
    %1904 = vst [vmem:[#allocation2 + $0x8] sm:$0xf0] %v1896
    %1905 = vst [vmem:[#allocation2 + $0x10] sm:$0xf0] %v1897
    %1906 = vst [vmem:[#allocation2 + $0x18] sm:$0xf0] %v1898
    %1907 = vst [vmem:[#allocation2 + $0x20] sm:$0xf] %v1895
    %1908 = vst [vmem:[#allocation2 + $0x28] sm:$0xf] %v1896
    %1909 = vst [vmem:[#allocation2 + $0x30] sm:$0xf] %v1897
    %1910 = vst [vmem:[#allocation2 + $0x38] sm:$0xf] %v1898
    %v1911 = vld [vmem:[#allocation2] sm:$0xff]
    %v1912 = vld [vmem:[#allocation2 + $0x8] sm:$0xff]
    %v1913 = vld [vmem:[#allocation2 + $0x10] sm:$0xff]
    %v1914 = vld [vmem:[#allocation2 + $0x18] sm:$0xff]
    %v1915 = vld [vmem:[#allocation2 + $0x20] sm:$0xf]
    %v1916 = vld [vmem:[#allocation2 + $0x28] sm:$0xf]
    %v1917 = vld [vmem:[#allocation2 + $0x30] sm:$0xf]
    %v1918 = vld [vmem:[#allocation2 + $0x38] sm:$0xf]
    %v1919 = vld [vmem:[%s5] sm:$0xff]
    %v1920 = vld [vmem:[%s5 + $0x8] sm:$0xf]
    %v1921 = vld [vmem:[%s6] sm:$0xff]
    %v1922 = vld [vmem:[%s6 + $0x8] sm:$0xf]
    %v1923 = vadd.f32 %v1911, %v1912
    %v1924 = vadd.f32 %v1923, %v1913
    %v1925 = vadd.f32 %v1924, %v1914
    %1926 = vadd.xlane.f32.xlu0 %v1925
    %v1927 = vpop.xlane.xlu0 %1926
    %v1928 = vsel %vm57, %v1915, 0.0
    %v1929 = vsel %vm57, %v1916, 0.0
    %v1930 = vadd.f32 %v1928, %v1929
    %v1931 = vsel %vm57, %v1917, 0.0
    %v1932 = vadd.f32 %v1930, %v1931
    %v1933 = vsel %vm57, %v1918, 0.0
    %v1934 = vadd.f32 %v1932, %v1933
    %1935 = vadd.xlane.f32.xlu0 %v1934
    %v1936 = vpop.xlane.xlu0 %1935
    %v1937 = vmul.f32 %v1927, 0.001953125
    %v1938 = vmul.f32 %v1936, 0.001953125
    %v1939 = vmul.f32 %v1911, %v1911
    %v1940 = vmul.f32 %v1912, %v1912
    %v1941 = vmul.f32 %v1913, %v1913
    %v1942 = vmul.f32 %v1914, %v1914
    %v1943 = vmul.f32 %v1915, %v1915
    %v1944 = vmul.f32 %v1916, %v1916
    %v1945 = vmul.f32 %v1917, %v1917
    %v1946 = vmul.f32 %v1918, %v1918
    %v1947 = vadd.f32 %v1939, %v1940
    %v1948 = vadd.f32 %v1947, %v1941
    %v1949 = vadd.f32 %v1948, %v1942
    %1950 = vadd.xlane.f32.xlu0 %v1949
    %v1951 = vpop.xlane.xlu0 %1950
    %v1952 = vsel %vm57, %v1943, 0.0
    %v1953 = vsel %vm57, %v1944, 0.0
    %v1954 = vadd.f32 %v1952, %v1953
    %v1955 = vsel %vm57, %v1945, 0.0
    %v1956 = vadd.f32 %v1954, %v1955
    %v1957 = vsel %vm57, %v1946, 0.0
    %v1958 = vadd.f32 %v1956, %v1957
    %1959 = vadd.xlane.f32.xlu0 %v1958
    %v1960 = vpop.xlane.xlu0 %1959
    %v1961 = vmul.f32 %v1951, 0.001953125
    %v1962 = vmul.f32 %v1960, 0.001953125
    %v1963 = vmul.f32 %v1937, %v1937
    %v1964 = vmul.f32 %v1938, %v1938
    %v1965 = vsub.f32 %v1961, %v1963
    %v1966 = vsub.f32 %v1962, %v1964
    %v1967 = vadd.f32 %v1965, 1e-05
    %v1968 = vadd.f32 %v1966, 1e-05
    %v1969 = vrsqrt.pop %v1967
    %v1970 = vrsqrt.pop %v1968
    %v1971 = vmul.f32 %v1919, %v1969
    %v1972 = vmul.f32 %v1920, %v1970
    %v1973 = vmul.f32 %v1937, %v1971
    %v1974 = vmul.f32 %v1938, %v1972
    %v1975 = vsub.f32 %v1921, %v1973
    %v1976 = vsub.f32 %v1922, %v1974
    %1978 = vset.pattern.permute.xlu0 0
    %1979 = vperm.xlu0 %1978, %v1971
    %v1980 = vpop.permute.xlu0 %1979
    %1983 = vset.pattern.permute.xlu0 0
    %1984 = vperm.xlu0 %1983, %v1972
    %v1985 = vpop.permute.xlu0 %1984
    %v1987 = vmul.f32 %v1911, %v1980
    %v1988 = vmul.f32 %v1912, %v1980
    %v1989 = vmul.f32 %v1913, %v1980
    %v1990 = vmul.f32 %v1914, %v1980
    %v1991 = vmul.f32 %v1915, %v1985
    %v1992 = vmul.f32 %v1916, %v1985
    %v1993 = vmul.f32 %v1917, %v1985
    %v1994 = vmul.f32 %v1918, %v1985
    %1996 = vset.pattern.permute.xlu0 0
    %1997 = vperm.xlu0 %1996, %v1975
    %v1998 = vpop.permute.xlu0 %1997
    %2001 = vset.pattern.permute.xlu0 0
    %2002 = vperm.xlu0 %2001, %v1976
    %v2003 = vpop.permute.xlu0 %2002
    %v2005 = vadd.f32 %v1987, %v1998
    %v2006 = vadd.f32 %v1988, %v1998
    %v2007 = vadd.f32 %v1989, %v1998
    %v2008 = vadd.f32 %v1990, %v1998
    %v2009 = vadd.f32 %v1991, %v2003
    %v2010 = vadd.f32 %v1992, %v2003
    %v2011 = vadd.f32 %v1993, %v2003
    %v2012 = vadd.f32 %v1994, %v2003
    %2013 = vrot.lane.b32.xlu0 %v2005, 17
    %v2014 = vpop.permute.xlu0 %2013
    %2015 = vrot.lane.b32.xlu0 %v2009, 17
    %v2016 = vpop.permute.xlu0 %2015
    %2017 = vrot.lane.b32.xlu0 %v2006, 17
    %v2018 = vpop.permute.xlu0 %2017
    %2019 = vrot.lane.b32.xlu0 %v2010, 17
    %v2020 = vpop.permute.xlu0 %2019
    %2021 = vrot.lane.b32.xlu0 %v2007, 17
    %v2022 = vpop.permute.xlu0 %2021
    %2023 = vrot.lane.b32.xlu0 %v2011, 17
    %v2024 = vpop.permute.xlu0 %2023
    %2025 = vrot.lane.b32.xlu0 %v2008, 17
    %v2026 = vpop.permute.xlu0 %2025
    %2027 = vrot.lane.b32.xlu0 %v2012, 17
    %v2028 = vpop.permute.xlu0 %2027
    %v2029 = vsel %vm117, %v2022, %v2026
    %v2030 = vsel %vm117, %v2024, %v2028
    %v2031 = vsel %vm117, %v2018, %v2022
    %v2032 = vsel %vm117, %v2020, %v2024
    %v2033 = vsel %vm117, %v2014, %v2018
    %v2034 = vsel %vm117, %v2016, %v2020
    %v2035 = vsel %vm117, %v2026, %v2014
    %v2036 = vsel %vm117, %v2028, %v2016
    %v2037 = vld [vmem:[%s7] sm:$0xff]
    %vm2038 = vcmask 97280
    %v2040 = vsel %vm2038, %v2037, 0
    %v2043 = vsel %vm57, %v2036, 0
    %v2046 = vsel %vm57, %v2034, 0
    %v2049 = vsel %vm57, %v2032, 0
    %v2052 = vsel %vm57, %v2030, 0
    %2054 = vmatprep.subr.mxu0 %v2033
    %2055 = vmatpush1.msra.mxu0 %v2035
    %2056 = vmatprep.subr.mxu0 %v2046
    %2057 = vmatpush1.msra.mxu0 %v2043
    %2058 = vmatprep.subr.mxu0 0.0
    %2059 = vmatpush1.msra.mxu0 0.0
    %2060 = vmatprep.subr.mxu0 0.0
    %2061 = vmatpush1.msra.mxu0 0.0
    %2062 = vmatprep.subr.mxu0 0.0
    %2063 = vmatpush1.msra.mxu0 0.0
    %2064 = vmatprep.subr.mxu0 0.0
    %2065 = vmatpush1.msra.mxu0 0.0
    %2066 = vmatprep.subr.mxu0 0.0
    %2067 = vmatpush1.msra.mxu0 0.0
    %2068 = vmatprep.subr.mxu0 0.0
    %2069 = vmatpush1.msra.mxu0 0.0
    %2070 = vmatprep.subr.mxu0 0.0
    %2071 = vmatpush1.msra.mxu0 0.0
    %2072 = vmatprep.subr.mxu0 0.0
    %2073 = vmatpush1.msra.mxu0 0.0
    %2074 = vmatprep.subr.mxu0 0.0
    %2075 = vmatpush1.msra.mxu0 0.0
    %2076 = vmatprep.subr.mxu0 0.0
    %2077 = vmatpush1.msra.mxu0 0.0
    %2078 = vmatprep.subr.mxu0 0.0
    %2079 = vmatpush1.msra.mxu0 0.0
    %2080 = vmatprep.subr.mxu0 0.0
    %2081 = vmatpush1.msra.mxu0 0.0
    %2082 = vmatprep.subr.mxu0 0.0
    %2083 = vmatpush1.msra.mxu0 0.0
    %2084 = vmatprep.subr.mxu0 0.0
    %2085 = vmatpush1.msra.mxu0 0.0
    %2086 = vmatprep.subr.mxu0 0.0
    %2087 = vmatpush1.msra.mxu0 0.0
    %2088 = vmatprep.subr.mxu0 0.0
    %2089 = vmatpush1.msra.mxu0 0.0
    %2090 = vmatprep.subr.mxu0 0.0
    %2091 = vmatpush1.msra.mxu0 0.0
    %2092 = vmatprep.subr.mxu0 0.0
    %2093 = vmatpush1.msra.mxu0 0.0
    %2094 = vmatprep.subr.mxu0 0.0
    %2095 = vmatpush1.msra.mxu0 0.0
    %2096 = vmatprep.subr.mxu0 0.0
    %2097 = vmatpush1.msra.mxu0 0.0
    %2098 = vmatprep.subr.mxu0 0.0
    %2099 = vmatpush1.msra.mxu0 0.0
    %2100 = vmatprep.subr.mxu0 0.0
    %2101 = vmatpush1.msra.mxu0 0.0
    %2102 = vmatprep.subr.mxu0 0.0
    %2103 = vmatpush1.msra.mxu0 0.0
    %2104 = vmatprep.subr.mxu0 0.0
    %2105 = vmatpush1.msra.mxu0 0.0
    %2106 = vmatprep.subr.mxu0 0.0
    %2107 = vmatpush1.msra.mxu0 0.0
    %2108 = vmatprep.subr.mxu0 0.0
    %2109 = vmatpush1.msra.mxu0 0.0
    %2110 = vmatprep.subr.mxu0 0.0
    %2111 = vmatpush1.msra.mxu0 0.0
    %2112 = vmatprep.subr.mxu0 0.0
    %2113 = vmatpush1.msra.mxu0 0.0
    %2114 = vmatprep.subr.mxu0 0.0
    %2115 = vmatpush1.msra.mxu0 0.0
    %2116 = vmatprep.subr.mxu0 0.0
    %2117 = vmatpush1.msra.mxu0 0.0
    %2118 = vmatprep.mubr.f32.mxu0 0.0
    %2119 = vmatmul.mubr.f32.gmra.mrb[0].mxu0 %v2040
    %v2120 = vpop.f32.mrb[0].mxu0
    %v2121 = vadd.f32 0.0, %v2120
    %v2122 = vpop.f32.mrb[0].mxu0
    %v2123 = vadd.f32 0.0, %v2122
    %2124 = vdwg.mxu0
    %2125 = vmatprep.subr.mxu0 %v2029
    %2126 = vmatpush1.msra.mxu0 %v2031
    %2127 = vmatprep.subr.mxu0 %v2052
    %2128 = vmatpush1.msra.mxu0 %v2049
    %2129 = vmatprep.subr.mxu0 0.0
    %2130 = vmatpush1.msra.mxu0 0.0
    %2131 = vmatprep.subr.mxu0 0.0
    %2132 = vmatpush1.msra.mxu0 0.0
    %2133 = vmatprep.subr.mxu0 0.0
    %2134 = vmatpush1.msra.mxu0 0.0
    %2135 = vmatprep.subr.mxu0 0.0
    %2136 = vmatpush1.msra.mxu0 0.0
    %2137 = vmatprep.subr.mxu0 0.0
    %2138 = vmatpush1.msra.mxu0 0.0
    %2139 = vmatprep.subr.mxu0 0.0
    %2140 = vmatpush1.msra.mxu0 0.0
    %2141 = vmatprep.subr.mxu0 0.0
    %2142 = vmatpush1.msra.mxu0 0.0
    %2143 = vmatprep.subr.mxu0 0.0
    %2144 = vmatpush1.msra.mxu0 0.0
    %2145 = vmatprep.subr.mxu0 0.0
    %2146 = vmatpush1.msra.mxu0 0.0
    %2147 = vmatprep.subr.mxu0 0.0
    %2148 = vmatpush1.msra.mxu0 0.0
    %2149 = vmatprep.subr.mxu0 0.0
    %2150 = vmatpush1.msra.mxu0 0.0
    %2151 = vmatprep.subr.mxu0 0.0
    %2152 = vmatpush1.msra.mxu0 0.0
    %2153 = vmatprep.subr.mxu0 0.0
    %2154 = vmatpush1.msra.mxu0 0.0
    %2155 = vmatprep.subr.mxu0 0.0
    %2156 = vmatpush1.msra.mxu0 0.0
    %2157 = vmatprep.subr.mxu0 0.0
    %2158 = vmatpush1.msra.mxu0 0.0
    %2159 = vmatprep.subr.mxu0 0.0
    %2160 = vmatpush1.msra.mxu0 0.0
    %2161 = vmatprep.subr.mxu0 0.0
    %2162 = vmatpush1.msra.mxu0 0.0
    %2163 = vmatprep.subr.mxu0 0.0
    %2164 = vmatpush1.msra.mxu0 0.0
    %2165 = vmatprep.subr.mxu0 0.0
    %2166 = vmatpush1.msra.mxu0 0.0
    %2167 = vmatprep.subr.mxu0 0.0
    %2168 = vmatpush1.msra.mxu0 0.0
    %2169 = vmatprep.subr.mxu0 0.0
    %2170 = vmatpush1.msra.mxu0 0.0
    %2171 = vmatprep.subr.mxu0 0.0
    %2172 = vmatpush1.msra.mxu0 0.0
    %2173 = vmatprep.subr.mxu0 0.0
    %2174 = vmatpush1.msra.mxu0 0.0
    %2175 = vmatprep.subr.mxu0 0.0
    %2176 = vmatpush1.msra.mxu0 0.0
    %2177 = vmatprep.subr.mxu0 0.0
    %2178 = vmatpush1.msra.mxu0 0.0
    %2179 = vmatprep.subr.mxu0 0.0
    %2180 = vmatpush1.msra.mxu0 0.0
    %2181 = vmatprep.subr.mxu0 0.0
    %2182 = vmatpush1.msra.mxu0 0.0
    %2183 = vmatprep.subr.mxu0 0.0
    %2184 = vmatpush1.msra.mxu0 0.0
    %2185 = vmatprep.subr.mxu0 0.0
    %2186 = vmatpush1.msra.mxu0 0.0
    %2187 = vmatprep.subr.mxu0 0.0
    %2188 = vmatpush1.msra.mxu0 0.0
    %2189 = vmatprep.mubr.f32.mxu0 0.0
    %2190 = vmatmul.mubr.f32.gmra.mrb[0].mxu0 %v2040
    %v2191 = vpop.f32.mrb[0].mxu0
    %v2192 = vadd.f32 0.0, %v2191
    %v2193 = vpop.f32.mrb[0].mxu0
    %v2194 = vadd.f32 0.0, %v2193
    %2195 = vdwg.mxu0
    %v2196 = vld [vmem:[%s1] ss:$8 sm:$0xf]
    %v2198 = vlaneseq
    %v2199 = vshrl.u32 %v2198, 7
    %v2200 = vsub.s32 0, %v2199
    %v2201 = vrot.slane %v2196, %v2200
    %v2202 = vlaneseq
    %v2203 = vshrl.u32 %v2202, 7
    %v2204 = vsub.s32 1, %v2203
    %v2205 = vrot.slane %v2196, %v2204
    %v2206 = vlaneseq
    %v2207 = vshrl.u32 %v2206, 7
    %v2208 = vsub.s32 2, %v2207
    %v2209 = vrot.slane %v2196, %v2208
    %v2210 = vlaneseq
    %v2211 = vshrl.u32 %v2210, 7
    %v2212 = vsub.s32 3, %v2211
    %v2213 = vrot.slane %v2196, %v2212
    %v2218 = vmul.f32 %v2201, %v2121
    %v2219 = vmul.f32 %v2205, %v2123
    %v2220 = vmul.f32 %v2209, %v2192
    %v2221 = vmul.f32 %v2213, %v2194
    %v2222 = vadd.f32 %v2218, 0.0
    %v2223 = vadd.f32 %v2219, 0.0
    %v2224 = vadd.f32 %v2220, 0.0
    %v2225 = vadd.f32 %v2221, 0.0
    %2226 = vrot.lane.b32.xlu0 %v2005, 16
    %v2227 = vpop.permute.xlu0 %2226
    %2228 = vrot.lane.b32.xlu0 %v2009, 16
    %v2229 = vpop.permute.xlu0 %2228
    %2230 = vrot.lane.b32.xlu0 %v2006, 16
    %v2231 = vpop.permute.xlu0 %2230
    %2232 = vrot.lane.b32.xlu0 %v2010, 16
    %v2233 = vpop.permute.xlu0 %2232
    %2234 = vrot.lane.b32.xlu0 %v2007, 16
    %v2235 = vpop.permute.xlu0 %2234
    %2236 = vrot.lane.b32.xlu0 %v2011, 16
    %v2237 = vpop.permute.xlu0 %2236
    %2238 = vrot.lane.b32.xlu0 %v2008, 16
    %v2239 = vpop.permute.xlu0 %2238
    %2240 = vrot.lane.b32.xlu0 %v2012, 16
    %v2241 = vpop.permute.xlu0 %2240
    %v2242 = vsel %vm319, %v2235, %v2239
    %v2243 = vsel %vm319, %v2237, %v2241
    %v2244 = vsel %vm319, %v2231, %v2235
    %v2245 = vsel %vm319, %v2233, %v2237
    %v2246 = vsel %vm319, %v2227, %v2231
    %v2247 = vsel %vm319, %v2229, %v2233
    %v2248 = vsel %vm319, %v2239, %v2227
    %v2249 = vsel %vm319, %v2241, %v2229
    %v2250 = vld [vmem:[%s7 + $0x8] sm:$0xff]
    %v2252 = vsel %vm2038, %v2250, 0
    %v2255 = vsel %vm57, %v2249, 0
    %v2258 = vsel %vm57, %v2247, 0
    %v2261 = vsel %vm57, %v2245, 0
    %v2264 = vsel %vm57, %v2243, 0
    %2266 = vmatprep.subr.mxu0 %v2246
    %2267 = vmatpush1.msra.mxu0 %v2248
    %2268 = vmatprep.subr.mxu0 %v2258
    %2269 = vmatpush1.msra.mxu0 %v2255
    %2270 = vmatprep.subr.mxu0 0.0
    %2271 = vmatpush1.msra.mxu0 0.0
    %2272 = vmatprep.subr.mxu0 0.0
    %2273 = vmatpush1.msra.mxu0 0.0
    %2274 = vmatprep.subr.mxu0 0.0
    %2275 = vmatpush1.msra.mxu0 0.0
    %2276 = vmatprep.subr.mxu0 0.0
    %2277 = vmatpush1.msra.mxu0 0.0
    %2278 = vmatprep.subr.mxu0 0.0
    %2279 = vmatpush1.msra.mxu0 0.0
    %2280 = vmatprep.subr.mxu0 0.0
    %2281 = vmatpush1.msra.mxu0 0.0
    %2282 = vmatprep.subr.mxu0 0.0
    %2283 = vmatpush1.msra.mxu0 0.0
    %2284 = vmatprep.subr.mxu0 0.0
    %2285 = vmatpush1.msra.mxu0 0.0
    %2286 = vmatprep.subr.mxu0 0.0
    %2287 = vmatpush1.msra.mxu0 0.0
    %2288 = vmatprep.subr.mxu0 0.0
    %2289 = vmatpush1.msra.mxu0 0.0
    %2290 = vmatprep.subr.mxu0 0.0
    %2291 = vmatpush1.msra.mxu0 0.0
    %2292 = vmatprep.subr.mxu0 0.0
    %2293 = vmatpush1.msra.mxu0 0.0
    %2294 = vmatprep.subr.mxu0 0.0
    %2295 = vmatpush1.msra.mxu0 0.0
    %2296 = vmatprep.subr.mxu0 0.0
    %2297 = vmatpush1.msra.mxu0 0.0
    %2298 = vmatprep.subr.mxu0 0.0
    %2299 = vmatpush1.msra.mxu0 0.0
    %2300 = vmatprep.subr.mxu0 0.0
    %2301 = vmatpush1.msra.mxu0 0.0
    %2302 = vmatprep.subr.mxu0 0.0
    %2303 = vmatpush1.msra.mxu0 0.0
    %2304 = vmatprep.subr.mxu0 0.0
    %2305 = vmatpush1.msra.mxu0 0.0
    %2306 = vmatprep.subr.mxu0 0.0
    %2307 = vmatpush1.msra.mxu0 0.0
    %2308 = vmatprep.subr.mxu0 0.0
    %2309 = vmatpush1.msra.mxu0 0.0
    %2310 = vmatprep.subr.mxu0 0.0
    %2311 = vmatpush1.msra.mxu0 0.0
    %2312 = vmatprep.subr.mxu0 0.0
    %2313 = vmatpush1.msra.mxu0 0.0
    %2314 = vmatprep.subr.mxu0 0.0
    %2315 = vmatpush1.msra.mxu0 0.0
    %2316 = vmatprep.subr.mxu0 0.0
    %2317 = vmatpush1.msra.mxu0 0.0
    %2318 = vmatprep.subr.mxu0 0.0
    %2319 = vmatpush1.msra.mxu0 0.0
    %2320 = vmatprep.subr.mxu0 0.0
    %2321 = vmatpush1.msra.mxu0 0.0
    %2322 = vmatprep.subr.mxu0 0.0
    %2323 = vmatpush1.msra.mxu0 0.0
    %2324 = vmatprep.subr.mxu0 0.0
    %2325 = vmatpush1.msra.mxu0 0.0
    %2326 = vmatprep.subr.mxu0 0.0
    %2327 = vmatpush1.msra.mxu0 0.0
    %2328 = vmatprep.subr.mxu0 0.0
    %2329 = vmatpush1.msra.mxu0 0.0
    %2330 = vmatprep.mubr.f32.mxu0 0.0
    %2331 = vmatmul.mubr.f32.gmra.mrb[0].mxu0 %v2252
    %v2332 = vpop.f32.mrb[0].mxu0
    %v2333 = vadd.f32 0.0, %v2332
    %v2334 = vpop.f32.mrb[0].mxu0
    %v2335 = vadd.f32 0.0, %v2334
    %2336 = vdwg.mxu0
    %2337 = vmatprep.subr.mxu0 %v2242
    %2338 = vmatpush1.msra.mxu0 %v2244
    %2339 = vmatprep.subr.mxu0 %v2264
    %2340 = vmatpush1.msra.mxu0 %v2261
    %2341 = vmatprep.subr.mxu0 0.0
    %2342 = vmatpush1.msra.mxu0 0.0
    %2343 = vmatprep.subr.mxu0 0.0
    %2344 = vmatpush1.msra.mxu0 0.0
    %2345 = vmatprep.subr.mxu0 0.0
    %2346 = vmatpush1.msra.mxu0 0.0
    %2347 = vmatprep.subr.mxu0 0.0
    %2348 = vmatpush1.msra.mxu0 0.0
    %2349 = vmatprep.subr.mxu0 0.0
    %2350 = vmatpush1.msra.mxu0 0.0
    %2351 = vmatprep.subr.mxu0 0.0
    %2352 = vmatpush1.msra.mxu0 0.0
    %2353 = vmatprep.subr.mxu0 0.0
    %2354 = vmatpush1.msra.mxu0 0.0
    %2355 = vmatprep.subr.mxu0 0.0
    %2356 = vmatpush1.msra.mxu0 0.0
    %2357 = vmatprep.subr.mxu0 0.0
    %2358 = vmatpush1.msra.mxu0 0.0
    %2359 = vmatprep.subr.mxu0 0.0
    %2360 = vmatpush1.msra.mxu0 0.0
    %2361 = vmatprep.subr.mxu0 0.0
    %2362 = vmatpush1.msra.mxu0 0.0
    %2363 = vmatprep.subr.mxu0 0.0
    %2364 = vmatpush1.msra.mxu0 0.0
    %2365 = vmatprep.subr.mxu0 0.0
    %2366 = vmatpush1.msra.mxu0 0.0
    %2367 = vmatprep.subr.mxu0 0.0
    %2368 = vmatpush1.msra.mxu0 0.0
    %2369 = vmatprep.subr.mxu0 0.0
    %2370 = vmatpush1.msra.mxu0 0.0
    %2371 = vmatprep.subr.mxu0 0.0
    %2372 = vmatpush1.msra.mxu0 0.0
    %2373 = vmatprep.subr.mxu0 0.0
    %2374 = vmatpush1.msra.mxu0 0.0
    %2375 = vmatprep.subr.mxu0 0.0
    %2376 = vmatpush1.msra.mxu0 0.0
    %2377 = vmatprep.subr.mxu0 0.0
    %2378 = vmatpush1.msra.mxu0 0.0
    %2379 = vmatprep.subr.mxu0 0.0
    %2380 = vmatpush1.msra.mxu0 0.0
    %2381 = vmatprep.subr.mxu0 0.0
    %2382 = vmatpush1.msra.mxu0 0.0
    %2383 = vmatprep.subr.mxu0 0.0
    %2384 = vmatpush1.msra.mxu0 0.0
    %2385 = vmatprep.subr.mxu0 0.0
    %2386 = vmatpush1.msra.mxu0 0.0
    %2387 = vmatprep.subr.mxu0 0.0
    %2388 = vmatpush1.msra.mxu0 0.0
    %2389 = vmatprep.subr.mxu0 0.0
    %2390 = vmatpush1.msra.mxu0 0.0
    %2391 = vmatprep.subr.mxu0 0.0
    %2392 = vmatpush1.msra.mxu0 0.0
    %2393 = vmatprep.subr.mxu0 0.0
    %2394 = vmatpush1.msra.mxu0 0.0
    %2395 = vmatprep.subr.mxu0 0.0
    %2396 = vmatpush1.msra.mxu0 0.0
    %2397 = vmatprep.subr.mxu0 0.0
    %2398 = vmatpush1.msra.mxu0 0.0
    %2399 = vmatprep.subr.mxu0 0.0
    %2400 = vmatpush1.msra.mxu0 0.0
    %2401 = vmatprep.mubr.f32.mxu0 0.0
    %2402 = vmatmul.mubr.f32.gmra.mrb[0].mxu0 %v2252
    %v2403 = vpop.f32.mrb[0].mxu0
    %v2404 = vadd.f32 0.0, %v2403
    %v2405 = vpop.f32.mrb[0].mxu0
    %v2406 = vadd.f32 0.0, %v2405
    %2407 = vdwg.mxu0
    %v2408 = vld [vmem:[%s482] ss:$8 sm:$0xf]
    %v2410 = vlaneseq
    %v2411 = vshrl.u32 %v2410, 7
    %v2412 = vsub.s32 0, %v2411
    %v2413 = vrot.slane %v2408, %v2412
    %v2414 = vlaneseq
    %v2415 = vshrl.u32 %v2414, 7
    %v2416 = vsub.s32 1, %v2415
    %v2417 = vrot.slane %v2408, %v2416
    %v2418 = vlaneseq
    %v2419 = vshrl.u32 %v2418, 7
    %v2420 = vsub.s32 2, %v2419
    %v2421 = vrot.slane %v2408, %v2420
    %v2422 = vlaneseq
    %v2423 = vshrl.u32 %v2422, 7
    %v2424 = vsub.s32 3, %v2423
    %v2425 = vrot.slane %v2408, %v2424
    %v2430 = vmul.f32 %v2413, %v2333
    %v2431 = vmul.f32 %v2417, %v2335
    %v2432 = vmul.f32 %v2421, %v2404
    %v2433 = vmul.f32 %v2425, %v2406
    %v2434 = vadd.f32 %v2222, %v2430
    %v2435 = vadd.f32 %v2223, %v2431
    %v2436 = vadd.f32 %v2224, %v2432
    %v2437 = vadd.f32 %v2225, %v2433
    %2438 = vrot.lane.b32.xlu0 %v2005, 15
    %v2439 = vpop.permute.xlu0 %2438
    %2440 = vrot.lane.b32.xlu0 %v2009, 15
    %v2441 = vpop.permute.xlu0 %2440
    %2442 = vrot.lane.b32.xlu0 %v2006, 15
    %v2443 = vpop.permute.xlu0 %2442
    %2444 = vrot.lane.b32.xlu0 %v2010, 15
    %v2445 = vpop.permute.xlu0 %2444
    %2446 = vrot.lane.b32.xlu0 %v2007, 15
    %v2447 = vpop.permute.xlu0 %2446
    %2448 = vrot.lane.b32.xlu0 %v2011, 15
    %v2449 = vpop.permute.xlu0 %2448
    %2450 = vrot.lane.b32.xlu0 %v2008, 15
    %v2451 = vpop.permute.xlu0 %2450
    %2452 = vrot.lane.b32.xlu0 %v2012, 15
    %v2453 = vpop.permute.xlu0 %2452
    %v2454 = vsel %vm521, %v2447, %v2451
    %v2455 = vsel %vm521, %v2449, %v2453
    %v2456 = vsel %vm521, %v2443, %v2447
    %v2457 = vsel %vm521, %v2445, %v2449
    %v2458 = vsel %vm521, %v2439, %v2443
    %v2459 = vsel %vm521, %v2441, %v2445
    %v2460 = vsel %vm521, %v2451, %v2439
    %v2461 = vsel %vm521, %v2453, %v2441
    %v2462 = vld [vmem:[%s7 + $0x10] sm:$0xff]
    %v2464 = vsel %vm2038, %v2462, 0
    %v2467 = vsel %vm57, %v2461, 0
    %v2470 = vsel %vm57, %v2459, 0
    %v2473 = vsel %vm57, %v2457, 0
    %v2476 = vsel %vm57, %v2455, 0
    %2478 = vmatprep.subr.mxu0 %v2458
    %2479 = vmatpush1.msra.mxu0 %v2460
    %2480 = vmatprep.subr.mxu0 %v2470
    %2481 = vmatpush1.msra.mxu0 %v2467
    %2482 = vmatprep.subr.mxu0 0.0
    %2483 = vmatpush1.msra.mxu0 0.0
    %2484 = vmatprep.subr.mxu0 0.0
    %2485 = vmatpush1.msra.mxu0 0.0
    %2486 = vmatprep.subr.mxu0 0.0
    %2487 = vmatpush1.msra.mxu0 0.0
    %2488 = vmatprep.subr.mxu0 0.0
    %2489 = vmatpush1.msra.mxu0 0.0
    %2490 = vmatprep.subr.mxu0 0.0
    %2491 = vmatpush1.msra.mxu0 0.0
    %2492 = vmatprep.subr.mxu0 0.0
    %2493 = vmatpush1.msra.mxu0 0.0
    %2494 = vmatprep.subr.mxu0 0.0
    %2495 = vmatpush1.msra.mxu0 0.0
    %2496 = vmatprep.subr.mxu0 0.0
    %2497 = vmatpush1.msra.mxu0 0.0
    %2498 = vmatprep.subr.mxu0 0.0
    %2499 = vmatpush1.msra.mxu0 0.0
    %2500 = vmatprep.subr.mxu0 0.0
    %2501 = vmatpush1.msra.mxu0 0.0
    %2502 = vmatprep.subr.mxu0 0.0
    %2503 = vmatpush1.msra.mxu0 0.0
    %2504 = vmatprep.subr.mxu0 0.0
    %2505 = vmatpush1.msra.mxu0 0.0
    %2506 = vmatprep.subr.mxu0 0.0
    %2507 = vmatpush1.msra.mxu0 0.0
    %2508 = vmatprep.subr.mxu0 0.0
    %2509 = vmatpush1.msra.mxu0 0.0
    %2510 = vmatprep.subr.mxu0 0.0
    %2511 = vmatpush1.msra.mxu0 0.0
    %2512 = vmatprep.subr.mxu0 0.0
    %2513 = vmatpush1.msra.mxu0 0.0
    %2514 = vmatprep.subr.mxu0 0.0
    %2515 = vmatpush1.msra.mxu0 0.0
    %2516 = vmatprep.subr.mxu0 0.0
    %2517 = vmatpush1.msra.mxu0 0.0
    %2518 = vmatprep.subr.mxu0 0.0
    %2519 = vmatpush1.msra.mxu0 0.0
    %2520 = vmatprep.subr.mxu0 0.0
    %2521 = vmatpush1.msra.mxu0 0.0
    %2522 = vmatprep.subr.mxu0 0.0
    %2523 = vmatpush1.msra.mxu0 0.0
    %2524 = vmatprep.subr.mxu0 0.0
    %2525 = vmatpush1.msra.mxu0 0.0
    %2526 = vmatprep.subr.mxu0 0.0
    %2527 = vmatpush1.msra.mxu0 0.0
    %2528 = vmatprep.subr.mxu0 0.0
    %2529 = vmatpush1.msra.mxu0 0.0
    %2530 = vmatprep.subr.mxu0 0.0
    %2531 = vmatpush1.msra.mxu0 0.0
    %2532 = vmatprep.subr.mxu0 0.0
    %2533 = vmatpush1.msra.mxu0 0.0
    %2534 = vmatprep.subr.mxu0 0.0
    %2535 = vmatpush1.msra.mxu0 0.0
    %2536 = vmatprep.subr.mxu0 0.0
    %2537 = vmatpush1.msra.mxu0 0.0
    %2538 = vmatprep.subr.mxu0 0.0
    %2539 = vmatpush1.msra.mxu0 0.0
    %2540 = vmatprep.subr.mxu0 0.0
    %2541 = vmatpush1.msra.mxu0 0.0
    %2542 = vmatprep.mubr.f32.mxu0 0.0
    %2543 = vmatmul.mubr.f32.gmra.mrb[0].mxu0 %v2464
    %v2544 = vpop.f32.mrb[0].mxu0
    %v2545 = vadd.f32 0.0, %v2544
    %v2546 = vpop.f32.mrb[0].mxu0
    %v2547 = vadd.f32 0.0, %v2546
    %2548 = vdwg.mxu0
    %2549 = vmatprep.subr.mxu0 %v2454
    %2550 = vmatpush1.msra.mxu0 %v2456
    %2551 = vmatprep.subr.mxu0 %v2476
    %2552 = vmatpush1.msra.mxu0 %v2473
    %2553 = vmatprep.subr.mxu0 0.0
    %2554 = vmatpush1.msra.mxu0 0.0
    %2555 = vmatprep.subr.mxu0 0.0
    %2556 = vmatpush1.msra.mxu0 0.0
    %2557 = vmatprep.subr.mxu0 0.0
    %2558 = vmatpush1.msra.mxu0 0.0
    %2559 = vmatprep.subr.mxu0 0.0
    %2560 = vmatpush1.msra.mxu0 0.0
    %2561 = vmatprep.subr.mxu0 0.0
    %2562 = vmatpush1.msra.mxu0 0.0
    %2563 = vmatprep.subr.mxu0 0.0
    %2564 = vmatpush1.msra.mxu0 0.0
    %2565 = vmatprep.subr.mxu0 0.0
    %2566 = vmatpush1.msra.mxu0 0.0
    %2567 = vmatprep.subr.mxu0 0.0
    %2568 = vmatpush1.msra.mxu0 0.0
    %2569 = vmatprep.subr.mxu0 0.0
    %2570 = vmatpush1.msra.mxu0 0.0
    %2571 = vmatprep.subr.mxu0 0.0
    %2572 = vmatpush1.msra.mxu0 0.0
    %2573 = vmatprep.subr.mxu0 0.0
    %2574 = vmatpush1.msra.mxu0 0.0
    %2575 = vmatprep.subr.mxu0 0.0
    %2576 = vmatpush1.msra.mxu0 0.0
    %2577 = vmatprep.subr.mxu0 0.0
    %2578 = vmatpush1.msra.mxu0 0.0
    %2579 = vmatprep.subr.mxu0 0.0
    %2580 = vmatpush1.msra.mxu0 0.0
    %2581 = vmatprep.subr.mxu0 0.0
    %2582 = vmatpush1.msra.mxu0 0.0
    %2583 = vmatprep.subr.mxu0 0.0
    %2584 = vmatpush1.msra.mxu0 0.0
    %2585 = vmatprep.subr.mxu0 0.0
    %2586 = vmatpush1.msra.mxu0 0.0
    %2587 = vmatprep.subr.mxu0 0.0
    %2588 = vmatpush1.msra.mxu0 0.0
    %2589 = vmatprep.subr.mxu0 0.0
    %2590 = vmatpush1.msra.mxu0 0.0
    %2591 = vmatprep.subr.mxu0 0.0
    %2592 = vmatpush1.msra.mxu0 0.0
    %2593 = vmatprep.subr.mxu0 0.0
    %2594 = vmatpush1.msra.mxu0 0.0
    %2595 = vmatprep.subr.mxu0 0.0
    %2596 = vmatpush1.msra.mxu0 0.0
    %2597 = vmatprep.subr.mxu0 0.0
    %2598 = vmatpush1.msra.mxu0 0.0
    %2599 = vmatprep.subr.mxu0 0.0
    %2600 = vmatpush1.msra.mxu0 0.0
    %2601 = vmatprep.subr.mxu0 0.0
    %2602 = vmatpush1.msra.mxu0 0.0
    %2603 = vmatprep.subr.mxu0 0.0
    %2604 = vmatpush1.msra.mxu0 0.0
    %2605 = vmatprep.subr.mxu0 0.0
    %2606 = vmatpush1.msra.mxu0 0.0
    %2607 = vmatprep.subr.mxu0 0.0
    %2608 = vmatpush1.msra.mxu0 0.0
    %2609 = vmatprep.subr.mxu0 0.0
    %2610 = vmatpush1.msra.mxu0 0.0
    %2611 = vmatprep.subr.mxu0 0.0
    %2612 = vmatpush1.msra.mxu0 0.0
    %2613 = vmatprep.mubr.f32.mxu0 0.0
    %2614 = vmatmul.mubr.f32.gmra.mrb[0].mxu0 %v2464
    %v2615 = vpop.f32.mrb[0].mxu0
    %v2616 = vadd.f32 0.0, %v2615
    %v2617 = vpop.f32.mrb[0].mxu0
    %v2618 = vadd.f32 0.0, %v2617
    %2619 = vdwg.mxu0
    %v2620 = vld [vmem:[%s684] ss:$8 sm:$0xf]
    %v2622 = vlaneseq
    %v2623 = vshrl.u32 %v2622, 7
    %v2624 = vsub.s32 0, %v2623
    %v2625 = vrot.slane %v2620, %v2624
    %v2626 = vlaneseq
    %v2627 = vshrl.u32 %v2626, 7
    %v2628 = vsub.s32 1, %v2627
    %v2629 = vrot.slane %v2620, %v2628
    %v2630 = vlaneseq
    %v2631 = vshrl.u32 %v2630, 7
    %v2632 = vsub.s32 2, %v2631
    %v2633 = vrot.slane %v2620, %v2632
    %v2634 = vlaneseq
    %v2635 = vshrl.u32 %v2634, 7
    %v2636 = vsub.s32 3, %v2635
    %v2637 = vrot.slane %v2620, %v2636
    %v2642 = vmul.f32 %v2625, %v2545
    %v2643 = vmul.f32 %v2629, %v2547
    %v2644 = vmul.f32 %v2633, %v2616
    %v2645 = vmul.f32 %v2637, %v2618
    %v2646 = vadd.f32 %v2434, %v2642
    %v2647 = vadd.f32 %v2435, %v2643
    %v2648 = vadd.f32 %v2436, %v2644
    %v2649 = vadd.f32 %v2437, %v2645
    %2650 = vrot.lane.b32.xlu0 %v2005, 1
    %v2651 = vpop.permute.xlu0 %2650
    %2652 = vrot.lane.b32.xlu0 %v2009, 1
    %v2653 = vpop.permute.xlu0 %2652
    %2654 = vrot.lane.b32.xlu0 %v2006, 1
    %v2655 = vpop.permute.xlu0 %2654
    %2656 = vrot.lane.b32.xlu0 %v2010, 1
    %v2657 = vpop.permute.xlu0 %2656
    %2658 = vrot.lane.b32.xlu0 %v2007, 1
    %v2659 = vpop.permute.xlu0 %2658
    %2660 = vrot.lane.b32.xlu0 %v2011, 1
    %v2661 = vpop.permute.xlu0 %2660
    %2662 = vrot.lane.b32.xlu0 %v2008, 1
    %v2663 = vpop.permute.xlu0 %2662
    %2664 = vrot.lane.b32.xlu0 %v2012, 1
    %v2665 = vpop.permute.xlu0 %2664
    %v2666 = vsel %vm723, %v2659, %v2663
    %v2667 = vsel %vm723, %v2661, %v2665
    %v2668 = vsel %vm723, %v2655, %v2659
    %v2669 = vsel %vm723, %v2657, %v2661
    %v2670 = vsel %vm723, %v2651, %v2655
    %v2671 = vsel %vm723, %v2653, %v2657
    %v2672 = vsel %vm723, %v2663, %v2651
    %v2673 = vsel %vm723, %v2665, %v2653
    %v2674 = vld [vmem:[%s7 + $0x18] sm:$0xff]
    %v2676 = vsel %vm2038, %v2674, 0
    %v2679 = vsel %vm57, %v2673, 0
    %v2682 = vsel %vm57, %v2671, 0
    %v2685 = vsel %vm57, %v2669, 0
    %v2688 = vsel %vm57, %v2667, 0
    %2690 = vmatprep.subr.mxu0 %v2670
    %2691 = vmatpush1.msra.mxu0 %v2672
    %2692 = vmatprep.subr.mxu0 %v2682
    %2693 = vmatpush1.msra.mxu0 %v2679
    %2694 = vmatprep.subr.mxu0 0.0
    %2695 = vmatpush1.msra.mxu0 0.0
    %2696 = vmatprep.subr.mxu0 0.0
    %2697 = vmatpush1.msra.mxu0 0.0
    %2698 = vmatprep.subr.mxu0 0.0
    %2699 = vmatpush1.msra.mxu0 0.0
    %2700 = vmatprep.subr.mxu0 0.0
    %2701 = vmatpush1.msra.mxu0 0.0
    %2702 = vmatprep.subr.mxu0 0.0
    %2703 = vmatpush1.msra.mxu0 0.0
    %2704 = vmatprep.subr.mxu0 0.0
    %2705 = vmatpush1.msra.mxu0 0.0
    %2706 = vmatprep.subr.mxu0 0.0
    %2707 = vmatpush1.msra.mxu0 0.0
    %2708 = vmatprep.subr.mxu0 0.0
    %2709 = vmatpush1.msra.mxu0 0.0
    %2710 = vmatprep.subr.mxu0 0.0
    %2711 = vmatpush1.msra.mxu0 0.0
    %2712 = vmatprep.subr.mxu0 0.0
    %2713 = vmatpush1.msra.mxu0 0.0
    %2714 = vmatprep.subr.mxu0 0.0
    %2715 = vmatpush1.msra.mxu0 0.0
    %2716 = vmatprep.subr.mxu0 0.0
    %2717 = vmatpush1.msra.mxu0 0.0
    %2718 = vmatprep.subr.mxu0 0.0
    %2719 = vmatpush1.msra.mxu0 0.0
    %2720 = vmatprep.subr.mxu0 0.0
    %2721 = vmatpush1.msra.mxu0 0.0
    %2722 = vmatprep.subr.mxu0 0.0
    %2723 = vmatpush1.msra.mxu0 0.0
    %2724 = vmatprep.subr.mxu0 0.0
    %2725 = vmatpush1.msra.mxu0 0.0
    %2726 = vmatprep.subr.mxu0 0.0
    %2727 = vmatpush1.msra.mxu0 0.0
    %2728 = vmatprep.subr.mxu0 0.0
    %2729 = vmatpush1.msra.mxu0 0.0
    %2730 = vmatprep.subr.mxu0 0.0
    %2731 = vmatpush1.msra.mxu0 0.0
    %2732 = vmatprep.subr.mxu0 0.0
    %2733 = vmatpush1.msra.mxu0 0.0
    %2734 = vmatprep.subr.mxu0 0.0
    %2735 = vmatpush1.msra.mxu0 0.0
    %2736 = vmatprep.subr.mxu0 0.0
    %2737 = vmatpush1.msra.mxu0 0.0
    %2738 = vmatprep.subr.mxu0 0.0
    %2739 = vmatpush1.msra.mxu0 0.0
    %2740 = vmatprep.subr.mxu0 0.0
    %2741 = vmatpush1.msra.mxu0 0.0
    %2742 = vmatprep.subr.mxu0 0.0
    %2743 = vmatpush1.msra.mxu0 0.0
    %2744 = vmatprep.subr.mxu0 0.0
    %2745 = vmatpush1.msra.mxu0 0.0
    %2746 = vmatprep.subr.mxu0 0.0
    %2747 = vmatpush1.msra.mxu0 0.0
    %2748 = vmatprep.subr.mxu0 0.0
    %2749 = vmatpush1.msra.mxu0 0.0
    %2750 = vmatprep.subr.mxu0 0.0
    %2751 = vmatpush1.msra.mxu0 0.0
    %2752 = vmatprep.subr.mxu0 0.0
    %2753 = vmatpush1.msra.mxu0 0.0
    %2754 = vmatprep.mubr.f32.mxu0 0.0
    %2755 = vmatmul.mubr.f32.gmra.mrb[0].mxu0 %v2676
    %v2756 = vpop.f32.mrb[0].mxu0
    %v2757 = vadd.f32 0.0, %v2756
    %v2758 = vpop.f32.mrb[0].mxu0
    %v2759 = vadd.f32 0.0, %v2758
    %2760 = vdwg.mxu0
    %2761 = vmatprep.subr.mxu0 %v2666
    %2762 = vmatpush1.msra.mxu0 %v2668
    %2763 = vmatprep.subr.mxu0 %v2688
    %2764 = vmatpush1.msra.mxu0 %v2685
    %2765 = vmatprep.subr.mxu0 0.0
    %2766 = vmatpush1.msra.mxu0 0.0
    %2767 = vmatprep.subr.mxu0 0.0
    %2768 = vmatpush1.msra.mxu0 0.0
    %2769 = vmatprep.subr.mxu0 0.0
    %2770 = vmatpush1.msra.mxu0 0.0
    %2771 = vmatprep.subr.mxu0 0.0
    %2772 = vmatpush1.msra.mxu0 0.0
    %2773 = vmatprep.subr.mxu0 0.0
    %2774 = vmatpush1.msra.mxu0 0.0
    %2775 = vmatprep.subr.mxu0 0.0
    %2776 = vmatpush1.msra.mxu0 0.0
    %2777 = vmatprep.subr.mxu0 0.0
    %2778 = vmatpush1.msra.mxu0 0.0
    %2779 = vmatprep.subr.mxu0 0.0
    %2780 = vmatpush1.msra.mxu0 0.0
    %2781 = vmatprep.subr.mxu0 0.0
    %2782 = vmatpush1.msra.mxu0 0.0
    %2783 = vmatprep.subr.mxu0 0.0
    %2784 = vmatpush1.msra.mxu0 0.0
    %2785 = vmatprep.subr.mxu0 0.0
    %2786 = vmatpush1.msra.mxu0 0.0
    %2787 = vmatprep.subr.mxu0 0.0
    %2788 = vmatpush1.msra.mxu0 0.0
    %2789 = vmatprep.subr.mxu0 0.0
    %2790 = vmatpush1.msra.mxu0 0.0
    %2791 = vmatprep.subr.mxu0 0.0
    %2792 = vmatpush1.msra.mxu0 0.0
    %2793 = vmatprep.subr.mxu0 0.0
    %2794 = vmatpush1.msra.mxu0 0.0
    %2795 = vmatprep.subr.mxu0 0.0
    %2796 = vmatpush1.msra.mxu0 0.0
    %2797 = vmatprep.subr.mxu0 0.0
    %2798 = vmatpush1.msra.mxu0 0.0
    %2799 = vmatprep.subr.mxu0 0.0
    %2800 = vmatpush1.msra.mxu0 0.0
    %2801 = vmatprep.subr.mxu0 0.0
    %2802 = vmatpush1.msra.mxu0 0.0
    %2803 = vmatprep.subr.mxu0 0.0
    %2804 = vmatpush1.msra.mxu0 0.0
    %2805 = vmatprep.subr.mxu0 0.0
    %2806 = vmatpush1.msra.mxu0 0.0
    %2807 = vmatprep.subr.mxu0 0.0
    %2808 = vmatpush1.msra.mxu0 0.0
    %2809 = vmatprep.subr.mxu0 0.0
    %2810 = vmatpush1.msra.mxu0 0.0
    %2811 = vmatprep.subr.mxu0 0.0
    %2812 = vmatpush1.msra.mxu0 0.0
    %2813 = vmatprep.subr.mxu0 0.0
    %2814 = vmatpush1.msra.mxu0 0.0
    %2815 = vmatprep.subr.mxu0 0.0
    %2816 = vmatpush1.msra.mxu0 0.0
    %2817 = vmatprep.subr.mxu0 0.0
    %2818 = vmatpush1.msra.mxu0 0.0
    %2819 = vmatprep.subr.mxu0 0.0
    %2820 = vmatpush1.msra.mxu0 0.0
    %2821 = vmatprep.subr.mxu0 0.0
    %2822 = vmatpush1.msra.mxu0 0.0
    %2823 = vmatprep.subr.mxu0 0.0
    %2824 = vmatpush1.msra.mxu0 0.0
    %2825 = vmatprep.mubr.f32.mxu0 0.0
    %2826 = vmatmul.mubr.f32.gmra.mrb[0].mxu0 %v2676
    %v2827 = vpop.f32.mrb[0].mxu0
    %v2828 = vadd.f32 0.0, %v2827
    %v2829 = vpop.f32.mrb[0].mxu0
    %v2830 = vadd.f32 0.0, %v2829
    %2831 = vdwg.mxu0
    %v2832 = vld [vmem:[%s886] ss:$8 sm:$0xf]
    %v2834 = vlaneseq
    %v2835 = vshrl.u32 %v2834, 7
    %v2836 = vsub.s32 0, %v2835
    %v2837 = vrot.slane %v2832, %v2836
    %v2838 = vlaneseq
    %v2839 = vshrl.u32 %v2838, 7
    %v2840 = vsub.s32 1, %v2839
    %v2841 = vrot.slane %v2832, %v2840
    %v2842 = vlaneseq
    %v2843 = vshrl.u32 %v2842, 7
    %v2844 = vsub.s32 2, %v2843
    %v2845 = vrot.slane %v2832, %v2844
    %v2846 = vlaneseq
    %v2847 = vshrl.u32 %v2846, 7
    %v2848 = vsub.s32 3, %v2847
    %v2849 = vrot.slane %v2832, %v2848
    %v2854 = vmul.f32 %v2837, %v2757
    %v2855 = vmul.f32 %v2841, %v2759
    %v2856 = vmul.f32 %v2845, %v2828
    %v2857 = vmul.f32 %v2849, %v2830
    %v2858 = vadd.f32 %v2646, %v2854
    %v2859 = vadd.f32 %v2647, %v2855
    %v2860 = vadd.f32 %v2648, %v2856
    %v2861 = vadd.f32 %v2649, %v2857
    %v2862 = vld [vmem:[%s7 + $0x20] sm:$0xff]
    %v2864 = vsel %vm2038, %v2862, 0
    %v2867 = vsel %vm57, %v2009, 0
    %v2870 = vsel %vm57, %v2010, 0
    %v2873 = vsel %vm57, %v2011, 0
    %v2876 = vsel %vm57, %v2012, 0
    %2878 = vmatprep.subr.mxu0 %v2006
    %2879 = vmatpush1.msra.mxu0 %v2005
    %2880 = vmatprep.subr.mxu0 %v2870
    %2881 = vmatpush1.msra.mxu0 %v2867
    %2882 = vmatprep.subr.mxu0 0.0
    %2883 = vmatpush1.msra.mxu0 0.0
    %2884 = vmatprep.subr.mxu0 0.0
    %2885 = vmatpush1.msra.mxu0 0.0
    %2886 = vmatprep.subr.mxu0 0.0
    %2887 = vmatpush1.msra.mxu0 0.0
    %2888 = vmatprep.subr.mxu0 0.0
    %2889 = vmatpush1.msra.mxu0 0.0
    %2890 = vmatprep.subr.mxu0 0.0
    %2891 = vmatpush1.msra.mxu0 0.0
    %2892 = vmatprep.subr.mxu0 0.0
    %2893 = vmatpush1.msra.mxu0 0.0
    %2894 = vmatprep.subr.mxu0 0.0
    %2895 = vmatpush1.msra.mxu0 0.0
    %2896 = vmatprep.subr.mxu0 0.0
    %2897 = vmatpush1.msra.mxu0 0.0
    %2898 = vmatprep.subr.mxu0 0.0
    %2899 = vmatpush1.msra.mxu0 0.0
    %2900 = vmatprep.subr.mxu0 0.0
    %2901 = vmatpush1.msra.mxu0 0.0
    %2902 = vmatprep.subr.mxu0 0.0
    %2903 = vmatpush1.msra.mxu0 0.0
    %2904 = vmatprep.subr.mxu0 0.0
    %2905 = vmatpush1.msra.mxu0 0.0
    %2906 = vmatprep.subr.mxu0 0.0
    %2907 = vmatpush1.msra.mxu0 0.0
    %2908 = vmatprep.subr.mxu0 0.0
    %2909 = vmatpush1.msra.mxu0 0.0
    %2910 = vmatprep.subr.mxu0 0.0
    %2911 = vmatpush1.msra.mxu0 0.0
    %2912 = vmatprep.subr.mxu0 0.0
    %2913 = vmatpush1.msra.mxu0 0.0
    %2914 = vmatprep.subr.mxu0 0.0
    %2915 = vmatpush1.msra.mxu0 0.0
    %2916 = vmatprep.subr.mxu0 0.0
    %2917 = vmatpush1.msra.mxu0 0.0
    %2918 = vmatprep.subr.mxu0 0.0
    %2919 = vmatpush1.msra.mxu0 0.0
    %2920 = vmatprep.subr.mxu0 0.0
    %2921 = vmatpush1.msra.mxu0 0.0
    %2922 = vmatprep.subr.mxu0 0.0
    %2923 = vmatpush1.msra.mxu0 0.0
    %2924 = vmatprep.subr.mxu0 0.0
    %2925 = vmatpush1.msra.mxu0 0.0
    %2926 = vmatprep.subr.mxu0 0.0
    %2927 = vmatpush1.msra.mxu0 0.0
    %2928 = vmatprep.subr.mxu0 0.0
    %2929 = vmatpush1.msra.mxu0 0.0
    %2930 = vmatprep.subr.mxu0 0.0
    %2931 = vmatpush1.msra.mxu0 0.0
    %2932 = vmatprep.subr.mxu0 0.0
    %2933 = vmatpush1.msra.mxu0 0.0
    %2934 = vmatprep.subr.mxu0 0.0
    %2935 = vmatpush1.msra.mxu0 0.0
    %2936 = vmatprep.subr.mxu0 0.0
    %2937 = vmatpush1.msra.mxu0 0.0
    %2938 = vmatprep.subr.mxu0 0.0
    %2939 = vmatpush1.msra.mxu0 0.0
    %2940 = vmatprep.subr.mxu0 0.0
    %2941 = vmatpush1.msra.mxu0 0.0
    %2942 = vmatprep.mubr.f32.mxu0 0.0
    %2943 = vmatmul.mubr.f32.gmra.mrb[0].mxu0 %v2864
    %v2944 = vpop.f32.mrb[0].mxu0
    %v2945 = vadd.f32 0.0, %v2944
    %v2946 = vpop.f32.mrb[0].mxu0
    %v2947 = vadd.f32 0.0, %v2946
    %2948 = vdwg.mxu0
    %2949 = vmatprep.subr.mxu0 %v2008
    %2950 = vmatpush1.msra.mxu0 %v2007
    %2951 = vmatprep.subr.mxu0 %v2876
    %2952 = vmatpush1.msra.mxu0 %v2873
    %2953 = vmatprep.subr.mxu0 0.0
    %2954 = vmatpush1.msra.mxu0 0.0
    %2955 = vmatprep.subr.mxu0 0.0
    %2956 = vmatpush1.msra.mxu0 0.0
    %2957 = vmatprep.subr.mxu0 0.0
    %2958 = vmatpush1.msra.mxu0 0.0
    %2959 = vmatprep.subr.mxu0 0.0
    %2960 = vmatpush1.msra.mxu0 0.0
    %2961 = vmatprep.subr.mxu0 0.0
    %2962 = vmatpush1.msra.mxu0 0.0
    %2963 = vmatprep.subr.mxu0 0.0
    %2964 = vmatpush1.msra.mxu0 0.0
    %2965 = vmatprep.subr.mxu0 0.0
    %2966 = vmatpush1.msra.mxu0 0.0
    %2967 = vmatprep.subr.mxu0 0.0
    %2968 = vmatpush1.msra.mxu0 0.0
    %2969 = vmatprep.subr.mxu0 0.0
    %2970 = vmatpush1.msra.mxu0 0.0
    %2971 = vmatprep.subr.mxu0 0.0
    %2972 = vmatpush1.msra.mxu0 0.0
    %2973 = vmatprep.subr.mxu0 0.0
    %2974 = vmatpush1.msra.mxu0 0.0
    %2975 = vmatprep.subr.mxu0 0.0
    %2976 = vmatpush1.msra.mxu0 0.0
    %2977 = vmatprep.subr.mxu0 0.0
    %2978 = vmatpush1.msra.mxu0 0.0
    %2979 = vmatprep.subr.mxu0 0.0
    %2980 = vmatpush1.msra.mxu0 0.0
    %2981 = vmatprep.subr.mxu0 0.0
    %2982 = vmatpush1.msra.mxu0 0.0
    %2983 = vmatprep.subr.mxu0 0.0
    %2984 = vmatpush1.msra.mxu0 0.0
    %2985 = vmatprep.subr.mxu0 0.0
    %2986 = vmatpush1.msra.mxu0 0.0
    %2987 = vmatprep.subr.mxu0 0.0
    %2988 = vmatpush1.msra.mxu0 0.0
    %2989 = vmatprep.subr.mxu0 0.0
    %2990 = vmatpush1.msra.mxu0 0.0
    %2991 = vmatprep.subr.mxu0 0.0
    %2992 = vmatpush1.msra.mxu0 0.0
    %2993 = vmatprep.subr.mxu0 0.0
    %2994 = vmatpush1.msra.mxu0 0.0
    %2995 = vmatprep.subr.mxu0 0.0
    %2996 = vmatpush1.msra.mxu0 0.0
    %2997 = vmatprep.subr.mxu0 0.0
    %2998 = vmatpush1.msra.mxu0 0.0
    %2999 = vmatprep.subr.mxu0 0.0
    %3000 = vmatpush1.msra.mxu0 0.0
    %3001 = vmatprep.subr.mxu0 0.0
    %3002 = vmatpush1.msra.mxu0 0.0
    %3003 = vmatprep.subr.mxu0 0.0
    %3004 = vmatpush1.msra.mxu0 0.0
    %3005 = vmatprep.subr.mxu0 0.0
    %3006 = vmatpush1.msra.mxu0 0.0
    %3007 = vmatprep.subr.mxu0 0.0
    %3008 = vmatpush1.msra.mxu0 0.0
    %3009 = vmatprep.subr.mxu0 0.0
    %3010 = vmatpush1.msra.mxu0 0.0
    %3011 = vmatprep.subr.mxu0 0.0
    %3012 = vmatpush1.msra.mxu0 0.0
    %3013 = vmatprep.mubr.f32.mxu0 0.0
    %3014 = vmatmul.mubr.f32.gmra.mrb[0].mxu0 %v2864
    %v3015 = vpop.f32.mrb[0].mxu0
    %v3016 = vadd.f32 0.0, %v3015
    %v3017 = vpop.f32.mrb[0].mxu0
    %v3018 = vadd.f32 0.0, %v3017
    %3019 = vdwg.mxu0
    %v3020 = vadd.f32 %v2858, %v2945
    %v3021 = vadd.f32 %v2859, %v2947
    %v3022 = vadd.f32 %v2860, %v3016
    %v3023 = vadd.f32 %v2861, %v3018
    %3024 = vrot.lane.b32.xlu0 %v2005, 127
    %v3025 = vpop.permute.xlu0 %3024
    %3026 = vrot.lane.b32.xlu0 %v2009, 127
    %v3027 = vpop.permute.xlu0 %3026
    %3028 = vrot.lane.b32.xlu0 %v2006, 127
    %v3029 = vpop.permute.xlu0 %3028
    %3030 = vrot.lane.b32.xlu0 %v2010, 127
    %v3031 = vpop.permute.xlu0 %3030
    %3032 = vrot.lane.b32.xlu0 %v2007, 127
    %v3033 = vpop.permute.xlu0 %3032
    %3034 = vrot.lane.b32.xlu0 %v2011, 127
    %v3035 = vpop.permute.xlu0 %3034
    %3036 = vrot.lane.b32.xlu0 %v2008, 127
    %v3037 = vpop.permute.xlu0 %3036
    %3038 = vrot.lane.b32.xlu0 %v2012, 127
    %v3039 = vpop.permute.xlu0 %3038
    %v3040 = vsel %vm1087, %v3033, %v3037
    %v3041 = vsel %vm1087, %v3035, %v3039
    %v3042 = vsel %vm1087, %v3029, %v3033
    %v3043 = vsel %vm1087, %v3031, %v3035
    %v3044 = vsel %vm1087, %v3025, %v3029
    %v3045 = vsel %vm1087, %v3027, %v3031
    %v3046 = vsel %vm1087, %v3037, %v3025
    %v3047 = vsel %vm1087, %v3039, %v3027
    %v3048 = vld [vmem:[%s7 + $0x28] sm:$0xff]
    %v3050 = vsel %vm2038, %v3048, 0
    %v3053 = vsel %vm57, %v3045, 0
    %v3056 = vsel %vm57, %v3043, 0
    %v3059 = vsel %vm57, %v3041, 0
    %v3062 = vsel %vm57, %v3047, 0
    %3064 = vmatprep.subr.mxu0 %v3042
    %3065 = vmatpush1.msra.mxu0 %v3044
    %3066 = vmatprep.subr.mxu0 %v3056
    %3067 = vmatpush1.msra.mxu0 %v3053
    %3068 = vmatprep.subr.mxu0 0.0
    %3069 = vmatpush1.msra.mxu0 0.0
    %3070 = vmatprep.subr.mxu0 0.0
    %3071 = vmatpush1.msra.mxu0 0.0
    %3072 = vmatprep.subr.mxu0 0.0
    %3073 = vmatpush1.msra.mxu0 0.0
    %3074 = vmatprep.subr.mxu0 0.0
    %3075 = vmatpush1.msra.mxu0 0.0
    %3076 = vmatprep.subr.mxu0 0.0
    %3077 = vmatpush1.msra.mxu0 0.0
    %3078 = vmatprep.subr.mxu0 0.0
    %3079 = vmatpush1.msra.mxu0 0.0
    %3080 = vmatprep.subr.mxu0 0.0
    %3081 = vmatpush1.msra.mxu0 0.0
    %3082 = vmatprep.subr.mxu0 0.0
    %3083 = vmatpush1.msra.mxu0 0.0
    %3084 = vmatprep.subr.mxu0 0.0
    %3085 = vmatpush1.msra.mxu0 0.0
    %3086 = vmatprep.subr.mxu0 0.0
    %3087 = vmatpush1.msra.mxu0 0.0
    %3088 = vmatprep.subr.mxu0 0.0
    %3089 = vmatpush1.msra.mxu0 0.0
    %3090 = vmatprep.subr.mxu0 0.0
    %3091 = vmatpush1.msra.mxu0 0.0
    %3092 = vmatprep.subr.mxu0 0.0
    %3093 = vmatpush1.msra.mxu0 0.0
    %3094 = vmatprep.subr.mxu0 0.0
    %3095 = vmatpush1.msra.mxu0 0.0
    %3096 = vmatprep.subr.mxu0 0.0
    %3097 = vmatpush1.msra.mxu0 0.0
    %3098 = vmatprep.subr.mxu0 0.0
    %3099 = vmatpush1.msra.mxu0 0.0
    %3100 = vmatprep.subr.mxu0 0.0
    %3101 = vmatpush1.msra.mxu0 0.0
    %3102 = vmatprep.subr.mxu0 0.0
    %3103 = vmatpush1.msra.mxu0 0.0
    %3104 = vmatprep.subr.mxu0 0.0
    %3105 = vmatpush1.msra.mxu0 0.0
    %3106 = vmatprep.subr.mxu0 0.0
    %3107 = vmatpush1.msra.mxu0 0.0
    %3108 = vmatprep.subr.mxu0 0.0
    %3109 = vmatpush1.msra.mxu0 0.0
    %3110 = vmatprep.subr.mxu0 0.0
    %3111 = vmatpush1.msra.mxu0 0.0
    %3112 = vmatprep.subr.mxu0 0.0
    %3113 = vmatpush1.msra.mxu0 0.0
    %3114 = vmatprep.subr.mxu0 0.0
    %3115 = vmatpush1.msra.mxu0 0.0
    %3116 = vmatprep.subr.mxu0 0.0
    %3117 = vmatpush1.msra.mxu0 0.0
    %3118 = vmatprep.subr.mxu0 0.0
    %3119 = vmatpush1.msra.mxu0 0.0
    %3120 = vmatprep.subr.mxu0 0.0
    %3121 = vmatpush1.msra.mxu0 0.0
    %3122 = vmatprep.subr.mxu0 0.0
    %3123 = vmatpush1.msra.mxu0 0.0
    %3124 = vmatprep.subr.mxu0 0.0
    %3125 = vmatpush1.msra.mxu0 0.0
    %3126 = vmatprep.subr.mxu0 0.0
    %3127 = vmatpush1.msra.mxu0 0.0
    %3128 = vmatprep.mubr.f32.mxu0 0.0
    %3129 = vmatmul.mubr.f32.gmra.mrb[0].mxu0 %v3050
    %v3130 = vpop.f32.mrb[0].mxu0
    %v3131 = vadd.f32 0.0, %v3130
    %v3132 = vpop.f32.mrb[0].mxu0
    %v3133 = vadd.f32 0.0, %v3132
    %3134 = vdwg.mxu0
    %3135 = vmatprep.subr.mxu0 %v3046
    %3136 = vmatpush1.msra.mxu0 %v3040
    %3137 = vmatprep.subr.mxu0 %v3062
    %3138 = vmatpush1.msra.mxu0 %v3059
    %3139 = vmatprep.subr.mxu0 0.0
    %3140 = vmatpush1.msra.mxu0 0.0
    %3141 = vmatprep.subr.mxu0 0.0
    %3142 = vmatpush1.msra.mxu0 0.0
    %3143 = vmatprep.subr.mxu0 0.0
    %3144 = vmatpush1.msra.mxu0 0.0
    %3145 = vmatprep.subr.mxu0 0.0
    %3146 = vmatpush1.msra.mxu0 0.0
    %3147 = vmatprep.subr.mxu0 0.0
    %3148 = vmatpush1.msra.mxu0 0.0
    %3149 = vmatprep.subr.mxu0 0.0
    %3150 = vmatpush1.msra.mxu0 0.0
    %3151 = vmatprep.subr.mxu0 0.0
    %3152 = vmatpush1.msra.mxu0 0.0
    %3153 = vmatprep.subr.mxu0 0.0
    %3154 = vmatpush1.msra.mxu0 0.0
    %3155 = vmatprep.subr.mxu0 0.0
    %3156 = vmatpush1.msra.mxu0 0.0
    %3157 = vmatprep.subr.mxu0 0.0
    %3158 = vmatpush1.msra.mxu0 0.0
    %3159 = vmatprep.subr.mxu0 0.0
    %3160 = vmatpush1.msra.mxu0 0.0
    %3161 = vmatprep.subr.mxu0 0.0
    %3162 = vmatpush1.msra.mxu0 0.0
    %3163 = vmatprep.subr.mxu0 0.0
    %3164 = vmatpush1.msra.mxu0 0.0
    %3165 = vmatprep.subr.mxu0 0.0
    %3166 = vmatpush1.msra.mxu0 0.0
    %3167 = vmatprep.subr.mxu0 0.0
    %3168 = vmatpush1.msra.mxu0 0.0
    %3169 = vmatprep.subr.mxu0 0.0
    %3170 = vmatpush1.msra.mxu0 0.0
    %3171 = vmatprep.subr.mxu0 0.0
    %3172 = vmatpush1.msra.mxu0 0.0
    %3173 = vmatprep.subr.mxu0 0.0
    %3174 = vmatpush1.msra.mxu0 0.0
    %3175 = vmatprep.subr.mxu0 0.0
    %3176 = vmatpush1.msra.mxu0 0.0
    %3177 = vmatprep.subr.mxu0 0.0
    %3178 = vmatpush1.msra.mxu0 0.0
    %3179 = vmatprep.subr.mxu0 0.0
    %3180 = vmatpush1.msra.mxu0 0.0
    %3181 = vmatprep.subr.mxu0 0.0
    %3182 = vmatpush1.msra.mxu0 0.0
    %3183 = vmatprep.subr.mxu0 0.0
    %3184 = vmatpush1.msra.mxu0 0.0
    %3185 = vmatprep.subr.mxu0 0.0
    %3186 = vmatpush1.msra.mxu0 0.0
    %3187 = vmatprep.subr.mxu0 0.0
    %3188 = vmatpush1.msra.mxu0 0.0
    %3189 = vmatprep.subr.mxu0 0.0
    %3190 = vmatpush1.msra.mxu0 0.0
    %3191 = vmatprep.subr.mxu0 0.0
    %3192 = vmatpush1.msra.mxu0 0.0
    %3193 = vmatprep.subr.mxu0 0.0
    %3194 = vmatpush1.msra.mxu0 0.0
    %3195 = vmatprep.subr.mxu0 0.0
    %3196 = vmatpush1.msra.mxu0 0.0
    %3197 = vmatprep.subr.mxu0 0.0
    %3198 = vmatpush1.msra.mxu0 0.0
    %3199 = vmatprep.mubr.f32.mxu0 0.0
    %3200 = vmatmul.mubr.f32.gmra.mrb[0].mxu0 %v3050
    %v3201 = vpop.f32.mrb[0].mxu0
    %v3202 = vadd.f32 0.0, %v3201
    %v3203 = vpop.f32.mrb[0].mxu0
    %v3204 = vadd.f32 0.0, %v3203
    %3205 = vdwg.mxu0
    %v3206 = vld [vmem:[%s1250] ss:$8 sm:$0xf]
    %v3208 = vlaneseq
    %v3209 = vshrl.u32 %v3208, 7
    %v3210 = vsub.s32 0, %v3209
    %v3211 = vrot.slane %v3206, %v3210
    %v3212 = vlaneseq
    %v3213 = vshrl.u32 %v3212, 7
    %v3214 = vsub.s32 1, %v3213
    %v3215 = vrot.slane %v3206, %v3214
    %v3216 = vlaneseq
    %v3217 = vshrl.u32 %v3216, 7
    %v3218 = vsub.s32 2, %v3217
    %v3219 = vrot.slane %v3206, %v3218
    %v3220 = vlaneseq
    %v3221 = vshrl.u32 %v3220, 7
    %v3222 = vsub.s32 3, %v3221
    %v3223 = vrot.slane %v3206, %v3222
    %v3228 = vmul.f32 %v3211, %v3131
    %v3229 = vmul.f32 %v3215, %v3133
    %v3230 = vmul.f32 %v3219, %v3202
    %v3231 = vmul.f32 %v3223, %v3204
    %v3232 = vadd.f32 %v3020, %v3228
    %v3233 = vadd.f32 %v3021, %v3229
    %v3234 = vadd.f32 %v3022, %v3230
    %v3235 = vadd.f32 %v3023, %v3231
    %3236 = vrot.lane.b32.xlu0 %v2005, 113
    %v3237 = vpop.permute.xlu0 %3236
    %3238 = vrot.lane.b32.xlu0 %v2009, 113
    %v3239 = vpop.permute.xlu0 %3238
    %3240 = vrot.lane.b32.xlu0 %v2006, 113
    %v3241 = vpop.permute.xlu0 %3240
    %3242 = vrot.lane.b32.xlu0 %v2010, 113
    %v3243 = vpop.permute.xlu0 %3242
    %3244 = vrot.lane.b32.xlu0 %v2007, 113
    %v3245 = vpop.permute.xlu0 %3244
    %3246 = vrot.lane.b32.xlu0 %v2011, 113
    %v3247 = vpop.permute.xlu0 %3246
    %3248 = vrot.lane.b32.xlu0 %v2008, 113
    %v3249 = vpop.permute.xlu0 %3248
    %3250 = vrot.lane.b32.xlu0 %v2012, 113
    %v3251 = vpop.permute.xlu0 %3250
    %v3252 = vsel %vm1289, %v3245, %v3249
    %v3253 = vsel %vm1289, %v3247, %v3251
    %v3254 = vsel %vm1289, %v3241, %v3245
    %v3255 = vsel %vm1289, %v3243, %v3247
    %v3256 = vsel %vm1289, %v3237, %v3241
    %v3257 = vsel %vm1289, %v3239, %v3243
    %v3258 = vsel %vm1289, %v3249, %v3237
    %v3259 = vsel %vm1289, %v3251, %v3239
    %v3260 = vld [vmem:[%s7 + $0x30] sm:$0xff]
    %v3262 = vsel %vm2038, %v3260, 0
    %v3265 = vsel %vm57, %v3257, 0
    %v3268 = vsel %vm57, %v3255, 0
    %v3271 = vsel %vm57, %v3253, 0
    %v3274 = vsel %vm57, %v3259, 0
    %3276 = vmatprep.subr.mxu0 %v3254
    %3277 = vmatpush1.msra.mxu0 %v3256
    %3278 = vmatprep.subr.mxu0 %v3268
    %3279 = vmatpush1.msra.mxu0 %v3265
    %3280 = vmatprep.subr.mxu0 0.0
    %3281 = vmatpush1.msra.mxu0 0.0
    %3282 = vmatprep.subr.mxu0 0.0
    %3283 = vmatpush1.msra.mxu0 0.0
    %3284 = vmatprep.subr.mxu0 0.0
    %3285 = vmatpush1.msra.mxu0 0.0
    %3286 = vmatprep.subr.mxu0 0.0
    %3287 = vmatpush1.msra.mxu0 0.0
    %3288 = vmatprep.subr.mxu0 0.0
    %3289 = vmatpush1.msra.mxu0 0.0
    %3290 = vmatprep.subr.mxu0 0.0
    %3291 = vmatpush1.msra.mxu0 0.0
    %3292 = vmatprep.subr.mxu0 0.0
    %3293 = vmatpush1.msra.mxu0 0.0
    %3294 = vmatprep.subr.mxu0 0.0
    %3295 = vmatpush1.msra.mxu0 0.0
    %3296 = vmatprep.subr.mxu0 0.0
    %3297 = vmatpush1.msra.mxu0 0.0
    %3298 = vmatprep.subr.mxu0 0.0
    %3299 = vmatpush1.msra.mxu0 0.0
    %3300 = vmatprep.subr.mxu0 0.0
    %3301 = vmatpush1.msra.mxu0 0.0
    %3302 = vmatprep.subr.mxu0 0.0
    %3303 = vmatpush1.msra.mxu0 0.0
    %3304 = vmatprep.subr.mxu0 0.0
    %3305 = vmatpush1.msra.mxu0 0.0
    %3306 = vmatprep.subr.mxu0 0.0
    %3307 = vmatpush1.msra.mxu0 0.0
    %3308 = vmatprep.subr.mxu0 0.0
    %3309 = vmatpush1.msra.mxu0 0.0
    %3310 = vmatprep.subr.mxu0 0.0
    %3311 = vmatpush1.msra.mxu0 0.0
    %3312 = vmatprep.subr.mxu0 0.0
    %3313 = vmatpush1.msra.mxu0 0.0
    %3314 = vmatprep.subr.mxu0 0.0
    %3315 = vmatpush1.msra.mxu0 0.0
    %3316 = vmatprep.subr.mxu0 0.0
    %3317 = vmatpush1.msra.mxu0 0.0
    %3318 = vmatprep.subr.mxu0 0.0
    %3319 = vmatpush1.msra.mxu0 0.0
    %3320 = vmatprep.subr.mxu0 0.0
    %3321 = vmatpush1.msra.mxu0 0.0
    %3322 = vmatprep.subr.mxu0 0.0
    %3323 = vmatpush1.msra.mxu0 0.0
    %3324 = vmatprep.subr.mxu0 0.0
    %3325 = vmatpush1.msra.mxu0 0.0
    %3326 = vmatprep.subr.mxu0 0.0
    %3327 = vmatpush1.msra.mxu0 0.0
    %3328 = vmatprep.subr.mxu0 0.0
    %3329 = vmatpush1.msra.mxu0 0.0
    %3330 = vmatprep.subr.mxu0 0.0
    %3331 = vmatpush1.msra.mxu0 0.0
    %3332 = vmatprep.subr.mxu0 0.0
    %3333 = vmatpush1.msra.mxu0 0.0
    %3334 = vmatprep.subr.mxu0 0.0
    %3335 = vmatpush1.msra.mxu0 0.0
    %3336 = vmatprep.subr.mxu0 0.0
    %3337 = vmatpush1.msra.mxu0 0.0
    %3338 = vmatprep.subr.mxu0 0.0
    %3339 = vmatpush1.msra.mxu0 0.0
    %3340 = vmatprep.mubr.f32.mxu0 0.0
    %3341 = vmatmul.mubr.f32.gmra.mrb[0].mxu0 %v3262
    %v3342 = vpop.f32.mrb[0].mxu0
    %v3343 = vadd.f32 0.0, %v3342
    %v3344 = vpop.f32.mrb[0].mxu0
    %v3345 = vadd.f32 0.0, %v3344
    %3346 = vdwg.mxu0
    %3347 = vmatprep.subr.mxu0 %v3258
    %3348 = vmatpush1.msra.mxu0 %v3252
    %3349 = vmatprep.subr.mxu0 %v3274
    %3350 = vmatpush1.msra.mxu0 %v3271
    %3351 = vmatprep.subr.mxu0 0.0
    %3352 = vmatpush1.msra.mxu0 0.0
    %3353 = vmatprep.subr.mxu0 0.0
    %3354 = vmatpush1.msra.mxu0 0.0
    %3355 = vmatprep.subr.mxu0 0.0
    %3356 = vmatpush1.msra.mxu0 0.0
    %3357 = vmatprep.subr.mxu0 0.0
    %3358 = vmatpush1.msra.mxu0 0.0
    %3359 = vmatprep.subr.mxu0 0.0
    %3360 = vmatpush1.msra.mxu0 0.0
    %3361 = vmatprep.subr.mxu0 0.0
    %3362 = vmatpush1.msra.mxu0 0.0
    %3363 = vmatprep.subr.mxu0 0.0
    %3364 = vmatpush1.msra.mxu0 0.0
    %3365 = vmatprep.subr.mxu0 0.0
    %3366 = vmatpush1.msra.mxu0 0.0
    %3367 = vmatprep.subr.mxu0 0.0
    %3368 = vmatpush1.msra.mxu0 0.0
    %3369 = vmatprep.subr.mxu0 0.0
    %3370 = vmatpush1.msra.mxu0 0.0
    %3371 = vmatprep.subr.mxu0 0.0
    %3372 = vmatpush1.msra.mxu0 0.0
    %3373 = vmatprep.subr.mxu0 0.0
    %3374 = vmatpush1.msra.mxu0 0.0
    %3375 = vmatprep.subr.mxu0 0.0
    %3376 = vmatpush1.msra.mxu0 0.0
    %3377 = vmatprep.subr.mxu0 0.0
    %3378 = vmatpush1.msra.mxu0 0.0
    %3379 = vmatprep.subr.mxu0 0.0
    %3380 = vmatpush1.msra.mxu0 0.0
    %3381 = vmatprep.subr.mxu0 0.0
    %3382 = vmatpush1.msra.mxu0 0.0
    %3383 = vmatprep.subr.mxu0 0.0
    %3384 = vmatpush1.msra.mxu0 0.0
    %3385 = vmatprep.subr.mxu0 0.0
    %3386 = vmatpush1.msra.mxu0 0.0
    %3387 = vmatprep.subr.mxu0 0.0
    %3388 = vmatpush1.msra.mxu0 0.0
    %3389 = vmatprep.subr.mxu0 0.0
    %3390 = vmatpush1.msra.mxu0 0.0
    %3391 = vmatprep.subr.mxu0 0.0
    %3392 = vmatpush1.msra.mxu0 0.0
    %3393 = vmatprep.subr.mxu0 0.0
    %3394 = vmatpush1.msra.mxu0 0.0
    %3395 = vmatprep.subr.mxu0 0.0
    %3396 = vmatpush1.msra.mxu0 0.0
    %3397 = vmatprep.subr.mxu0 0.0
    %3398 = vmatpush1.msra.mxu0 0.0
    %3399 = vmatprep.subr.mxu0 0.0
    %3400 = vmatpush1.msra.mxu0 0.0
    %3401 = vmatprep.subr.mxu0 0.0
    %3402 = vmatpush1.msra.mxu0 0.0
    %3403 = vmatprep.subr.mxu0 0.0
    %3404 = vmatpush1.msra.mxu0 0.0
    %3405 = vmatprep.subr.mxu0 0.0
    %3406 = vmatpush1.msra.mxu0 0.0
    %3407 = vmatprep.subr.mxu0 0.0
    %3408 = vmatpush1.msra.mxu0 0.0
    %3409 = vmatprep.subr.mxu0 0.0
    %3410 = vmatpush1.msra.mxu0 0.0
    %3411 = vmatprep.mubr.f32.mxu0 0.0
    %3412 = vmatmul.mubr.f32.gmra.mrb[0].mxu0 %v3262
    %v3413 = vpop.f32.mrb[0].mxu0
    %v3414 = vadd.f32 0.0, %v3413
    %v3415 = vpop.f32.mrb[0].mxu0
    %v3416 = vadd.f32 0.0, %v3415
    %3417 = vdwg.mxu0
    %v3418 = vld [vmem:[%s1452] ss:$8 sm:$0xf]
    %v3420 = vlaneseq
    %v3421 = vshrl.u32 %v3420, 7
    %v3422 = vsub.s32 0, %v3421
    %v3423 = vrot.slane %v3418, %v3422
    %v3424 = vlaneseq
    %v3425 = vshrl.u32 %v3424, 7
    %v3426 = vsub.s32 1, %v3425
    %v3427 = vrot.slane %v3418, %v3426
    %v3428 = vlaneseq
    %v3429 = vshrl.u32 %v3428, 7
    %v3430 = vsub.s32 2, %v3429
    %v3431 = vrot.slane %v3418, %v3430
    %v3432 = vlaneseq
    %v3433 = vshrl.u32 %v3432, 7
    %v3434 = vsub.s32 3, %v3433
    %v3435 = vrot.slane %v3418, %v3434
    %v3440 = vmul.f32 %v3423, %v3343
    %v3441 = vmul.f32 %v3427, %v3345
    %v3442 = vmul.f32 %v3431, %v3414
    %v3443 = vmul.f32 %v3435, %v3416
    %v3444 = vadd.f32 %v3232, %v3440
    %v3445 = vadd.f32 %v3233, %v3441
    %v3446 = vadd.f32 %v3234, %v3442
    %v3447 = vadd.f32 %v3235, %v3443
    %3448 = vrot.lane.b32.xlu0 %v2005, 112
    %v3449 = vpop.permute.xlu0 %3448
    %3450 = vrot.lane.b32.xlu0 %v2009, 112
    %v3451 = vpop.permute.xlu0 %3450
    %3452 = vrot.lane.b32.xlu0 %v2006, 112
    %v3453 = vpop.permute.xlu0 %3452
    %3454 = vrot.lane.b32.xlu0 %v2010, 112
    %v3455 = vpop.permute.xlu0 %3454
    %3456 = vrot.lane.b32.xlu0 %v2007, 112
    %v3457 = vpop.permute.xlu0 %3456
    %3458 = vrot.lane.b32.xlu0 %v2011, 112
    %v3459 = vpop.permute.xlu0 %3458
    %3460 = vrot.lane.b32.xlu0 %v2008, 112
    %v3461 = vpop.permute.xlu0 %3460
    %3462 = vrot.lane.b32.xlu0 %v2012, 112
    %v3463 = vpop.permute.xlu0 %3462
    %v3464 = vsel %vm1491, %v3457, %v3461
    %v3465 = vsel %vm1491, %v3459, %v3463
    %v3466 = vsel %vm1491, %v3453, %v3457
    %v3467 = vsel %vm1491, %v3455, %v3459
    %v3468 = vsel %vm1491, %v3449, %v3453
    %v3469 = vsel %vm1491, %v3451, %v3455
    %v3470 = vsel %vm1491, %v3461, %v3449
    %v3471 = vsel %vm1491, %v3463, %v3451
    %v3472 = vld [vmem:[%s7 + $0x38] sm:$0xff]
    %v3474 = vsel %vm2038, %v3472, 0
    %v3477 = vsel %vm57, %v3469, 0
    %v3480 = vsel %vm57, %v3467, 0
    %v3483 = vsel %vm57, %v3465, 0
    %v3486 = vsel %vm57, %v3471, 0
    %3488 = vmatprep.subr.mxu0 %v3466
    %3489 = vmatpush1.msra.mxu0 %v3468
    %3490 = vmatprep.subr.mxu0 %v3480
    %3491 = vmatpush1.msra.mxu0 %v3477
    %3492 = vmatprep.subr.mxu0 0.0
    %3493 = vmatpush1.msra.mxu0 0.0
    %3494 = vmatprep.subr.mxu0 0.0
    %3495 = vmatpush1.msra.mxu0 0.0
    %3496 = vmatprep.subr.mxu0 0.0
    %3497 = vmatpush1.msra.mxu0 0.0
    %3498 = vmatprep.subr.mxu0 0.0
    %3499 = vmatpush1.msra.mxu0 0.0
    %3500 = vmatprep.subr.mxu0 0.0
    %3501 = vmatpush1.msra.mxu0 0.0
    %3502 = vmatprep.subr.mxu0 0.0
    %3503 = vmatpush1.msra.mxu0 0.0
    %3504 = vmatprep.subr.mxu0 0.0
    %3505 = vmatpush1.msra.mxu0 0.0
    %3506 = vmatprep.subr.mxu0 0.0
    %3507 = vmatpush1.msra.mxu0 0.0
    %3508 = vmatprep.subr.mxu0 0.0
    %3509 = vmatpush1.msra.mxu0 0.0
    %3510 = vmatprep.subr.mxu0 0.0
    %3511 = vmatpush1.msra.mxu0 0.0
    %3512 = vmatprep.subr.mxu0 0.0
    %3513 = vmatpush1.msra.mxu0 0.0
    %3514 = vmatprep.subr.mxu0 0.0
    %3515 = vmatpush1.msra.mxu0 0.0
    %3516 = vmatprep.subr.mxu0 0.0
    %3517 = vmatpush1.msra.mxu0 0.0
    %3518 = vmatprep.subr.mxu0 0.0
    %3519 = vmatpush1.msra.mxu0 0.0
    %3520 = vmatprep.subr.mxu0 0.0
    %3521 = vmatpush1.msra.mxu0 0.0
    %3522 = vmatprep.subr.mxu0 0.0
    %3523 = vmatpush1.msra.mxu0 0.0
    %3524 = vmatprep.subr.mxu0 0.0
    %3525 = vmatpush1.msra.mxu0 0.0
    %3526 = vmatprep.subr.mxu0 0.0
    %3527 = vmatpush1.msra.mxu0 0.0
    %3528 = vmatprep.subr.mxu0 0.0
    %3529 = vmatpush1.msra.mxu0 0.0
    %3530 = vmatprep.subr.mxu0 0.0
    %3531 = vmatpush1.msra.mxu0 0.0
    %3532 = vmatprep.subr.mxu0 0.0
    %3533 = vmatpush1.msra.mxu0 0.0
    %3534 = vmatprep.subr.mxu0 0.0
    %3535 = vmatpush1.msra.mxu0 0.0
    %3536 = vmatprep.subr.mxu0 0.0
    %3537 = vmatpush1.msra.mxu0 0.0
    %3538 = vmatprep.subr.mxu0 0.0
    %3539 = vmatpush1.msra.mxu0 0.0
    %3540 = vmatprep.subr.mxu0 0.0
    %3541 = vmatpush1.msra.mxu0 0.0
    %3542 = vmatprep.subr.mxu0 0.0
    %3543 = vmatpush1.msra.mxu0 0.0
    %3544 = vmatprep.subr.mxu0 0.0
    %3545 = vmatpush1.msra.mxu0 0.0
    %3546 = vmatprep.subr.mxu0 0.0
    %3547 = vmatpush1.msra.mxu0 0.0
    %3548 = vmatprep.subr.mxu0 0.0
    %3549 = vmatpush1.msra.mxu0 0.0
    %3550 = vmatprep.subr.mxu0 0.0
    %3551 = vmatpush1.msra.mxu0 0.0
    %3552 = vmatprep.mubr.f32.mxu0 0.0
    %3553 = vmatmul.mubr.f32.gmra.mrb[0].mxu0 %v3474
    %v3554 = vpop.f32.mrb[0].mxu0
    %v3555 = vadd.f32 0.0, %v3554
    %v3556 = vpop.f32.mrb[0].mxu0
    %v3557 = vadd.f32 0.0, %v3556
    %3558 = vdwg.mxu0
    %3559 = vmatprep.subr.mxu0 %v3470
    %3560 = vmatpush1.msra.mxu0 %v3464
    %3561 = vmatprep.subr.mxu0 %v3486
    %3562 = vmatpush1.msra.mxu0 %v3483
    %3563 = vmatprep.subr.mxu0 0.0
    %3564 = vmatpush1.msra.mxu0 0.0
    %3565 = vmatprep.subr.mxu0 0.0
    %3566 = vmatpush1.msra.mxu0 0.0
    %3567 = vmatprep.subr.mxu0 0.0
    %3568 = vmatpush1.msra.mxu0 0.0
    %3569 = vmatprep.subr.mxu0 0.0
    %3570 = vmatpush1.msra.mxu0 0.0
    %3571 = vmatprep.subr.mxu0 0.0
    %3572 = vmatpush1.msra.mxu0 0.0
    %3573 = vmatprep.subr.mxu0 0.0
    %3574 = vmatpush1.msra.mxu0 0.0
    %3575 = vmatprep.subr.mxu0 0.0
    %3576 = vmatpush1.msra.mxu0 0.0
    %3577 = vmatprep.subr.mxu0 0.0
    %3578 = vmatpush1.msra.mxu0 0.0
    %3579 = vmatprep.subr.mxu0 0.0
    %3580 = vmatpush1.msra.mxu0 0.0
    %3581 = vmatprep.subr.mxu0 0.0
    %3582 = vmatpush1.msra.mxu0 0.0
    %3583 = vmatprep.subr.mxu0 0.0
    %3584 = vmatpush1.msra.mxu0 0.0
    %3585 = vmatprep.subr.mxu0 0.0
    %3586 = vmatpush1.msra.mxu0 0.0
    %3587 = vmatprep.subr.mxu0 0.0
    %3588 = vmatpush1.msra.mxu0 0.0
    %3589 = vmatprep.subr.mxu0 0.0
    %3590 = vmatpush1.msra.mxu0 0.0
    %3591 = vmatprep.subr.mxu0 0.0
    %3592 = vmatpush1.msra.mxu0 0.0
    %3593 = vmatprep.subr.mxu0 0.0
    %3594 = vmatpush1.msra.mxu0 0.0
    %3595 = vmatprep.subr.mxu0 0.0
    %3596 = vmatpush1.msra.mxu0 0.0
    %3597 = vmatprep.subr.mxu0 0.0
    %3598 = vmatpush1.msra.mxu0 0.0
    %3599 = vmatprep.subr.mxu0 0.0
    %3600 = vmatpush1.msra.mxu0 0.0
    %3601 = vmatprep.subr.mxu0 0.0
    %3602 = vmatpush1.msra.mxu0 0.0
    %3603 = vmatprep.subr.mxu0 0.0
    %3604 = vmatpush1.msra.mxu0 0.0
    %3605 = vmatprep.subr.mxu0 0.0
    %3606 = vmatpush1.msra.mxu0 0.0
    %3607 = vmatprep.subr.mxu0 0.0
    %3608 = vmatpush1.msra.mxu0 0.0
    %3609 = vmatprep.subr.mxu0 0.0
    %3610 = vmatpush1.msra.mxu0 0.0
    %3611 = vmatprep.subr.mxu0 0.0
    %3612 = vmatpush1.msra.mxu0 0.0
    %3613 = vmatprep.subr.mxu0 0.0
    %3614 = vmatpush1.msra.mxu0 0.0
    %3615 = vmatprep.subr.mxu0 0.0
    %3616 = vmatpush1.msra.mxu0 0.0
    %3617 = vmatprep.subr.mxu0 0.0
    %3618 = vmatpush1.msra.mxu0 0.0
    %3619 = vmatprep.subr.mxu0 0.0
    %3620 = vmatpush1.msra.mxu0 0.0
    %3621 = vmatprep.subr.mxu0 0.0
    %3622 = vmatpush1.msra.mxu0 0.0
    %3623 = vmatprep.mubr.f32.mxu0 0.0
    %3624 = vmatmul.mubr.f32.gmra.mrb[0].mxu0 %v3474
    %v3625 = vpop.f32.mrb[0].mxu0
    %v3626 = vadd.f32 0.0, %v3625
    %v3627 = vpop.f32.mrb[0].mxu0
    %v3628 = vadd.f32 0.0, %v3627
    %3629 = vdwg.mxu0
    %v3630 = vld [vmem:[%s1654] ss:$8 sm:$0xf]
    %v3632 = vlaneseq
    %v3633 = vshrl.u32 %v3632, 7
    %v3634 = vsub.s32 0, %v3633
    %v3635 = vrot.slane %v3630, %v3634
    %v3636 = vlaneseq
    %v3637 = vshrl.u32 %v3636, 7
    %v3638 = vsub.s32 1, %v3637
    %v3639 = vrot.slane %v3630, %v3638
    %v3640 = vlaneseq
    %v3641 = vshrl.u32 %v3640, 7
    %v3642 = vsub.s32 2, %v3641
    %v3643 = vrot.slane %v3630, %v3642
    %v3644 = vlaneseq
    %v3645 = vshrl.u32 %v3644, 7
    %v3646 = vsub.s32 3, %v3645
    %v3647 = vrot.slane %v3630, %v3646
    %v3652 = vmul.f32 %v3635, %v3555
    %v3653 = vmul.f32 %v3639, %v3557
    %v3654 = vmul.f32 %v3643, %v3626
    %v3655 = vmul.f32 %v3647, %v3628
    %v3656 = vadd.f32 %v3444, %v3652
    %v3657 = vadd.f32 %v3445, %v3653
    %v3658 = vadd.f32 %v3446, %v3654
    %v3659 = vadd.f32 %v3447, %v3655
    %3660 = vrot.lane.b32.xlu0 %v2005, 111
    %v3661 = vpop.permute.xlu0 %3660
    %3662 = vrot.lane.b32.xlu0 %v2009, 111
    %v3663 = vpop.permute.xlu0 %3662
    %3664 = vrot.lane.b32.xlu0 %v2006, 111
    %v3665 = vpop.permute.xlu0 %3664
    %3666 = vrot.lane.b32.xlu0 %v2010, 111
    %v3667 = vpop.permute.xlu0 %3666
    %3668 = vrot.lane.b32.xlu0 %v2007, 111
    %v3669 = vpop.permute.xlu0 %3668
    %3670 = vrot.lane.b32.xlu0 %v2011, 111
    %v3671 = vpop.permute.xlu0 %3670
    %3672 = vrot.lane.b32.xlu0 %v2008, 111
    %v3673 = vpop.permute.xlu0 %3672
    %3674 = vrot.lane.b32.xlu0 %v2012, 111
    %v3675 = vpop.permute.xlu0 %3674
    %v3676 = vsel %vm1693, %v3669, %v3673
    %v3677 = vsel %vm1693, %v3671, %v3675
    %v3678 = vsel %vm1693, %v3665, %v3669
    %v3679 = vsel %vm1693, %v3667, %v3671
    %v3680 = vsel %vm1693, %v3661, %v3665
    %v3681 = vsel %vm1693, %v3663, %v3667
    %v3682 = vsel %vm1693, %v3673, %v3661
    %v3683 = vsel %vm1693, %v3675, %v3663
    %v3684 = vld [vmem:[%s7 + $0x40] sm:$0xff]
    %v3686 = vsel %vm2038, %v3684, 0
    %v3689 = vsel %vm57, %v3681, 0
    %v3692 = vsel %vm57, %v3679, 0
    %v3695 = vsel %vm57, %v3677, 0
    %v3698 = vsel %vm57, %v3683, 0
    %3700 = vmatprep.subr.mxu0 %v3678
    %3701 = vmatpush1.msra.mxu0 %v3680
    %3702 = vmatprep.subr.mxu0 %v3692
    %3703 = vmatpush1.msra.mxu0 %v3689
    %3704 = vmatprep.subr.mxu0 0.0
    %3705 = vmatpush1.msra.mxu0 0.0
    %3706 = vmatprep.subr.mxu0 0.0
    %3707 = vmatpush1.msra.mxu0 0.0
    %3708 = vmatprep.subr.mxu0 0.0
    %3709 = vmatpush1.msra.mxu0 0.0
    %3710 = vmatprep.subr.mxu0 0.0
    %3711 = vmatpush1.msra.mxu0 0.0
    %3712 = vmatprep.subr.mxu0 0.0
    %3713 = vmatpush1.msra.mxu0 0.0
    %3714 = vmatprep.subr.mxu0 0.0
    %3715 = vmatpush1.msra.mxu0 0.0
    %3716 = vmatprep.subr.mxu0 0.0
    %3717 = vmatpush1.msra.mxu0 0.0
    %3718 = vmatprep.subr.mxu0 0.0
    %3719 = vmatpush1.msra.mxu0 0.0
    %3720 = vmatprep.subr.mxu0 0.0
    %3721 = vmatpush1.msra.mxu0 0.0
    %3722 = vmatprep.subr.mxu0 0.0
    %3723 = vmatpush1.msra.mxu0 0.0
    %3724 = vmatprep.subr.mxu0 0.0
    %3725 = vmatpush1.msra.mxu0 0.0
    %3726 = vmatprep.subr.mxu0 0.0
    %3727 = vmatpush1.msra.mxu0 0.0
    %3728 = vmatprep.subr.mxu0 0.0
    %3729 = vmatpush1.msra.mxu0 0.0
    %3730 = vmatprep.subr.mxu0 0.0
    %3731 = vmatpush1.msra.mxu0 0.0
    %3732 = vmatprep.subr.mxu0 0.0
    %3733 = vmatpush1.msra.mxu0 0.0
    %3734 = vmatprep.subr.mxu0 0.0
    %3735 = vmatpush1.msra.mxu0 0.0
    %3736 = vmatprep.subr.mxu0 0.0
    %3737 = vmatpush1.msra.mxu0 0.0
    %3738 = vmatprep.subr.mxu0 0.0
    %3739 = vmatpush1.msra.mxu0 0.0
    %3740 = vmatprep.subr.mxu0 0.0
    %3741 = vmatpush1.msra.mxu0 0.0
    %3742 = vmatprep.subr.mxu0 0.0
    %3743 = vmatpush1.msra.mxu0 0.0
    %3744 = vmatprep.subr.mxu0 0.0
    %3745 = vmatpush1.msra.mxu0 0.0
    %3746 = vmatprep.subr.mxu0 0.0
    %3747 = vmatpush1.msra.mxu0 0.0
    %3748 = vmatprep.subr.mxu0 0.0
    %3749 = vmatpush1.msra.mxu0 0.0
    %3750 = vmatprep.subr.mxu0 0.0
    %3751 = vmatpush1.msra.mxu0 0.0
    %3752 = vmatprep.subr.mxu0 0.0
    %3753 = vmatpush1.msra.mxu0 0.0
    %3754 = vmatprep.subr.mxu0 0.0
    %3755 = vmatpush1.msra.mxu0 0.0
    %3756 = vmatprep.subr.mxu0 0.0
    %3757 = vmatpush1.msra.mxu0 0.0
    %3758 = vmatprep.subr.mxu0 0.0
    %3759 = vmatpush1.msra.mxu0 0.0
    %3760 = vmatprep.subr.mxu0 0.0
    %3761 = vmatpush1.msra.mxu0 0.0
    %3762 = vmatprep.subr.mxu0 0.0
    %3763 = vmatpush1.msra.mxu0 0.0
    %3764 = vmatprep.mubr.f32.mxu0 0.0
    %3765 = vmatmul.mubr.f32.gmra.mrb[0].mxu0 %v3686
    %v3766 = vpop.f32.mrb[0].mxu0
    %v3767 = vadd.f32 0.0, %v3766
    %v3768 = vpop.f32.mrb[0].mxu0
    %v3769 = vadd.f32 0.0, %v3768
    %3770 = vdwg.mxu0
    %3771 = vmatprep.subr.mxu0 %v3682
    %3772 = vmatpush1.msra.mxu0 %v3676
    %3773 = vmatprep.subr.mxu0 %v3698
    %3774 = vmatpush1.msra.mxu0 %v3695
    %3775 = vmatprep.subr.mxu0 0.0
    %3776 = vmatpush1.msra.mxu0 0.0
    %3777 = vmatprep.subr.mxu0 0.0
    %3778 = vmatpush1.msra.mxu0 0.0
    %3779 = vmatprep.subr.mxu0 0.0
    %3780 = vmatpush1.msra.mxu0 0.0
    %3781 = vmatprep.subr.mxu0 0.0
    %3782 = vmatpush1.msra.mxu0 0.0
    %3783 = vmatprep.subr.mxu0 0.0
    %3784 = vmatpush1.msra.mxu0 0.0
    %3785 = vmatprep.subr.mxu0 0.0
    %3786 = vmatpush1.msra.mxu0 0.0
    %3787 = vmatprep.subr.mxu0 0.0
    %3788 = vmatpush1.msra.mxu0 0.0
    %3789 = vmatprep.subr.mxu0 0.0
    %3790 = vmatpush1.msra.mxu0 0.0
    %3791 = vmatprep.subr.mxu0 0.0
    %3792 = vmatpush1.msra.mxu0 0.0
    %3793 = vmatprep.subr.mxu0 0.0
    %3794 = vmatpush1.msra.mxu0 0.0
    %3795 = vmatprep.subr.mxu0 0.0
    %3796 = vmatpush1.msra.mxu0 0.0
    %3797 = vmatprep.subr.mxu0 0.0
    %3798 = vmatpush1.msra.mxu0 0.0
    %3799 = vmatprep.subr.mxu0 0.0
    %3800 = vmatpush1.msra.mxu0 0.0
    %3801 = vmatprep.subr.mxu0 0.0
    %3802 = vmatpush1.msra.mxu0 0.0
    %3803 = vmatprep.subr.mxu0 0.0
    %3804 = vmatpush1.msra.mxu0 0.0
    %3805 = vmatprep.subr.mxu0 0.0
    %3806 = vmatpush1.msra.mxu0 0.0
    %3807 = vmatprep.subr.mxu0 0.0
    %3808 = vmatpush1.msra.mxu0 0.0
    %3809 = vmatprep.subr.mxu0 0.0
    %3810 = vmatpush1.msra.mxu0 0.0
    %3811 = vmatprep.subr.mxu0 0.0
    %3812 = vmatpush1.msra.mxu0 0.0
    %3813 = vmatprep.subr.mxu0 0.0
    %3814 = vmatpush1.msra.mxu0 0.0
    %3815 = vmatprep.subr.mxu0 0.0
    %3816 = vmatpush1.msra.mxu0 0.0
    %3817 = vmatprep.subr.mxu0 0.0
    %3818 = vmatpush1.msra.mxu0 0.0
    %3819 = vmatprep.subr.mxu0 0.0
    %3820 = vmatpush1.msra.mxu0 0.0
    %3821 = vmatprep.subr.mxu0 0.0
    %3822 = vmatpush1.msra.mxu0 0.0
    %3823 = vmatprep.subr.mxu0 0.0
    %3824 = vmatpush1.msra.mxu0 0.0
    %3825 = vmatprep.subr.mxu0 0.0
    %3826 = vmatpush1.msra.mxu0 0.0
    %3827 = vmatprep.subr.mxu0 0.0
    %3828 = vmatpush1.msra.mxu0 0.0
    %3829 = vmatprep.subr.mxu0 0.0
    %3830 = vmatpush1.msra.mxu0 0.0
    %3831 = vmatprep.subr.mxu0 0.0
    %3832 = vmatpush1.msra.mxu0 0.0
    %3833 = vmatprep.subr.mxu0 0.0
    %3834 = vmatpush1.msra.mxu0 0.0
    %3835 = vmatprep.mubr.f32.mxu0 0.0
    %3836 = vmatmul.mubr.f32.gmra.mrb[0].mxu0 %v3686
    %v3837 = vpop.f32.mrb[0].mxu0
    %v3838 = vadd.f32 0.0, %v3837
    %v3839 = vpop.f32.mrb[0].mxu0
    %v3840 = vadd.f32 0.0, %v3839
    %3841 = vdwg.mxu0
    %v3842 = vld [vmem:[%s1856] ss:$8 sm:$0xf]
    %v3844 = vlaneseq
    %v3845 = vshrl.u32 %v3844, 7
    %v3846 = vsub.s32 0, %v3845
    %v3847 = vrot.slane %v3842, %v3846
    %v3848 = vlaneseq
    %v3849 = vshrl.u32 %v3848, 7
    %v3850 = vsub.s32 1, %v3849
    %v3851 = vrot.slane %v3842, %v3850
    %v3852 = vlaneseq
    %v3853 = vshrl.u32 %v3852, 7
    %v3854 = vsub.s32 2, %v3853
    %v3855 = vrot.slane %v3842, %v3854
    %v3856 = vlaneseq
    %v3857 = vshrl.u32 %v3856, 7
    %v3858 = vsub.s32 3, %v3857
    %v3859 = vrot.slane %v3842, %v3858
    %v3864 = vmul.f32 %v3847, %v3767
    %v3865 = vmul.f32 %v3851, %v3769
    %v3866 = vmul.f32 %v3855, %v3838
    %v3867 = vmul.f32 %v3859, %v3840
    %v3868 = vadd.f32 %v3656, %v3864
    %v3869 = vadd.f32 %v3657, %v3865
    %v3870 = vadd.f32 %v3658, %v3866
    %v3871 = vadd.f32 %v3659, %v3867
    %v3872 = vmax.f32 %v3868, 0.0
    %v3873 = vmax.f32 %v3869, 0.0
    %v3874 = vmax.f32 %v3870, 0.0
    %v3875 = vmax.f32 %v3871, 0.0
    %v3880 = vrot.slane %v3872, 4
    %v3881 = vrot.slane %v3873, 4
    %v3882 = vrot.slane %v3874, 4
    %v3883 = vrot.slane %v3875, 4
    %3888 = vst [vmem:[#allocation2 + $0x20] sm:$0xf0] %v3880
    %3889 = vst [vmem:[#allocation2 + $0x28] sm:$0xf0] %v3881
    %3890 = vst [vmem:[#allocation2 + $0x30] sm:$0xf0] %v3882
    %3891 = vst [vmem:[#allocation2 + $0x38] sm:$0xf0] %v3883
    %3892 = vst [vmem:[#allocation2 + $0x40] sm:$0xf] %v3880
    %3893 = vst [vmem:[#allocation2 + $0x48] sm:$0xf] %v3881
    %3894 = vst [vmem:[#allocation2 + $0x50] sm:$0xf] %v3882
    %3895 = vst [vmem:[#allocation2 + $0x58] sm:$0xf] %v3883
    %v3896 = vld [vmem:[#allocation2] sm:$0xff]
    %v3897 = vld [vmem:[#allocation2 + $0x8] sm:$0xff]
    %v3898 = vld [vmem:[#allocation2 + $0x10] sm:$0xff]
    %v3899 = vld [vmem:[#allocation2 + $0x18] sm:$0xff]
    %v3900 = vld [vmem:[#allocation2 + $0x20] sm:$0xff]
    %v3901 = vld [vmem:[#allocation2 + $0x28] sm:$0xff]
    %v3902 = vld [vmem:[#allocation2 + $0x30] sm:$0xff]
    %v3903 = vld [vmem:[#allocation2 + $0x38] sm:$0xff]
    %v3904 = vld [vmem:[#allocation2 + $0x40] sm:$0xf]
    %v3905 = vld [vmem:[#allocation2 + $0x48] sm:$0xf]
    %v3906 = vld [vmem:[#allocation2 + $0x50] sm:$0xf]
    %v3907 = vld [vmem:[#allocation2 + $0x58] sm:$0xf]
    %v3908 = vld [vmem:[%s8] sm:$0xff]
    %v3909 = vld [vmem:[%s8 + $0x8] sm:$0xff]
    %v3910 = vld [vmem:[%s8 + $0x10] sm:$0xf]
    %v3911 = vld [vmem:[%s9] sm:$0xff]
    %v3912 = vld [vmem:[%s9 + $0x8] sm:$0xff]
    %v3913 = vld [vmem:[%s9 + $0x10] sm:$0xf]
    %v3914 = vadd.f32 %v3896, %v3897
    %v3915 = vadd.f32 %v3914, %v3898
    %v3916 = vadd.f32 %v3915, %v3899
    %3917 = vadd.xlane.f32.xlu0 %v3916
    %v3918 = vpop.xlane.xlu0 %3917
    %v3919 = vadd.f32 %v3900, %v3901
    %v3920 = vadd.f32 %v3919, %v3902
    %v3921 = vadd.f32 %v3920, %v3903
    %3922 = vadd.xlane.f32.xlu0 %v3921
    %v3923 = vpop.xlane.xlu0 %3922
    %v3924 = vsel %vm57, %v3904, 0.0
    %v3925 = vsel %vm57, %v3905, 0.0
    %v3926 = vadd.f32 %v3924, %v3925
    %v3927 = vsel %vm57, %v3906, 0.0
    %v3928 = vadd.f32 %v3926, %v3927
    %v3929 = vsel %vm57, %v3907, 0.0
    %v3930 = vadd.f32 %v3928, %v3929
    %3931 = vadd.xlane.f32.xlu0 %v3930
    %v3932 = vpop.xlane.xlu0 %3931
    %v3933 = vmul.f32 %v3918, 0.001953125
    %v3934 = vmul.f32 %v3923, 0.001953125
    %v3935 = vmul.f32 %v3932, 0.001953125
    %v3936 = vmul.f32 %v3896, %v3896
    %v3937 = vmul.f32 %v3897, %v3897
    %v3938 = vmul.f32 %v3898, %v3898
    %v3939 = vmul.f32 %v3899, %v3899
    %v3940 = vmul.f32 %v3900, %v3900
    %v3941 = vmul.f32 %v3901, %v3901
    %v3942 = vmul.f32 %v3902, %v3902
    %v3943 = vmul.f32 %v3903, %v3903
    %v3944 = vmul.f32 %v3904, %v3904
    %v3945 = vmul.f32 %v3905, %v3905
    %v3946 = vmul.f32 %v3906, %v3906
    %v3947 = vmul.f32 %v3907, %v3907
    %v3948 = vadd.f32 %v3936, %v3937
    %v3949 = vadd.f32 %v3948, %v3938
    %v3950 = vadd.f32 %v3949, %v3939
    %3951 = vadd.xlane.f32.xlu0 %v3950
    %v3952 = vpop.xlane.xlu0 %3951
    %v3953 = vadd.f32 %v3940, %v3941
    %v3954 = vadd.f32 %v3953, %v3942
    %v3955 = vadd.f32 %v3954, %v3943
    %3956 = vadd.xlane.f32.xlu0 %v3955
    %v3957 = vpop.xlane.xlu0 %3956
    %v3958 = vsel %vm57, %v3944, 0.0
    %v3959 = vsel %vm57, %v3945, 0.0
    %v3960 = vadd.f32 %v3958, %v3959
    %v3961 = vsel %vm57, %v3946, 0.0
    %v3962 = vadd.f32 %v3960, %v3961
    %v3963 = vsel %vm57, %v3947, 0.0
    %v3964 = vadd.f32 %v3962, %v3963
    %3965 = vadd.xlane.f32.xlu0 %v3964
    %v3966 = vpop.xlane.xlu0 %3965
    %v3967 = vmul.f32 %v3952, 0.001953125
    %v3968 = vmul.f32 %v3957, 0.001953125
    %v3969 = vmul.f32 %v3966, 0.001953125
    %v3970 = vmul.f32 %v3933, %v3933
    %v3971 = vmul.f32 %v3934, %v3934
    %v3972 = vmul.f32 %v3935, %v3935
    %v3973 = vsub.f32 %v3967, %v3970
    %v3974 = vsub.f32 %v3968, %v3971
    %v3975 = vsub.f32 %v3969, %v3972
    %v3976 = vadd.f32 %v3973, 1e-05
    %v3977 = vadd.f32 %v3974, 1e-05
    %v3978 = vadd.f32 %v3975, 1e-05
    %v3979 = vrsqrt.pop %v3976
    %v3980 = vrsqrt.pop %v3977
    %v3981 = vrsqrt.pop %v3978
    %v3982 = vmul.f32 %v3908, %v3979
    %v3983 = vmul.f32 %v3909, %v3980
    %v3984 = vmul.f32 %v3910, %v3981
    %v3985 = vmul.f32 %v3933, %v3982
    %v3986 = vmul.f32 %v3934, %v3983
    %v3987 = vmul.f32 %v3935, %v3984
    %v3988 = vsub.f32 %v3911, %v3985
    %v3989 = vsub.f32 %v3912, %v3986
    %v3990 = vsub.f32 %v3913, %v3987
    %3992 = vset.pattern.permute.xlu0 0
    %3993 = vperm.xlu0 %3992, %v3982
    %v3994 = vpop.permute.xlu0 %3993
    %3997 = vset.pattern.permute.xlu0 0
    %3998 = vperm.xlu0 %3997, %v3983
    %v3999 = vpop.permute.xlu0 %3998
    %4002 = vset.pattern.permute.xlu0 0
    %4003 = vperm.xlu0 %4002, %v3984
    %v4004 = vpop.permute.xlu0 %4003
    %v4006 = vmul.f32 %v3896, %v3994
    %v4007 = vmul.f32 %v3897, %v3994
    %v4008 = vmul.f32 %v3898, %v3994
    %v4009 = vmul.f32 %v3899, %v3994
    %v4010 = vmul.f32 %v3900, %v3999
    %v4011 = vmul.f32 %v3901, %v3999
    %v4012 = vmul.f32 %v3902, %v3999
    %v4013 = vmul.f32 %v3903, %v3999
    %v4014 = vmul.f32 %v3904, %v4004
    %v4015 = vmul.f32 %v3905, %v4004
    %v4016 = vmul.f32 %v3906, %v4004
    %v4017 = vmul.f32 %v3907, %v4004
    %4019 = vset.pattern.permute.xlu0 0
    %4020 = vperm.xlu0 %4019, %v3988
    %v4021 = vpop.permute.xlu0 %4020
    %4024 = vset.pattern.permute.xlu0 0
    %4025 = vperm.xlu0 %4024, %v3989
    %v4026 = vpop.permute.xlu0 %4025
    %4029 = vset.pattern.permute.xlu0 0
    %4030 = vperm.xlu0 %4029, %v3990
    %v4031 = vpop.permute.xlu0 %4030
    %v4033 = vadd.f32 %v4006, %v4021
    %v4034 = vadd.f32 %v4007, %v4021
    %v4035 = vadd.f32 %v4008, %v4021
    %v4036 = vadd.f32 %v4009, %v4021
    %v4037 = vadd.f32 %v4010, %v4026
    %v4038 = vadd.f32 %v4011, %v4026
    %v4039 = vadd.f32 %v4012, %v4026
    %v4040 = vadd.f32 %v4013, %v4026
    %v4041 = vadd.f32 %v4014, %v4031
    %v4042 = vadd.f32 %v4015, %v4031
    %v4043 = vadd.f32 %v4016, %v4031
    %v4044 = vadd.f32 %v4017, %v4031
    %4045 = vrot.lane.b32.xlu0 %v4033, 17
    %v4046 = vpop.permute.xlu0 %4045
    %4047 = vrot.lane.b32.xlu0 %v4037, 17
    %v4048 = vpop.permute.xlu0 %4047
    %4049 = vrot.lane.b32.xlu0 %v4041, 17
    %v4050 = vpop.permute.xlu0 %4049
    %4051 = vrot.lane.b32.xlu0 %v4034, 17
    %v4052 = vpop.permute.xlu0 %4051
    %4053 = vrot.lane.b32.xlu0 %v4038, 17
    %v4054 = vpop.permute.xlu0 %4053
    %4055 = vrot.lane.b32.xlu0 %v4042, 17
    %v4056 = vpop.permute.xlu0 %4055
    %4057 = vrot.lane.b32.xlu0 %v4035, 17
    %v4058 = vpop.permute.xlu0 %4057
    %4059 = vrot.lane.b32.xlu0 %v4039, 17
    %v4060 = vpop.permute.xlu0 %4059
    %4061 = vrot.lane.b32.xlu0 %v4043, 17
    %v4062 = vpop.permute.xlu0 %4061
    %4063 = vrot.lane.b32.xlu0 %v4036, 17
    %v4064 = vpop.permute.xlu0 %4063
    %4065 = vrot.lane.b32.xlu0 %v4040, 17
    %v4066 = vpop.permute.xlu0 %4065
    %4067 = vrot.lane.b32.xlu0 %v4044, 17
    %v4068 = vpop.permute.xlu0 %4067
    %v4069 = vsel %vm117, %v4058, %v4064
    %v4070 = vsel %vm117, %v4060, %v4066
    %v4071 = vsel %vm117, %v4062, %v4068
    %v4072 = vsel %vm117, %v4052, %v4058
    %v4073 = vsel %vm117, %v4054, %v4060
    %v4074 = vsel %vm117, %v4056, %v4062
    %v4075 = vsel %vm117, %v4046, %v4052
    %v4076 = vsel %vm117, %v4048, %v4054
    %v4077 = vsel %vm117, %v4050, %v4056
    %v4078 = vsel %vm117, %v4064, %v4046
    %v4079 = vsel %vm117, %v4066, %v4048
    %v4080 = vsel %vm117, %v4068, %v4050
    %v4081 = vld [vmem:[%s10] sm:$0xff]
    %vm4082 = vcmask 162816
    %v4084 = vsel %vm4082, %v4081, 0
    %v4087 = vsel %vm57, %v4080, 0
    %v4090 = vsel %vm57, %v4077, 0
    %v4093 = vsel %vm57, %v4074, 0
    %v4096 = vsel %vm57, %v4071, 0
    %4098 = vmatprep.subr.mxu0 %v4075
    %4099 = vmatpush1.msra.mxu0 %v4078
    %4100 = vmatprep.subr.mxu0 %v4076
    %4101 = vmatpush1.msra.mxu0 %v4079
    %4102 = vmatprep.subr.mxu0 %v4090
    %4103 = vmatpush1.msra.mxu0 %v4087
    %4104 = vmatprep.subr.mxu0 0.0
    %4105 = vmatpush1.msra.mxu0 0.0
    %4106 = vmatprep.subr.mxu0 0.0
    %4107 = vmatpush1.msra.mxu0 0.0
    %4108 = vmatprep.subr.mxu0 0.0
    %4109 = vmatpush1.msra.mxu0 0.0
    %4110 = vmatprep.subr.mxu0 0.0
    %4111 = vmatpush1.msra.mxu0 0.0
    %4112 = vmatprep.subr.mxu0 0.0
    %4113 = vmatpush1.msra.mxu0 0.0
    %4114 = vmatprep.subr.mxu0 0.0
    %4115 = vmatpush1.msra.mxu0 0.0
    %4116 = vmatprep.subr.mxu0 0.0
    %4117 = vmatpush1.msra.mxu0 0.0
    %4118 = vmatprep.subr.mxu0 0.0
    %4119 = vmatpush1.msra.mxu0 0.0
    %4120 = vmatprep.subr.mxu0 0.0
    %4121 = vmatpush1.msra.mxu0 0.0
    %4122 = vmatprep.subr.mxu0 0.0
    %4123 = vmatpush1.msra.mxu0 0.0
    %4124 = vmatprep.subr.mxu0 0.0
    %4125 = vmatpush1.msra.mxu0 0.0
    %4126 = vmatprep.subr.mxu0 0.0
    %4127 = vmatpush1.msra.mxu0 0.0
    %4128 = vmatprep.subr.mxu0 0.0
    %4129 = vmatpush1.msra.mxu0 0.0
    %4130 = vmatprep.subr.mxu0 0.0
    %4131 = vmatpush1.msra.mxu0 0.0
    %4132 = vmatprep.subr.mxu0 0.0
    %4133 = vmatpush1.msra.mxu0 0.0
    %4134 = vmatprep.subr.mxu0 0.0
    %4135 = vmatpush1.msra.mxu0 0.0
    %4136 = vmatprep.subr.mxu0 0.0
    %4137 = vmatpush1.msra.mxu0 0.0
    %4138 = vmatprep.subr.mxu0 0.0
    %4139 = vmatpush1.msra.mxu0 0.0
    %4140 = vmatprep.subr.mxu0 0.0
    %4141 = vmatpush1.msra.mxu0 0.0
    %4142 = vmatprep.subr.mxu0 0.0
    %4143 = vmatpush1.msra.mxu0 0.0
    %4144 = vmatprep.subr.mxu0 0.0
    %4145 = vmatpush1.msra.mxu0 0.0
    %4146 = vmatprep.subr.mxu0 0.0
    %4147 = vmatpush1.msra.mxu0 0.0
    %4148 = vmatprep.subr.mxu0 0.0
    %4149 = vmatpush1.msra.mxu0 0.0
    %4150 = vmatprep.subr.mxu0 0.0
    %4151 = vmatpush1.msra.mxu0 0.0
    %4152 = vmatprep.subr.mxu0 0.0
    %4153 = vmatpush1.msra.mxu0 0.0
    %4154 = vmatprep.subr.mxu0 0.0
    %4155 = vmatpush1.msra.mxu0 0.0
    %4156 = vmatprep.subr.mxu0 0.0
    %4157 = vmatpush1.msra.mxu0 0.0
    %4158 = vmatprep.subr.mxu0 0.0
    %4159 = vmatpush1.msra.mxu0 0.0
    %4160 = vmatprep.subr.mxu0 0.0
    %4161 = vmatpush1.msra.mxu0 0.0
    %4162 = vmatprep.mubr.f32.mxu0 0.0
    %4163 = vmatmul.mubr.f32.gmra.mrb[0].mxu0 %v4084
    %v4164 = vpop.f32.mrb[0].mxu0
    %v4165 = vadd.f32 0.0, %v4164
    %v4166 = vpop.f32.mrb[0].mxu0
    %v4167 = vadd.f32 0.0, %v4166
    %4168 = vdwg.mxu0
    %4169 = vmatprep.subr.mxu0 %v4069
    %4170 = vmatpush1.msra.mxu0 %v4072
    %4171 = vmatprep.subr.mxu0 %v4070
    %4172 = vmatpush1.msra.mxu0 %v4073
    %4173 = vmatprep.subr.mxu0 %v4096
    %4174 = vmatpush1.msra.mxu0 %v4093
    %4175 = vmatprep.subr.mxu0 0.0
    %4176 = vmatpush1.msra.mxu0 0.0
    %4177 = vmatprep.subr.mxu0 0.0
    %4178 = vmatpush1.msra.mxu0 0.0
    %4179 = vmatprep.subr.mxu0 0.0
    %4180 = vmatpush1.msra.mxu0 0.0
    %4181 = vmatprep.subr.mxu0 0.0
    %4182 = vmatpush1.msra.mxu0 0.0
    %4183 = vmatprep.subr.mxu0 0.0
    %4184 = vmatpush1.msra.mxu0 0.0
    %4185 = vmatprep.subr.mxu0 0.0
    %4186 = vmatpush1.msra.mxu0 0.0
    %4187 = vmatprep.subr.mxu0 0.0
    %4188 = vmatpush1.msra.mxu0 0.0
    %4189 = vmatprep.subr.mxu0 0.0
    %4190 = vmatpush1.msra.mxu0 0.0
    %4191 = vmatprep.subr.mxu0 0.0
    %4192 = vmatpush1.msra.mxu0 0.0
    %4193 = vmatprep.subr.mxu0 0.0
    %4194 = vmatpush1.msra.mxu0 0.0
    %4195 = vmatprep.subr.mxu0 0.0
    %4196 = vmatpush1.msra.mxu0 0.0
    %4197 = vmatprep.subr.mxu0 0.0
    %4198 = vmatpush1.msra.mxu0 0.0
    %4199 = vmatprep.subr.mxu0 0.0
    %4200 = vmatpush1.msra.mxu0 0.0
    %4201 = vmatprep.subr.mxu0 0.0
    %4202 = vmatpush1.msra.mxu0 0.0
    %4203 = vmatprep.subr.mxu0 0.0
    %4204 = vmatpush1.msra.mxu0 0.0
    %4205 = vmatprep.subr.mxu0 0.0
    %4206 = vmatpush1.msra.mxu0 0.0
    %4207 = vmatprep.subr.mxu0 0.0
    %4208 = vmatpush1.msra.mxu0 0.0
    %4209 = vmatprep.subr.mxu0 0.0
    %4210 = vmatpush1.msra.mxu0 0.0
    %4211 = vmatprep.subr.mxu0 0.0
    %4212 = vmatpush1.msra.mxu0 0.0
    %4213 = vmatprep.subr.mxu0 0.0
    %4214 = vmatpush1.msra.mxu0 0.0
    %4215 = vmatprep.subr.mxu0 0.0
    %4216 = vmatpush1.msra.mxu0 0.0
    %4217 = vmatprep.subr.mxu0 0.0
    %4218 = vmatpush1.msra.mxu0 0.0
    %4219 = vmatprep.subr.mxu0 0.0
    %4220 = vmatpush1.msra.mxu0 0.0
    %4221 = vmatprep.subr.mxu0 0.0
    %4222 = vmatpush1.msra.mxu0 0.0
    %4223 = vmatprep.subr.mxu0 0.0
    %4224 = vmatpush1.msra.mxu0 0.0
    %4225 = vmatprep.subr.mxu0 0.0
    %4226 = vmatpush1.msra.mxu0 0.0
    %4227 = vmatprep.subr.mxu0 0.0
    %4228 = vmatpush1.msra.mxu0 0.0
    %4229 = vmatprep.subr.mxu0 0.0
    %4230 = vmatpush1.msra.mxu0 0.0
    %4231 = vmatprep.subr.mxu0 0.0
    %4232 = vmatpush1.msra.mxu0 0.0
    %4233 = vmatprep.mubr.f32.mxu0 0.0
    %4234 = vmatmul.mubr.f32.gmra.mrb[0].mxu0 %v4084
    %v4235 = vpop.f32.mrb[0].mxu0
    %v4236 = vadd.f32 0.0, %v4235
    %v4237 = vpop.f32.mrb[0].mxu0
    %v4238 = vadd.f32 0.0, %v4237
    %4239 = vdwg.mxu0
    %v4240 = vld [vmem:[%s1] ss:$8 sm:$0xf]
    %v4242 = vlaneseq
    %v4243 = vshrl.u32 %v4242, 7
    %v4244 = vsub.s32 0, %v4243
    %v4245 = vrot.slane %v4240, %v4244
    %v4246 = vlaneseq
    %v4247 = vshrl.u32 %v4246, 7
    %v4248 = vsub.s32 1, %v4247
    %v4249 = vrot.slane %v4240, %v4248
    %v4250 = vlaneseq
    %v4251 = vshrl.u32 %v4250, 7
    %v4252 = vsub.s32 2, %v4251
    %v4253 = vrot.slane %v4240, %v4252
    %v4254 = vlaneseq
    %v4255 = vshrl.u32 %v4254, 7
    %v4256 = vsub.s32 3, %v4255
    %v4257 = vrot.slane %v4240, %v4256
    %v4262 = vmul.f32 %v4245, %v4165
    %v4263 = vmul.f32 %v4249, %v4167
    %v4264 = vmul.f32 %v4253, %v4236
    %v4265 = vmul.f32 %v4257, %v4238
    %v4266 = vadd.f32 %v4262, 0.0
    %v4267 = vadd.f32 %v4263, 0.0
    %v4268 = vadd.f32 %v4264, 0.0
    %v4269 = vadd.f32 %v4265, 0.0
    %4270 = vrot.lane.b32.xlu0 %v4033, 16
    %v4271 = vpop.permute.xlu0 %4270
    %4272 = vrot.lane.b32.xlu0 %v4037, 16
    %v4273 = vpop.permute.xlu0 %4272
    %4274 = vrot.lane.b32.xlu0 %v4041, 16
    %v4275 = vpop.permute.xlu0 %4274
    %4276 = vrot.lane.b32.xlu0 %v4034, 16
    %v4277 = vpop.permute.xlu0 %4276
    %4278 = vrot.lane.b32.xlu0 %v4038, 16
    %v4279 = vpop.permute.xlu0 %4278
    %4280 = vrot.lane.b32.xlu0 %v4042, 16
    %v4281 = vpop.permute.xlu0 %4280
    %4282 = vrot.lane.b32.xlu0 %v4035, 16
    %v4283 = vpop.permute.xlu0 %4282
    %4284 = vrot.lane.b32.xlu0 %v4039, 16
    %v4285 = vpop.permute.xlu0 %4284
    %4286 = vrot.lane.b32.xlu0 %v4043, 16
    %v4287 = vpop.permute.xlu0 %4286
    %4288 = vrot.lane.b32.xlu0 %v4036, 16
    %v4289 = vpop.permute.xlu0 %4288
    %4290 = vrot.lane.b32.xlu0 %v4040, 16
    %v4291 = vpop.permute.xlu0 %4290
    %4292 = vrot.lane.b32.xlu0 %v4044, 16
    %v4293 = vpop.permute.xlu0 %4292
    %v4294 = vsel %vm319, %v4283, %v4289
    %v4295 = vsel %vm319, %v4285, %v4291
    %v4296 = vsel %vm319, %v4287, %v4293
    %v4297 = vsel %vm319, %v4277, %v4283
    %v4298 = vsel %vm319, %v4279, %v4285
    %v4299 = vsel %vm319, %v4281, %v4287
    %v4300 = vsel %vm319, %v4271, %v4277
    %v4301 = vsel %vm319, %v4273, %v4279
    %v4302 = vsel %vm319, %v4275, %v4281
    %v4303 = vsel %vm319, %v4289, %v4271
    %v4304 = vsel %vm319, %v4291, %v4273
    %v4305 = vsel %vm319, %v4293, %v4275
    %v4306 = vld [vmem:[%s10 + $0x8] sm:$0xff]
    %v4308 = vsel %vm4082, %v4306, 0
    %v4311 = vsel %vm57, %v4305, 0
    %v4314 = vsel %vm57, %v4302, 0
    %v4317 = vsel %vm57, %v4299, 0
    %v4320 = vsel %vm57, %v4296, 0
    %4322 = vmatprep.subr.mxu0 %v4300
    %4323 = vmatpush1.msra.mxu0 %v4303
    %4324 = vmatprep.subr.mxu0 %v4301
    %4325 = vmatpush1.msra.mxu0 %v4304
    %4326 = vmatprep.subr.mxu0 %v4314
    %4327 = vmatpush1.msra.mxu0 %v4311
    %4328 = vmatprep.subr.mxu0 0.0
    %4329 = vmatpush1.msra.mxu0 0.0
    %4330 = vmatprep.subr.mxu0 0.0
    %4331 = vmatpush1.msra.mxu0 0.0
    %4332 = vmatprep.subr.mxu0 0.0
    %4333 = vmatpush1.msra.mxu0 0.0
    %4334 = vmatprep.subr.mxu0 0.0
    %4335 = vmatpush1.msra.mxu0 0.0
    %4336 = vmatprep.subr.mxu0 0.0
    %4337 = vmatpush1.msra.mxu0 0.0
    %4338 = vmatprep.subr.mxu0 0.0
    %4339 = vmatpush1.msra.mxu0 0.0
    %4340 = vmatprep.subr.mxu0 0.0
    %4341 = vmatpush1.msra.mxu0 0.0
    %4342 = vmatprep.subr.mxu0 0.0
    %4343 = vmatpush1.msra.mxu0 0.0
    %4344 = vmatprep.subr.mxu0 0.0
    %4345 = vmatpush1.msra.mxu0 0.0
    %4346 = vmatprep.subr.mxu0 0.0
    %4347 = vmatpush1.msra.mxu0 0.0
    %4348 = vmatprep.subr.mxu0 0.0
    %4349 = vmatpush1.msra.mxu0 0.0
    %4350 = vmatprep.subr.mxu0 0.0
    %4351 = vmatpush1.msra.mxu0 0.0
    %4352 = vmatprep.subr.mxu0 0.0
    %4353 = vmatpush1.msra.mxu0 0.0
    %4354 = vmatprep.subr.mxu0 0.0
    %4355 = vmatpush1.msra.mxu0 0.0
    %4356 = vmatprep.subr.mxu0 0.0
    %4357 = vmatpush1.msra.mxu0 0.0
    %4358 = vmatprep.subr.mxu0 0.0
    %4359 = vmatpush1.msra.mxu0 0.0
    %4360 = vmatprep.subr.mxu0 0.0
    %4361 = vmatpush1.msra.mxu0 0.0
    %4362 = vmatprep.subr.mxu0 0.0
    %4363 = vmatpush1.msra.mxu0 0.0
    %4364 = vmatprep.subr.mxu0 0.0
    %4365 = vmatpush1.msra.mxu0 0.0
    %4366 = vmatprep.subr.mxu0 0.0
    %4367 = vmatpush1.msra.mxu0 0.0
    %4368 = vmatprep.subr.mxu0 0.0
    %4369 = vmatpush1.msra.mxu0 0.0
    %4370 = vmatprep.subr.mxu0 0.0
    %4371 = vmatpush1.msra.mxu0 0.0
    %4372 = vmatprep.subr.mxu0 0.0
    %4373 = vmatpush1.msra.mxu0 0.0
    %4374 = vmatprep.subr.mxu0 0.0
    %4375 = vmatpush1.msra.mxu0 0.0
    %4376 = vmatprep.subr.mxu0 0.0
    %4377 = vmatpush1.msra.mxu0 0.0
    %4378 = vmatprep.subr.mxu0 0.0
    %4379 = vmatpush1.msra.mxu0 0.0
    %4380 = vmatprep.subr.mxu0 0.0
    %4381 = vmatpush1.msra.mxu0 0.0
    %4382 = vmatprep.subr.mxu0 0.0
    %4383 = vmatpush1.msra.mxu0 0.0
    %4384 = vmatprep.subr.mxu0 0.0
    %4385 = vmatpush1.msra.mxu0 0.0
    %4386 = vmatprep.mubr.f32.mxu0 0.0
    %4387 = vmatmul.mubr.f32.gmra.mrb[0].mxu0 %v4308
    %v4388 = vpop.f32.mrb[0].mxu0
    %v4389 = vadd.f32 0.0, %v4388
    %v4390 = vpop.f32.mrb[0].mxu0
    %v4391 = vadd.f32 0.0, %v4390
    %4392 = vdwg.mxu0
    %4393 = vmatprep.subr.mxu0 %v4294
    %4394 = vmatpush1.msra.mxu0 %v4297
    %4395 = vmatprep.subr.mxu0 %v4295
    %4396 = vmatpush1.msra.mxu0 %v4298
    %4397 = vmatprep.subr.mxu0 %v4320
    %4398 = vmatpush1.msra.mxu0 %v4317
    %4399 = vmatprep.subr.mxu0 0.0
    %4400 = vmatpush1.msra.mxu0 0.0
    %4401 = vmatprep.subr.mxu0 0.0
    %4402 = vmatpush1.msra.mxu0 0.0
    %4403 = vmatprep.subr.mxu0 0.0
    %4404 = vmatpush1.msra.mxu0 0.0
    %4405 = vmatprep.subr.mxu0 0.0
    %4406 = vmatpush1.msra.mxu0 0.0
    %4407 = vmatprep.subr.mxu0 0.0
    %4408 = vmatpush1.msra.mxu0 0.0
    %4409 = vmatprep.subr.mxu0 0.0
    %4410 = vmatpush1.msra.mxu0 0.0
    %4411 = vmatprep.subr.mxu0 0.0
    %4412 = vmatpush1.msra.mxu0 0.0
    %4413 = vmatprep.subr.mxu0 0.0
    %4414 = vmatpush1.msra.mxu0 0.0
    %4415 = vmatprep.subr.mxu0 0.0
    %4416 = vmatpush1.msra.mxu0 0.0
    %4417 = vmatprep.subr.mxu0 0.0
    %4418 = vmatpush1.msra.mxu0 0.0
    %4419 = vmatprep.subr.mxu0 0.0
    %4420 = vmatpush1.msra.mxu0 0.0
    %4421 = vmatprep.subr.mxu0 0.0
    %4422 = vmatpush1.msra.mxu0 0.0
    %4423 = vmatprep.subr.mxu0 0.0
    %4424 = vmatpush1.msra.mxu0 0.0
    %4425 = vmatprep.subr.mxu0 0.0
    %4426 = vmatpush1.msra.mxu0 0.0
    %4427 = vmatprep.subr.mxu0 0.0
    %4428 = vmatpush1.msra.mxu0 0.0
    %4429 = vmatprep.subr.mxu0 0.0
    %4430 = vmatpush1.msra.mxu0 0.0
    %4431 = vmatprep.subr.mxu0 0.0
    %4432 = vmatpush1.msra.mxu0 0.0
    %4433 = vmatprep.subr.mxu0 0.0
    %4434 = vmatpush1.msra.mxu0 0.0
    %4435 = vmatprep.subr.mxu0 0.0
    %4436 = vmatpush1.msra.mxu0 0.0
    %4437 = vmatprep.subr.mxu0 0.0
    %4438 = vmatpush1.msra.mxu0 0.0
    %4439 = vmatprep.subr.mxu0 0.0
    %4440 = vmatpush1.msra.mxu0 0.0
    %4441 = vmatprep.subr.mxu0 0.0
    %4442 = vmatpush1.msra.mxu0 0.0
    %4443 = vmatprep.subr.mxu0 0.0
    %4444 = vmatpush1.msra.mxu0 0.0
    %4445 = vmatprep.subr.mxu0 0.0
    %4446 = vmatpush1.msra.mxu0 0.0
    %4447 = vmatprep.subr.mxu0 0.0
    %4448 = vmatpush1.msra.mxu0 0.0
    %4449 = vmatprep.subr.mxu0 0.0
    %4450 = vmatpush1.msra.mxu0 0.0
    %4451 = vmatprep.subr.mxu0 0.0
    %4452 = vmatpush1.msra.mxu0 0.0
    %4453 = vmatprep.subr.mxu0 0.0
    %4454 = vmatpush1.msra.mxu0 0.0
    %4455 = vmatprep.subr.mxu0 0.0
    %4456 = vmatpush1.msra.mxu0 0.0
    %4457 = vmatprep.mubr.f32.mxu0 0.0
    %4458 = vmatmul.mubr.f32.gmra.mrb[0].mxu0 %v4308
    %v4459 = vpop.f32.mrb[0].mxu0
    %v4460 = vadd.f32 0.0, %v4459
    %v4461 = vpop.f32.mrb[0].mxu0
    %v4462 = vadd.f32 0.0, %v4461
    %4463 = vdwg.mxu0
    %v4464 = vld [vmem:[%s482] ss:$8 sm:$0xf]
    %v4466 = vlaneseq
    %v4467 = vshrl.u32 %v4466, 7
    %v4468 = vsub.s32 0, %v4467
    %v4469 = vrot.slane %v4464, %v4468
    %v4470 = vlaneseq
    %v4471 = vshrl.u32 %v4470, 7
    %v4472 = vsub.s32 1, %v4471
    %v4473 = vrot.slane %v4464, %v4472
    %v4474 = vlaneseq
    %v4475 = vshrl.u32 %v4474, 7
    %v4476 = vsub.s32 2, %v4475
    %v4477 = vrot.slane %v4464, %v4476
    %v4478 = vlaneseq
    %v4479 = vshrl.u32 %v4478, 7
    %v4480 = vsub.s32 3, %v4479
    %v4481 = vrot.slane %v4464, %v4480
    %v4486 = vmul.f32 %v4469, %v4389
    %v4487 = vmul.f32 %v4473, %v4391
    %v4488 = vmul.f32 %v4477, %v4460
    %v4489 = vmul.f32 %v4481, %v4462
    %v4490 = vadd.f32 %v4266, %v4486
    %v4491 = vadd.f32 %v4267, %v4487
    %v4492 = vadd.f32 %v4268, %v4488
    %v4493 = vadd.f32 %v4269, %v4489
    %4494 = vrot.lane.b32.xlu0 %v4033, 15
    %v4495 = vpop.permute.xlu0 %4494
    %4496 = vrot.lane.b32.xlu0 %v4037, 15
    %v4497 = vpop.permute.xlu0 %4496
    %4498 = vrot.lane.b32.xlu0 %v4041, 15
    %v4499 = vpop.permute.xlu0 %4498
    %4500 = vrot.lane.b32.xlu0 %v4034, 15
    %v4501 = vpop.permute.xlu0 %4500
    %4502 = vrot.lane.b32.xlu0 %v4038, 15
    %v4503 = vpop.permute.xlu0 %4502
    %4504 = vrot.lane.b32.xlu0 %v4042, 15
    %v4505 = vpop.permute.xlu0 %4504
    %4506 = vrot.lane.b32.xlu0 %v4035, 15
    %v4507 = vpop.permute.xlu0 %4506
    %4508 = vrot.lane.b32.xlu0 %v4039, 15
    %v4509 = vpop.permute.xlu0 %4508
    %4510 = vrot.lane.b32.xlu0 %v4043, 15
    %v4511 = vpop.permute.xlu0 %4510
    %4512 = vrot.lane.b32.xlu0 %v4036, 15
    %v4513 = vpop.permute.xlu0 %4512
    %4514 = vrot.lane.b32.xlu0 %v4040, 15
    %v4515 = vpop.permute.xlu0 %4514
    %4516 = vrot.lane.b32.xlu0 %v4044, 15
    %v4517 = vpop.permute.xlu0 %4516
    %v4518 = vsel %vm521, %v4507, %v4513
    %v4519 = vsel %vm521, %v4509, %v4515
    %v4520 = vsel %vm521, %v4511, %v4517
    %v4521 = vsel %vm521, %v4501, %v4507
    %v4522 = vsel %vm521, %v4503, %v4509
    %v4523 = vsel %vm521, %v4505, %v4511
    %v4524 = vsel %vm521, %v4495, %v4501
    %v4525 = vsel %vm521, %v4497, %v4503
    %v4526 = vsel %vm521, %v4499, %v4505
    %v4527 = vsel %vm521, %v4513, %v4495
    %v4528 = vsel %vm521, %v4515, %v4497
    %v4529 = vsel %vm521, %v4517, %v4499
    %v4530 = vld [vmem:[%s10 + $0x10] sm:$0xff]
    %v4532 = vsel %vm4082, %v4530, 0
    %v4535 = vsel %vm57, %v4529, 0
    %v4538 = vsel %vm57, %v4526, 0
    %v4541 = vsel %vm57, %v4523, 0
    %v4544 = vsel %vm57, %v4520, 0
    %4546 = vmatprep.subr.mxu0 %v4524
    %4547 = vmatpush1.msra.mxu0 %v4527
    %4548 = vmatprep.subr.mxu0 %v4525
    %4549 = vmatpush1.msra.mxu0 %v4528
    %4550 = vmatprep.subr.mxu0 %v4538
    %4551 = vmatpush1.msra.mxu0 %v4535
    %4552 = vmatprep.subr.mxu0 0.0
    %4553 = vmatpush1.msra.mxu0 0.0
    %4554 = vmatprep.subr.mxu0 0.0
    %4555 = vmatpush1.msra.mxu0 0.0
    %4556 = vmatprep.subr.mxu0 0.0
    %4557 = vmatpush1.msra.mxu0 0.0
    %4558 = vmatprep.subr.mxu0 0.0
    %4559 = vmatpush1.msra.mxu0 0.0
    %4560 = vmatprep.subr.mxu0 0.0
    %4561 = vmatpush1.msra.mxu0 0.0
    %4562 = vmatprep.subr.mxu0 0.0
    %4563 = vmatpush1.msra.mxu0 0.0
    %4564 = vmatprep.subr.mxu0 0.0
    %4565 = vmatpush1.msra.mxu0 0.0
    %4566 = vmatprep.subr.mxu0 0.0
    %4567 = vmatpush1.msra.mxu0 0.0
    %4568 = vmatprep.subr.mxu0 0.0
    %4569 = vmatpush1.msra.mxu0 0.0
    %4570 = vmatprep.subr.mxu0 0.0
    %4571 = vmatpush1.msra.mxu0 0.0
    %4572 = vmatprep.subr.mxu0 0.0
    %4573 = vmatpush1.msra.mxu0 0.0
    %4574 = vmatprep.subr.mxu0 0.0
    %4575 = vmatpush1.msra.mxu0 0.0
    %4576 = vmatprep.subr.mxu0 0.0
    %4577 = vmatpush1.msra.mxu0 0.0
    %4578 = vmatprep.subr.mxu0 0.0
    %4579 = vmatpush1.msra.mxu0 0.0
    %4580 = vmatprep.subr.mxu0 0.0
    %4581 = vmatpush1.msra.mxu0 0.0
    %4582 = vmatprep.subr.mxu0 0.0
    %4583 = vmatpush1.msra.mxu0 0.0
    %4584 = vmatprep.subr.mxu0 0.0
    %4585 = vmatpush1.msra.mxu0 0.0
    %4586 = vmatprep.subr.mxu0 0.0
    %4587 = vmatpush1.msra.mxu0 0.0
    %4588 = vmatprep.subr.mxu0 0.0
    %4589 = vmatpush1.msra.mxu0 0.0
    %4590 = vmatprep.subr.mxu0 0.0
    %4591 = vmatpush1.msra.mxu0 0.0
    %4592 = vmatprep.subr.mxu0 0.0
    %4593 = vmatpush1.msra.mxu0 0.0
    %4594 = vmatprep.subr.mxu0 0.0
    %4595 = vmatpush1.msra.mxu0 0.0
    %4596 = vmatprep.subr.mxu0 0.0
    %4597 = vmatpush1.msra.mxu0 0.0
    %4598 = vmatprep.subr.mxu0 0.0
    %4599 = vmatpush1.msra.mxu0 0.0
    %4600 = vmatprep.subr.mxu0 0.0
    %4601 = vmatpush1.msra.mxu0 0.0
    %4602 = vmatprep.subr.mxu0 0.0
    %4603 = vmatpush1.msra.mxu0 0.0
    %4604 = vmatprep.subr.mxu0 0.0
    %4605 = vmatpush1.msra.mxu0 0.0
    %4606 = vmatprep.subr.mxu0 0.0
    %4607 = vmatpush1.msra.mxu0 0.0
    %4608 = vmatprep.subr.mxu0 0.0
    %4609 = vmatpush1.msra.mxu0 0.0
    %4610 = vmatprep.mubr.f32.mxu0 0.0
    %4611 = vmatmul.mubr.f32.gmra.mrb[0].mxu0 %v4532
    %v4612 = vpop.f32.mrb[0].mxu0
    %v4613 = vadd.f32 0.0, %v4612
    %v4614 = vpop.f32.mrb[0].mxu0
    %v4615 = vadd.f32 0.0, %v4614
    %4616 = vdwg.mxu0
    %4617 = vmatprep.subr.mxu0 %v4518
    %4618 = vmatpush1.msra.mxu0 %v4521
    %4619 = vmatprep.subr.mxu0 %v4519
    %4620 = vmatpush1.msra.mxu0 %v4522
    %4621 = vmatprep.subr.mxu0 %v4544
    %4622 = vmatpush1.msra.mxu0 %v4541
    %4623 = vmatprep.subr.mxu0 0.0
    %4624 = vmatpush1.msra.mxu0 0.0
    %4625 = vmatprep.subr.mxu0 0.0
    %4626 = vmatpush1.msra.mxu0 0.0
    %4627 = vmatprep.subr.mxu0 0.0
    %4628 = vmatpush1.msra.mxu0 0.0
    %4629 = vmatprep.subr.mxu0 0.0
    %4630 = vmatpush1.msra.mxu0 0.0
    %4631 = vmatprep.subr.mxu0 0.0
    %4632 = vmatpush1.msra.mxu0 0.0
    %4633 = vmatprep.subr.mxu0 0.0
    %4634 = vmatpush1.msra.mxu0 0.0
    %4635 = vmatprep.subr.mxu0 0.0
    %4636 = vmatpush1.msra.mxu0 0.0
    %4637 = vmatprep.subr.mxu0 0.0
    %4638 = vmatpush1.msra.mxu0 0.0
    %4639 = vmatprep.subr.mxu0 0.0
    %4640 = vmatpush1.msra.mxu0 0.0
    %4641 = vmatprep.subr.mxu0 0.0
    %4642 = vmatpush1.msra.mxu0 0.0
    %4643 = vmatprep.subr.mxu0 0.0
    %4644 = vmatpush1.msra.mxu0 0.0
    %4645 = vmatprep.subr.mxu0 0.0
    %4646 = vmatpush1.msra.mxu0 0.0
    %4647 = vmatprep.subr.mxu0 0.0
    %4648 = vmatpush1.msra.mxu0 0.0
    %4649 = vmatprep.subr.mxu0 0.0
    %4650 = vmatpush1.msra.mxu0 0.0
    %4651 = vmatprep.subr.mxu0 0.0
    %4652 = vmatpush1.msra.mxu0 0.0
    %4653 = vmatprep.subr.mxu0 0.0
    %4654 = vmatpush1.msra.mxu0 0.0
    %4655 = vmatprep.subr.mxu0 0.0
    %4656 = vmatpush1.msra.mxu0 0.0
    %4657 = vmatprep.subr.mxu0 0.0
    %4658 = vmatpush1.msra.mxu0 0.0
    %4659 = vmatprep.subr.mxu0 0.0
    %4660 = vmatpush1.msra.mxu0 0.0
    %4661 = vmatprep.subr.mxu0 0.0
    %4662 = vmatpush1.msra.mxu0 0.0
    %4663 = vmatprep.subr.mxu0 0.0
    %4664 = vmatpush1.msra.mxu0 0.0
    %4665 = vmatprep.subr.mxu0 0.0
    %4666 = vmatpush1.msra.mxu0 0.0
    %4667 = vmatprep.subr.mxu0 0.0
    %4668 = vmatpush1.msra.mxu0 0.0
    %4669 = vmatprep.subr.mxu0 0.0
    %4670 = vmatpush1.msra.mxu0 0.0
    %4671 = vmatprep.subr.mxu0 0.0
    %4672 = vmatpush1.msra.mxu0 0.0
    %4673 = vmatprep.subr.mxu0 0.0
    %4674 = vmatpush1.msra.mxu0 0.0
    %4675 = vmatprep.subr.mxu0 0.0
    %4676 = vmatpush1.msra.mxu0 0.0
    %4677 = vmatprep.subr.mxu0 0.0
    %4678 = vmatpush1.msra.mxu0 0.0
    %4679 = vmatprep.subr.mxu0 0.0
    %4680 = vmatpush1.msra.mxu0 0.0
    %4681 = vmatprep.mubr.f32.mxu0 0.0
    %4682 = vmatmul.mubr.f32.gmra.mrb[0].mxu0 %v4532
    %v4683 = vpop.f32.mrb[0].mxu0
    %v4684 = vadd.f32 0.0, %v4683
    %v4685 = vpop.f32.mrb[0].mxu0
    %v4686 = vadd.f32 0.0, %v4685
    %4687 = vdwg.mxu0
    %v4688 = vld [vmem:[%s684] ss:$8 sm:$0xf]
    %v4690 = vlaneseq
    %v4691 = vshrl.u32 %v4690, 7
    %v4692 = vsub.s32 0, %v4691
    %v4693 = vrot.slane %v4688, %v4692
    %v4694 = vlaneseq
    %v4695 = vshrl.u32 %v4694, 7
    %v4696 = vsub.s32 1, %v4695
    %v4697 = vrot.slane %v4688, %v4696
    %v4698 = vlaneseq
    %v4699 = vshrl.u32 %v4698, 7
    %v4700 = vsub.s32 2, %v4699
    %v4701 = vrot.slane %v4688, %v4700
    %v4702 = vlaneseq
    %v4703 = vshrl.u32 %v4702, 7
    %v4704 = vsub.s32 3, %v4703
    %v4705 = vrot.slane %v4688, %v4704
    %v4710 = vmul.f32 %v4693, %v4613
    %v4711 = vmul.f32 %v4697, %v4615
    %v4712 = vmul.f32 %v4701, %v4684
    %v4713 = vmul.f32 %v4705, %v4686
    %v4714 = vadd.f32 %v4490, %v4710
    %v4715 = vadd.f32 %v4491, %v4711
    %v4716 = vadd.f32 %v4492, %v4712
    %v4717 = vadd.f32 %v4493, %v4713
    %4718 = vrot.lane.b32.xlu0 %v4033, 1
    %v4719 = vpop.permute.xlu0 %4718
    %4720 = vrot.lane.b32.xlu0 %v4037, 1
    %v4721 = vpop.permute.xlu0 %4720
    %4722 = vrot.lane.b32.xlu0 %v4041, 1
    %v4723 = vpop.permute.xlu0 %4722
    %4724 = vrot.lane.b32.xlu0 %v4034, 1
    %v4725 = vpop.permute.xlu0 %4724
    %4726 = vrot.lane.b32.xlu0 %v4038, 1
    %v4727 = vpop.permute.xlu0 %4726
    %4728 = vrot.lane.b32.xlu0 %v4042, 1
    %v4729 = vpop.permute.xlu0 %4728
    %4730 = vrot.lane.b32.xlu0 %v4035, 1
    %v4731 = vpop.permute.xlu0 %4730
    %4732 = vrot.lane.b32.xlu0 %v4039, 1
    %v4733 = vpop.permute.xlu0 %4732
    %4734 = vrot.lane.b32.xlu0 %v4043, 1
    %v4735 = vpop.permute.xlu0 %4734
    %4736 = vrot.lane.b32.xlu0 %v4036, 1
    %v4737 = vpop.permute.xlu0 %4736
    %4738 = vrot.lane.b32.xlu0 %v4040, 1
    %v4739 = vpop.permute.xlu0 %4738
    %4740 = vrot.lane.b32.xlu0 %v4044, 1
    %v4741 = vpop.permute.xlu0 %4740
    %v4742 = vsel %vm723, %v4731, %v4737
    %v4743 = vsel %vm723, %v4733, %v4739
    %v4744 = vsel %vm723, %v4735, %v4741
    %v4745 = vsel %vm723, %v4725, %v4731
    %v4746 = vsel %vm723, %v4727, %v4733
    %v4747 = vsel %vm723, %v4729, %v4735
    %v4748 = vsel %vm723, %v4719, %v4725
    %v4749 = vsel %vm723, %v4721, %v4727
    %v4750 = vsel %vm723, %v4723, %v4729
    %v4751 = vsel %vm723, %v4737, %v4719
    %v4752 = vsel %vm723, %v4739, %v4721
    %v4753 = vsel %vm723, %v4741, %v4723
    %v4754 = vld [vmem:[%s10 + $0x18] sm:$0xff]
    %v4756 = vsel %vm4082, %v4754, 0
    %v4759 = vsel %vm57, %v4753, 0
    %v4762 = vsel %vm57, %v4750, 0
    %v4765 = vsel %vm57, %v4747, 0
    %v4768 = vsel %vm57, %v4744, 0
    %4770 = vmatprep.subr.mxu0 %v4748
    %4771 = vmatpush1.msra.mxu0 %v4751
    %4772 = vmatprep.subr.mxu0 %v4749
    %4773 = vmatpush1.msra.mxu0 %v4752
    %4774 = vmatprep.subr.mxu0 %v4762
    %4775 = vmatpush1.msra.mxu0 %v4759
    %4776 = vmatprep.subr.mxu0 0.0
    %4777 = vmatpush1.msra.mxu0 0.0
    %4778 = vmatprep.subr.mxu0 0.0
    %4779 = vmatpush1.msra.mxu0 0.0
    %4780 = vmatprep.subr.mxu0 0.0
    %4781 = vmatpush1.msra.mxu0 0.0
    %4782 = vmatprep.subr.mxu0 0.0
    %4783 = vmatpush1.msra.mxu0 0.0
    %4784 = vmatprep.subr.mxu0 0.0
    %4785 = vmatpush1.msra.mxu0 0.0
    %4786 = vmatprep.subr.mxu0 0.0
    %4787 = vmatpush1.msra.mxu0 0.0
    %4788 = vmatprep.subr.mxu0 0.0
    %4789 = vmatpush1.msra.mxu0 0.0
    %4790 = vmatprep.subr.mxu0 0.0
    %4791 = vmatpush1.msra.mxu0 0.0
    %4792 = vmatprep.subr.mxu0 0.0
    %4793 = vmatpush1.msra.mxu0 0.0
    %4794 = vmatprep.subr.mxu0 0.0
    %4795 = vmatpush1.msra.mxu0 0.0
    %4796 = vmatprep.subr.mxu0 0.0
    %4797 = vmatpush1.msra.mxu0 0.0
    %4798 = vmatprep.subr.mxu0 0.0
    %4799 = vmatpush1.msra.mxu0 0.0
    %4800 = vmatprep.subr.mxu0 0.0
    %4801 = vmatpush1.msra.mxu0 0.0
    %4802 = vmatprep.subr.mxu0 0.0
    %4803 = vmatpush1.msra.mxu0 0.0
    %4804 = vmatprep.subr.mxu0 0.0
    %4805 = vmatpush1.msra.mxu0 0.0
    %4806 = vmatprep.subr.mxu0 0.0
    %4807 = vmatpush1.msra.mxu0 0.0
    %4808 = vmatprep.subr.mxu0 0.0
    %4809 = vmatpush1.msra.mxu0 0.0
    %4810 = vmatprep.subr.mxu0 0.0
    %4811 = vmatpush1.msra.mxu0 0.0
    %4812 = vmatprep.subr.mxu0 0.0
    %4813 = vmatpush1.msra.mxu0 0.0
    %4814 = vmatprep.subr.mxu0 0.0
    %4815 = vmatpush1.msra.mxu0 0.0
    %4816 = vmatprep.subr.mxu0 0.0
    %4817 = vmatpush1.msra.mxu0 0.0
    %4818 = vmatprep.subr.mxu0 0.0
    %4819 = vmatpush1.msra.mxu0 0.0
    %4820 = vmatprep.subr.mxu0 0.0
    %4821 = vmatpush1.msra.mxu0 0.0
    %4822 = vmatprep.subr.mxu0 0.0
    %4823 = vmatpush1.msra.mxu0 0.0
    %4824 = vmatprep.subr.mxu0 0.0
    %4825 = vmatpush1.msra.mxu0 0.0
    %4826 = vmatprep.subr.mxu0 0.0
    %4827 = vmatpush1.msra.mxu0 0.0
    %4828 = vmatprep.subr.mxu0 0.0
    %4829 = vmatpush1.msra.mxu0 0.0
    %4830 = vmatprep.subr.mxu0 0.0
    %4831 = vmatpush1.msra.mxu0 0.0
    %4832 = vmatprep.subr.mxu0 0.0
    %4833 = vmatpush1.msra.mxu0 0.0
    %4834 = vmatprep.mubr.f32.mxu0 0.0
    %4835 = vmatmul.mubr.f32.gmra.mrb[0].mxu0 %v4756
    %v4836 = vpop.f32.mrb[0].mxu0
    %v4837 = vadd.f32 0.0, %v4836
    %v4838 = vpop.f32.mrb[0].mxu0
    %v4839 = vadd.f32 0.0, %v4838
    %4840 = vdwg.mxu0
    %4841 = vmatprep.subr.mxu0 %v4742
    %4842 = vmatpush1.msra.mxu0 %v4745
    %4843 = vmatprep.subr.mxu0 %v4743
    %4844 = vmatpush1.msra.mxu0 %v4746
    %4845 = vmatprep.subr.mxu0 %v4768
    %4846 = vmatpush1.msra.mxu0 %v4765
    %4847 = vmatprep.subr.mxu0 0.0
    %4848 = vmatpush1.msra.mxu0 0.0
    %4849 = vmatprep.subr.mxu0 0.0
    %4850 = vmatpush1.msra.mxu0 0.0
    %4851 = vmatprep.subr.mxu0 0.0
    %4852 = vmatpush1.msra.mxu0 0.0
    %4853 = vmatprep.subr.mxu0 0.0
    %4854 = vmatpush1.msra.mxu0 0.0
    %4855 = vmatprep.subr.mxu0 0.0
    %4856 = vmatpush1.msra.mxu0 0.0
    %4857 = vmatprep.subr.mxu0 0.0
    %4858 = vmatpush1.msra.mxu0 0.0
    %4859 = vmatprep.subr.mxu0 0.0
    %4860 = vmatpush1.msra.mxu0 0.0
    %4861 = vmatprep.subr.mxu0 0.0
    %4862 = vmatpush1.msra.mxu0 0.0
    %4863 = vmatprep.subr.mxu0 0.0
    %4864 = vmatpush1.msra.mxu0 0.0
    %4865 = vmatprep.subr.mxu0 0.0
    %4866 = vmatpush1.msra.mxu0 0.0
    %4867 = vmatprep.subr.mxu0 0.0
    %4868 = vmatpush1.msra.mxu0 0.0
    %4869 = vmatprep.subr.mxu0 0.0
    %4870 = vmatpush1.msra.mxu0 0.0
    %4871 = vmatprep.subr.mxu0 0.0
    %4872 = vmatpush1.msra.mxu0 0.0
    %4873 = vmatprep.subr.mxu0 0.0
    %4874 = vmatpush1.msra.mxu0 0.0
    %4875 = vmatprep.subr.mxu0 0.0
    %4876 = vmatpush1.msra.mxu0 0.0
    %4877 = vmatprep.subr.mxu0 0.0
    %4878 = vmatpush1.msra.mxu0 0.0
    %4879 = vmatprep.subr.mxu0 0.0
    %4880 = vmatpush1.msra.mxu0 0.0
    %4881 = vmatprep.subr.mxu0 0.0
    %4882 = vmatpush1.msra.mxu0 0.0
    %4883 = vmatprep.subr.mxu0 0.0
    %4884 = vmatpush1.msra.mxu0 0.0
    %4885 = vmatprep.subr.mxu0 0.0
    %4886 = vmatpush1.msra.mxu0 0.0
    %4887 = vmatprep.subr.mxu0 0.0
    %4888 = vmatpush1.msra.mxu0 0.0
    %4889 = vmatprep.subr.mxu0 0.0
    %4890 = vmatpush1.msra.mxu0 0.0
    %4891 = vmatprep.subr.mxu0 0.0
    %4892 = vmatpush1.msra.mxu0 0.0
    %4893 = vmatprep.subr.mxu0 0.0
    %4894 = vmatpush1.msra.mxu0 0.0
    %4895 = vmatprep.subr.mxu0 0.0
    %4896 = vmatpush1.msra.mxu0 0.0
    %4897 = vmatprep.subr.mxu0 0.0
    %4898 = vmatpush1.msra.mxu0 0.0
    %4899 = vmatprep.subr.mxu0 0.0
    %4900 = vmatpush1.msra.mxu0 0.0
    %4901 = vmatprep.subr.mxu0 0.0
    %4902 = vmatpush1.msra.mxu0 0.0
    %4903 = vmatprep.subr.mxu0 0.0
    %4904 = vmatpush1.msra.mxu0 0.0
    %4905 = vmatprep.mubr.f32.mxu0 0.0
    %4906 = vmatmul.mubr.f32.gmra.mrb[0].mxu0 %v4756
    %v4907 = vpop.f32.mrb[0].mxu0
    %v4908 = vadd.f32 0.0, %v4907
    %v4909 = vpop.f32.mrb[0].mxu0
    %v4910 = vadd.f32 0.0, %v4909
    %4911 = vdwg.mxu0
    %v4912 = vld [vmem:[%s886] ss:$8 sm:$0xf]
    %v4914 = vlaneseq
    %v4915 = vshrl.u32 %v4914, 7
    %v4916 = vsub.s32 0, %v4915
    %v4917 = vrot.slane %v4912, %v4916
    %v4918 = vlaneseq
    %v4919 = vshrl.u32 %v4918, 7
    %v4920 = vsub.s32 1, %v4919
    %v4921 = vrot.slane %v4912, %v4920
    %v4922 = vlaneseq
    %v4923 = vshrl.u32 %v4922, 7
    %v4924 = vsub.s32 2, %v4923
    %v4925 = vrot.slane %v4912, %v4924
    %v4926 = vlaneseq
    %v4927 = vshrl.u32 %v4926, 7
    %v4928 = vsub.s32 3, %v4927
    %v4929 = vrot.slane %v4912, %v4928
    %v4934 = vmul.f32 %v4917, %v4837
    %v4935 = vmul.f32 %v4921, %v4839
    %v4936 = vmul.f32 %v4925, %v4908
    %v4937 = vmul.f32 %v4929, %v4910
    %v4938 = vadd.f32 %v4714, %v4934
    %v4939 = vadd.f32 %v4715, %v4935
    %v4940 = vadd.f32 %v4716, %v4936
    %v4941 = vadd.f32 %v4717, %v4937
    %v4942 = vld [vmem:[%s10 + $0x20] sm:$0xff]
    %v4944 = vsel %vm4082, %v4942, 0
    %v4947 = vsel %vm57, %v4041, 0
    %v4950 = vsel %vm57, %v4042, 0
    %v4953 = vsel %vm57, %v4043, 0
    %v4956 = vsel %vm57, %v4044, 0
    %4958 = vmatprep.subr.mxu0 %v4034
    %4959 = vmatpush1.msra.mxu0 %v4033
    %4960 = vmatprep.subr.mxu0 %v4038
    %4961 = vmatpush1.msra.mxu0 %v4037
    %4962 = vmatprep.subr.mxu0 %v4950
    %4963 = vmatpush1.msra.mxu0 %v4947
    %4964 = vmatprep.subr.mxu0 0.0
    %4965 = vmatpush1.msra.mxu0 0.0
    %4966 = vmatprep.subr.mxu0 0.0
    %4967 = vmatpush1.msra.mxu0 0.0
    %4968 = vmatprep.subr.mxu0 0.0
    %4969 = vmatpush1.msra.mxu0 0.0
    %4970 = vmatprep.subr.mxu0 0.0
    %4971 = vmatpush1.msra.mxu0 0.0
    %4972 = vmatprep.subr.mxu0 0.0
    %4973 = vmatpush1.msra.mxu0 0.0
    %4974 = vmatprep.subr.mxu0 0.0
    %4975 = vmatpush1.msra.mxu0 0.0
    %4976 = vmatprep.subr.mxu0 0.0
    %4977 = vmatpush1.msra.mxu0 0.0
    %4978 = vmatprep.subr.mxu0 0.0
    %4979 = vmatpush1.msra.mxu0 0.0
    %4980 = vmatprep.subr.mxu0 0.0
    %4981 = vmatpush1.msra.mxu0 0.0
    %4982 = vmatprep.subr.mxu0 0.0
    %4983 = vmatpush1.msra.mxu0 0.0
    %4984 = vmatprep.subr.mxu0 0.0
    %4985 = vmatpush1.msra.mxu0 0.0
    %4986 = vmatprep.subr.mxu0 0.0
    %4987 = vmatpush1.msra.mxu0 0.0
    %4988 = vmatprep.subr.mxu0 0.0
    %4989 = vmatpush1.msra.mxu0 0.0
    %4990 = vmatprep.subr.mxu0 0.0
    %4991 = vmatpush1.msra.mxu0 0.0
    %4992 = vmatprep.subr.mxu0 0.0
    %4993 = vmatpush1.msra.mxu0 0.0
    %4994 = vmatprep.subr.mxu0 0.0
    %4995 = vmatpush1.msra.mxu0 0.0
    %4996 = vmatprep.subr.mxu0 0.0
    %4997 = vmatpush1.msra.mxu0 0.0
    %4998 = vmatprep.subr.mxu0 0.0
    %4999 = vmatpush1.msra.mxu0 0.0
    %5000 = vmatprep.subr.mxu0 0.0
    %5001 = vmatpush1.msra.mxu0 0.0
    %5002 = vmatprep.subr.mxu0 0.0
    %5003 = vmatpush1.msra.mxu0 0.0
    %5004 = vmatprep.subr.mxu0 0.0
    %5005 = vmatpush1.msra.mxu0 0.0
    %5006 = vmatprep.subr.mxu0 0.0
    %5007 = vmatpush1.msra.mxu0 0.0
    %5008 = vmatprep.subr.mxu0 0.0
    %5009 = vmatpush1.msra.mxu0 0.0
    %5010 = vmatprep.subr.mxu0 0.0
    %5011 = vmatpush1.msra.mxu0 0.0
    %5012 = vmatprep.subr.mxu0 0.0
    %5013 = vmatpush1.msra.mxu0 0.0
    %5014 = vmatprep.subr.mxu0 0.0
    %5015 = vmatpush1.msra.mxu0 0.0
    %5016 = vmatprep.subr.mxu0 0.0
    %5017 = vmatpush1.msra.mxu0 0.0
    %5018 = vmatprep.subr.mxu0 0.0
    %5019 = vmatpush1.msra.mxu0 0.0
    %5020 = vmatprep.subr.mxu0 0.0
    %5021 = vmatpush1.msra.mxu0 0.0
    %5022 = vmatprep.mubr.f32.mxu0 0.0
    %5023 = vmatmul.mubr.f32.gmra.mrb[0].mxu0 %v4944
    %v5024 = vpop.f32.mrb[0].mxu0
    %v5025 = vadd.f32 0.0, %v5024
    %v5026 = vpop.f32.mrb[0].mxu0
    %v5027 = vadd.f32 0.0, %v5026
    %5028 = vdwg.mxu0
    %5029 = vmatprep.subr.mxu0 %v4036
    %5030 = vmatpush1.msra.mxu0 %v4035
    %5031 = vmatprep.subr.mxu0 %v4040
    %5032 = vmatpush1.msra.mxu0 %v4039
    %5033 = vmatprep.subr.mxu0 %v4956
    %5034 = vmatpush1.msra.mxu0 %v4953
    %5035 = vmatprep.subr.mxu0 0.0
    %5036 = vmatpush1.msra.mxu0 0.0
    %5037 = vmatprep.subr.mxu0 0.0
    %5038 = vmatpush1.msra.mxu0 0.0
    %5039 = vmatprep.subr.mxu0 0.0
    %5040 = vmatpush1.msra.mxu0 0.0
    %5041 = vmatprep.subr.mxu0 0.0
    %5042 = vmatpush1.msra.mxu0 0.0
    %5043 = vmatprep.subr.mxu0 0.0
    %5044 = vmatpush1.msra.mxu0 0.0
    %5045 = vmatprep.subr.mxu0 0.0
    %5046 = vmatpush1.msra.mxu0 0.0
    %5047 = vmatprep.subr.mxu0 0.0
    %5048 = vmatpush1.msra.mxu0 0.0
    %5049 = vmatprep.subr.mxu0 0.0
    %5050 = vmatpush1.msra.mxu0 0.0
    %5051 = vmatprep.subr.mxu0 0.0
    %5052 = vmatpush1.msra.mxu0 0.0
    %5053 = vmatprep.subr.mxu0 0.0
    %5054 = vmatpush1.msra.mxu0 0.0
    %5055 = vmatprep.subr.mxu0 0.0
    %5056 = vmatpush1.msra.mxu0 0.0
    %5057 = vmatprep.subr.mxu0 0.0
    %5058 = vmatpush1.msra.mxu0 0.0
    %5059 = vmatprep.subr.mxu0 0.0
    %5060 = vmatpush1.msra.mxu0 0.0
    %5061 = vmatprep.subr.mxu0 0.0
    %5062 = vmatpush1.msra.mxu0 0.0
    %5063 = vmatprep.subr.mxu0 0.0
    %5064 = vmatpush1.msra.mxu0 0.0
    %5065 = vmatprep.subr.mxu0 0.0
    %5066 = vmatpush1.msra.mxu0 0.0
    %5067 = vmatprep.subr.mxu0 0.0
    %5068 = vmatpush1.msra.mxu0 0.0
    %5069 = vmatprep.subr.mxu0 0.0
    %5070 = vmatpush1.msra.mxu0 0.0
    %5071 = vmatprep.subr.mxu0 0.0
    %5072 = vmatpush1.msra.mxu0 0.0
    %5073 = vmatprep.subr.mxu0 0.0
    %5074 = vmatpush1.msra.mxu0 0.0
    %5075 = vmatprep.subr.mxu0 0.0
    %5076 = vmatpush1.msra.mxu0 0.0
    %5077 = vmatprep.subr.mxu0 0.0
    %5078 = vmatpush1.msra.mxu0 0.0
    %5079 = vmatprep.subr.mxu0 0.0
    %5080 = vmatpush1.msra.mxu0 0.0
    %5081 = vmatprep.subr.mxu0 0.0
    %5082 = vmatpush1.msra.mxu0 0.0
    %5083 = vmatprep.subr.mxu0 0.0
    %5084 = vmatpush1.msra.mxu0 0.0
    %5085 = vmatprep.subr.mxu0 0.0
    %5086 = vmatpush1.msra.mxu0 0.0
    %5087 = vmatprep.subr.mxu0 0.0
    %5088 = vmatpush1.msra.mxu0 0.0
    %5089 = vmatprep.subr.mxu0 0.0
    %5090 = vmatpush1.msra.mxu0 0.0
    %5091 = vmatprep.subr.mxu0 0.0
    %5092 = vmatpush1.msra.mxu0 0.0
    %5093 = vmatprep.mubr.f32.mxu0 0.0
    %5094 = vmatmul.mubr.f32.gmra.mrb[0].mxu0 %v4944
    %v5095 = vpop.f32.mrb[0].mxu0
    %v5096 = vadd.f32 0.0, %v5095
    %v5097 = vpop.f32.mrb[0].mxu0
    %v5098 = vadd.f32 0.0, %v5097
    %5099 = vdwg.mxu0
    %v5100 = vadd.f32 %v4938, %v5025
    %v5101 = vadd.f32 %v4939, %v5027
    %v5102 = vadd.f32 %v4940, %v5096
    %v5103 = vadd.f32 %v4941, %v5098
    %5104 = vrot.lane.b32.xlu0 %v4033, 127
    %v5105 = vpop.permute.xlu0 %5104
    %5106 = vrot.lane.b32.xlu0 %v4037, 127
    %v5107 = vpop.permute.xlu0 %5106
    %5108 = vrot.lane.b32.xlu0 %v4041, 127
    %v5109 = vpop.permute.xlu0 %5108
    %5110 = vrot.lane.b32.xlu0 %v4034, 127
    %v5111 = vpop.permute.xlu0 %5110
    %5112 = vrot.lane.b32.xlu0 %v4038, 127
    %v5113 = vpop.permute.xlu0 %5112
    %5114 = vrot.lane.b32.xlu0 %v4042, 127
    %v5115 = vpop.permute.xlu0 %5114
    %5116 = vrot.lane.b32.xlu0 %v4035, 127
    %v5117 = vpop.permute.xlu0 %5116
    %5118 = vrot.lane.b32.xlu0 %v4039, 127
    %v5119 = vpop.permute.xlu0 %5118
    %5120 = vrot.lane.b32.xlu0 %v4043, 127
    %v5121 = vpop.permute.xlu0 %5120
    %5122 = vrot.lane.b32.xlu0 %v4036, 127
    %v5123 = vpop.permute.xlu0 %5122
    %5124 = vrot.lane.b32.xlu0 %v4040, 127
    %v5125 = vpop.permute.xlu0 %5124
    %5126 = vrot.lane.b32.xlu0 %v4044, 127
    %v5127 = vpop.permute.xlu0 %5126
    %v5128 = vsel %vm1087, %v5117, %v5123
    %v5129 = vsel %vm1087, %v5119, %v5125
    %v5130 = vsel %vm1087, %v5121, %v5127
    %v5131 = vsel %vm1087, %v5111, %v5117
    %v5132 = vsel %vm1087, %v5113, %v5119
    %v5133 = vsel %vm1087, %v5115, %v5121
    %v5134 = vsel %vm1087, %v5105, %v5111
    %v5135 = vsel %vm1087, %v5107, %v5113
    %v5136 = vsel %vm1087, %v5109, %v5115
    %v5137 = vsel %vm1087, %v5123, %v5105
    %v5138 = vsel %vm1087, %v5125, %v5107
    %v5139 = vsel %vm1087, %v5127, %v5109
    %v5140 = vld [vmem:[%s10 + $0x28] sm:$0xff]
    %v5142 = vsel %vm4082, %v5140, 0
    %v5145 = vsel %vm57, %v5136, 0
    %v5148 = vsel %vm57, %v5133, 0
    %v5151 = vsel %vm57, %v5130, 0
    %v5154 = vsel %vm57, %v5139, 0
    %5156 = vmatprep.subr.mxu0 %v5131
    %5157 = vmatpush1.msra.mxu0 %v5134
    %5158 = vmatprep.subr.mxu0 %v5132
    %5159 = vmatpush1.msra.mxu0 %v5135
    %5160 = vmatprep.subr.mxu0 %v5148
    %5161 = vmatpush1.msra.mxu0 %v5145
    %5162 = vmatprep.subr.mxu0 0.0
    %5163 = vmatpush1.msra.mxu0 0.0
    %5164 = vmatprep.subr.mxu0 0.0
    %5165 = vmatpush1.msra.mxu0 0.0
    %5166 = vmatprep.subr.mxu0 0.0
    %5167 = vmatpush1.msra.mxu0 0.0
    %5168 = vmatprep.subr.mxu0 0.0
    %5169 = vmatpush1.msra.mxu0 0.0
    %5170 = vmatprep.subr.mxu0 0.0
    %5171 = vmatpush1.msra.mxu0 0.0
    %5172 = vmatprep.subr.mxu0 0.0
    %5173 = vmatpush1.msra.mxu0 0.0
    %5174 = vmatprep.subr.mxu0 0.0
    %5175 = vmatpush1.msra.mxu0 0.0
    %5176 = vmatprep.subr.mxu0 0.0
    %5177 = vmatpush1.msra.mxu0 0.0
    %5178 = vmatprep.subr.mxu0 0.0
    %5179 = vmatpush1.msra.mxu0 0.0
    %5180 = vmatprep.subr.mxu0 0.0
    %5181 = vmatpush1.msra.mxu0 0.0
    %5182 = vmatprep.subr.mxu0 0.0
    %5183 = vmatpush1.msra.mxu0 0.0
    %5184 = vmatprep.subr.mxu0 0.0
    %5185 = vmatpush1.msra.mxu0 0.0
    %5186 = vmatprep.subr.mxu0 0.0
    %5187 = vmatpush1.msra.mxu0 0.0
    %5188 = vmatprep.subr.mxu0 0.0
    %5189 = vmatpush1.msra.mxu0 0.0
    %5190 = vmatprep.subr.mxu0 0.0
    %5191 = vmatpush1.msra.mxu0 0.0
    %5192 = vmatprep.subr.mxu0 0.0
    %5193 = vmatpush1.msra.mxu0 0.0
    %5194 = vmatprep.subr.mxu0 0.0
    %5195 = vmatpush1.msra.mxu0 0.0
    %5196 = vmatprep.subr.mxu0 0.0
    %5197 = vmatpush1.msra.mxu0 0.0
    %5198 = vmatprep.subr.mxu0 0.0
    %5199 = vmatpush1.msra.mxu0 0.0
    %5200 = vmatprep.subr.mxu0 0.0
    %5201 = vmatpush1.msra.mxu0 0.0
    %5202 = vmatprep.subr.mxu0 0.0
    %5203 = vmatpush1.msra.mxu0 0.0
    %5204 = vmatprep.subr.mxu0 0.0
    %5205 = vmatpush1.msra.mxu0 0.0
    %5206 = vmatprep.subr.mxu0 0.0
    %5207 = vmatpush1.msra.mxu0 0.0
    %5208 = vmatprep.subr.mxu0 0.0
    %5209 = vmatpush1.msra.mxu0 0.0
    %5210 = vmatprep.subr.mxu0 0.0
    %5211 = vmatpush1.msra.mxu0 0.0
    %5212 = vmatprep.subr.mxu0 0.0
    %5213 = vmatpush1.msra.mxu0 0.0
    %5214 = vmatprep.subr.mxu0 0.0
    %5215 = vmatpush1.msra.mxu0 0.0
    %5216 = vmatprep.subr.mxu0 0.0
    %5217 = vmatpush1.msra.mxu0 0.0
    %5218 = vmatprep.subr.mxu0 0.0
    %5219 = vmatpush1.msra.mxu0 0.0
    %5220 = vmatprep.mubr.f32.mxu0 0.0
    %5221 = vmatmul.mubr.f32.gmra.mrb[0].mxu0 %v5142
    %v5222 = vpop.f32.mrb[0].mxu0
    %v5223 = vadd.f32 0.0, %v5222
    %v5224 = vpop.f32.mrb[0].mxu0
    %v5225 = vadd.f32 0.0, %v5224
    %5226 = vdwg.mxu0
    %5227 = vmatprep.subr.mxu0 %v5137
    %5228 = vmatpush1.msra.mxu0 %v5128
    %5229 = vmatprep.subr.mxu0 %v5138
    %5230 = vmatpush1.msra.mxu0 %v5129
    %5231 = vmatprep.subr.mxu0 %v5154
    %5232 = vmatpush1.msra.mxu0 %v5151
    %5233 = vmatprep.subr.mxu0 0.0
    %5234 = vmatpush1.msra.mxu0 0.0
    %5235 = vmatprep.subr.mxu0 0.0
    %5236 = vmatpush1.msra.mxu0 0.0
    %5237 = vmatprep.subr.mxu0 0.0
    %5238 = vmatpush1.msra.mxu0 0.0
    %5239 = vmatprep.subr.mxu0 0.0
    %5240 = vmatpush1.msra.mxu0 0.0
    %5241 = vmatprep.subr.mxu0 0.0
    %5242 = vmatpush1.msra.mxu0 0.0
    %5243 = vmatprep.subr.mxu0 0.0
    %5244 = vmatpush1.msra.mxu0 0.0
    %5245 = vmatprep.subr.mxu0 0.0
    %5246 = vmatpush1.msra.mxu0 0.0
    %5247 = vmatprep.subr.mxu0 0.0
    %5248 = vmatpush1.msra.mxu0 0.0
    %5249 = vmatprep.subr.mxu0 0.0
    %5250 = vmatpush1.msra.mxu0 0.0
    %5251 = vmatprep.subr.mxu0 0.0
    %5252 = vmatpush1.msra.mxu0 0.0
    %5253 = vmatprep.subr.mxu0 0.0
    %5254 = vmatpush1.msra.mxu0 0.0
    %5255 = vmatprep.subr.mxu0 0.0
    %5256 = vmatpush1.msra.mxu0 0.0
    %5257 = vmatprep.subr.mxu0 0.0
    %5258 = vmatpush1.msra.mxu0 0.0
    %5259 = vmatprep.subr.mxu0 0.0
    %5260 = vmatpush1.msra.mxu0 0.0
    %5261 = vmatprep.subr.mxu0 0.0
    %5262 = vmatpush1.msra.mxu0 0.0
    %5263 = vmatprep.subr.mxu0 0.0
    %5264 = vmatpush1.msra.mxu0 0.0
    %5265 = vmatprep.subr.mxu0 0.0
    %5266 = vmatpush1.msra.mxu0 0.0
    %5267 = vmatprep.subr.mxu0 0.0
    %5268 = vmatpush1.msra.mxu0 0.0
    %5269 = vmatprep.subr.mxu0 0.0
    %5270 = vmatpush1.msra.mxu0 0.0
    %5271 = vmatprep.subr.mxu0 0.0
    %5272 = vmatpush1.msra.mxu0 0.0
    %5273 = vmatprep.subr.mxu0 0.0
    %5274 = vmatpush1.msra.mxu0 0.0
    %5275 = vmatprep.subr.mxu0 0.0
    %5276 = vmatpush1.msra.mxu0 0.0
    %5277 = vmatprep.subr.mxu0 0.0
    %5278 = vmatpush1.msra.mxu0 0.0
    %5279 = vmatprep.subr.mxu0 0.0
    %5280 = vmatpush1.msra.mxu0 0.0
    %5281 = vmatprep.subr.mxu0 0.0
    %5282 = vmatpush1.msra.mxu0 0.0
    %5283 = vmatprep.subr.mxu0 0.0
    %5284 = vmatpush1.msra.mxu0 0.0
    %5285 = vmatprep.subr.mxu0 0.0
    %5286 = vmatpush1.msra.mxu0 0.0
    %5287 = vmatprep.subr.mxu0 0.0
    %5288 = vmatpush1.msra.mxu0 0.0
    %5289 = vmatprep.subr.mxu0 0.0
    %5290 = vmatpush1.msra.mxu0 0.0
    %5291 = vmatprep.mubr.f32.mxu0 0.0
    %5292 = vmatmul.mubr.f32.gmra.mrb[0].mxu0 %v5142
    %v5293 = vpop.f32.mrb[0].mxu0
    %v5294 = vadd.f32 0.0, %v5293
    %v5295 = vpop.f32.mrb[0].mxu0
    %v5296 = vadd.f32 0.0, %v5295
    %5297 = vdwg.mxu0
    %v5298 = vld [vmem:[%s1250] ss:$8 sm:$0xf]
    %v5300 = vlaneseq
    %v5301 = vshrl.u32 %v5300, 7
    %v5302 = vsub.s32 0, %v5301
    %v5303 = vrot.slane %v5298, %v5302
    %v5304 = vlaneseq
    %v5305 = vshrl.u32 %v5304, 7
    %v5306 = vsub.s32 1, %v5305
    %v5307 = vrot.slane %v5298, %v5306
    %v5308 = vlaneseq
    %v5309 = vshrl.u32 %v5308, 7
    %v5310 = vsub.s32 2, %v5309
    %v5311 = vrot.slane %v5298, %v5310
    %v5312 = vlaneseq
    %v5313 = vshrl.u32 %v5312, 7
    %v5314 = vsub.s32 3, %v5313
    %v5315 = vrot.slane %v5298, %v5314
    %v5320 = vmul.f32 %v5303, %v5223
    %v5321 = vmul.f32 %v5307, %v5225
    %v5322 = vmul.f32 %v5311, %v5294
    %v5323 = vmul.f32 %v5315, %v5296
    %v5324 = vadd.f32 %v5100, %v5320
    %v5325 = vadd.f32 %v5101, %v5321
    %v5326 = vadd.f32 %v5102, %v5322
    %v5327 = vadd.f32 %v5103, %v5323
    %5328 = vrot.lane.b32.xlu0 %v4033, 113
    %v5329 = vpop.permute.xlu0 %5328
    %5330 = vrot.lane.b32.xlu0 %v4037, 113
    %v5331 = vpop.permute.xlu0 %5330
    %5332 = vrot.lane.b32.xlu0 %v4041, 113
    %v5333 = vpop.permute.xlu0 %5332
    %5334 = vrot.lane.b32.xlu0 %v4034, 113
    %v5335 = vpop.permute.xlu0 %5334
    %5336 = vrot.lane.b32.xlu0 %v4038, 113
    %v5337 = vpop.permute.xlu0 %5336
    %5338 = vrot.lane.b32.xlu0 %v4042, 113
    %v5339 = vpop.permute.xlu0 %5338
    %5340 = vrot.lane.b32.xlu0 %v4035, 113
    %v5341 = vpop.permute.xlu0 %5340
    %5342 = vrot.lane.b32.xlu0 %v4039, 113
    %v5343 = vpop.permute.xlu0 %5342
    %5344 = vrot.lane.b32.xlu0 %v4043, 113
    %v5345 = vpop.permute.xlu0 %5344
    %5346 = vrot.lane.b32.xlu0 %v4036, 113
    %v5347 = vpop.permute.xlu0 %5346
    %5348 = vrot.lane.b32.xlu0 %v4040, 113
    %v5349 = vpop.permute.xlu0 %5348
    %5350 = vrot.lane.b32.xlu0 %v4044, 113
    %v5351 = vpop.permute.xlu0 %5350
    %v5352 = vsel %vm1289, %v5341, %v5347
    %v5353 = vsel %vm1289, %v5343, %v5349
    %v5354 = vsel %vm1289, %v5345, %v5351
    %v5355 = vsel %vm1289, %v5335, %v5341
    %v5356 = vsel %vm1289, %v5337, %v5343
    %v5357 = vsel %vm1289, %v5339, %v5345
    %v5358 = vsel %vm1289, %v5329, %v5335
    %v5359 = vsel %vm1289, %v5331, %v5337
    %v5360 = vsel %vm1289, %v5333, %v5339
    %v5361 = vsel %vm1289, %v5347, %v5329
    %v5362 = vsel %vm1289, %v5349, %v5331
    %v5363 = vsel %vm1289, %v5351, %v5333
    %v5364 = vld [vmem:[%s10 + $0x30] sm:$0xff]
    %v5366 = vsel %vm4082, %v5364, 0
    %v5369 = vsel %vm57, %v5360, 0
    %v5372 = vsel %vm57, %v5357, 0
    %v5375 = vsel %vm57, %v5354, 0
    %v5378 = vsel %vm57, %v5363, 0
    %5380 = vmatprep.subr.mxu0 %v5355
    %5381 = vmatpush1.msra.mxu0 %v5358
    %5382 = vmatprep.subr.mxu0 %v5356
    %5383 = vmatpush1.msra.mxu0 %v5359
    %5384 = vmatprep.subr.mxu0 %v5372
    %5385 = vmatpush1.msra.mxu0 %v5369
    %5386 = vmatprep.subr.mxu0 0.0
    %5387 = vmatpush1.msra.mxu0 0.0
    %5388 = vmatprep.subr.mxu0 0.0
    %5389 = vmatpush1.msra.mxu0 0.0
    %5390 = vmatprep.subr.mxu0 0.0
    %5391 = vmatpush1.msra.mxu0 0.0
    %5392 = vmatprep.subr.mxu0 0.0
    %5393 = vmatpush1.msra.mxu0 0.0
    %5394 = vmatprep.subr.mxu0 0.0
    %5395 = vmatpush1.msra.mxu0 0.0
    %5396 = vmatprep.subr.mxu0 0.0
    %5397 = vmatpush1.msra.mxu0 0.0
    %5398 = vmatprep.subr.mxu0 0.0
    %5399 = vmatpush1.msra.mxu0 0.0
    %5400 = vmatprep.subr.mxu0 0.0
    %5401 = vmatpush1.msra.mxu0 0.0
    %5402 = vmatprep.subr.mxu0 0.0
    %5403 = vmatpush1.msra.mxu0 0.0
    %5404 = vmatprep.subr.mxu0 0.0
    %5405 = vmatpush1.msra.mxu0 0.0
    %5406 = vmatprep.subr.mxu0 0.0
    %5407 = vmatpush1.msra.mxu0 0.0
    %5408 = vmatprep.subr.mxu0 0.0
    %5409 = vmatpush1.msra.mxu0 0.0
    %5410 = vmatprep.subr.mxu0 0.0
    %5411 = vmatpush1.msra.mxu0 0.0
    %5412 = vmatprep.subr.mxu0 0.0
    %5413 = vmatpush1.msra.mxu0 0.0
    %5414 = vmatprep.subr.mxu0 0.0
    %5415 = vmatpush1.msra.mxu0 0.0
    %5416 = vmatprep.subr.mxu0 0.0
    %5417 = vmatpush1.msra.mxu0 0.0
    %5418 = vmatprep.subr.mxu0 0.0
    %5419 = vmatpush1.msra.mxu0 0.0
    %5420 = vmatprep.subr.mxu0 0.0
    %5421 = vmatpush1.msra.mxu0 0.0
    %5422 = vmatprep.subr.mxu0 0.0
    %5423 = vmatpush1.msra.mxu0 0.0
    %5424 = vmatprep.subr.mxu0 0.0
    %5425 = vmatpush1.msra.mxu0 0.0
    %5426 = vmatprep.subr.mxu0 0.0
    %5427 = vmatpush1.msra.mxu0 0.0
    %5428 = vmatprep.subr.mxu0 0.0
    %5429 = vmatpush1.msra.mxu0 0.0
    %5430 = vmatprep.subr.mxu0 0.0
    %5431 = vmatpush1.msra.mxu0 0.0
    %5432 = vmatprep.subr.mxu0 0.0
    %5433 = vmatpush1.msra.mxu0 0.0
    %5434 = vmatprep.subr.mxu0 0.0
    %5435 = vmatpush1.msra.mxu0 0.0
    %5436 = vmatprep.subr.mxu0 0.0
    %5437 = vmatpush1.msra.mxu0 0.0
    %5438 = vmatprep.subr.mxu0 0.0
    %5439 = vmatpush1.msra.mxu0 0.0
    %5440 = vmatprep.subr.mxu0 0.0
    %5441 = vmatpush1.msra.mxu0 0.0
    %5442 = vmatprep.subr.mxu0 0.0
    %5443 = vmatpush1.msra.mxu0 0.0
    %5444 = vmatprep.mubr.f32.mxu0 0.0
    %5445 = vmatmul.mubr.f32.gmra.mrb[0].mxu0 %v5366
    %v5446 = vpop.f32.mrb[0].mxu0
    %v5447 = vadd.f32 0.0, %v5446
    %v5448 = vpop.f32.mrb[0].mxu0
    %v5449 = vadd.f32 0.0, %v5448
    %5450 = vdwg.mxu0
    %5451 = vmatprep.subr.mxu0 %v5361
    %5452 = vmatpush1.msra.mxu0 %v5352
    %5453 = vmatprep.subr.mxu0 %v5362
    %5454 = vmatpush1.msra.mxu0 %v5353
    %5455 = vmatprep.subr.mxu0 %v5378
    %5456 = vmatpush1.msra.mxu0 %v5375
    %5457 = vmatprep.subr.mxu0 0.0
    %5458 = vmatpush1.msra.mxu0 0.0
    %5459 = vmatprep.subr.mxu0 0.0
    %5460 = vmatpush1.msra.mxu0 0.0
    %5461 = vmatprep.subr.mxu0 0.0
    %5462 = vmatpush1.msra.mxu0 0.0
    %5463 = vmatprep.subr.mxu0 0.0
    %5464 = vmatpush1.msra.mxu0 0.0
    %5465 = vmatprep.subr.mxu0 0.0
    %5466 = vmatpush1.msra.mxu0 0.0
    %5467 = vmatprep.subr.mxu0 0.0
    %5468 = vmatpush1.msra.mxu0 0.0
    %5469 = vmatprep.subr.mxu0 0.0
    %5470 = vmatpush1.msra.mxu0 0.0
    %5471 = vmatprep.subr.mxu0 0.0
    %5472 = vmatpush1.msra.mxu0 0.0
    %5473 = vmatprep.subr.mxu0 0.0
    %5474 = vmatpush1.msra.mxu0 0.0
    %5475 = vmatprep.subr.mxu0 0.0
    %5476 = vmatpush1.msra.mxu0 0.0
    %5477 = vmatprep.subr.mxu0 0.0
    %5478 = vmatpush1.msra.mxu0 0.0
    %5479 = vmatprep.subr.mxu0 0.0
    %5480 = vmatpush1.msra.mxu0 0.0
    %5481 = vmatprep.subr.mxu0 0.0
    %5482 = vmatpush1.msra.mxu0 0.0
    %5483 = vmatprep.subr.mxu0 0.0
    %5484 = vmatpush1.msra.mxu0 0.0
    %5485 = vmatprep.subr.mxu0 0.0
    %5486 = vmatpush1.msra.mxu0 0.0
    %5487 = vmatprep.subr.mxu0 0.0
    %5488 = vmatpush1.msra.mxu0 0.0
    %5489 = vmatprep.subr.mxu0 0.0
    %5490 = vmatpush1.msra.mxu0 0.0
    %5491 = vmatprep.subr.mxu0 0.0
    %5492 = vmatpush1.msra.mxu0 0.0
    %5493 = vmatprep.subr.mxu0 0.0
    %5494 = vmatpush1.msra.mxu0 0.0
    %5495 = vmatprep.subr.mxu0 0.0
    %5496 = vmatpush1.msra.mxu0 0.0
    %5497 = vmatprep.subr.mxu0 0.0
    %5498 = vmatpush1.msra.mxu0 0.0
    %5499 = vmatprep.subr.mxu0 0.0
    %5500 = vmatpush1.msra.mxu0 0.0
    %5501 = vmatprep.subr.mxu0 0.0
    %5502 = vmatpush1.msra.mxu0 0.0
    %5503 = vmatprep.subr.mxu0 0.0
    %5504 = vmatpush1.msra.mxu0 0.0
    %5505 = vmatprep.subr.mxu0 0.0
    %5506 = vmatpush1.msra.mxu0 0.0
    %5507 = vmatprep.subr.mxu0 0.0
    %5508 = vmatpush1.msra.mxu0 0.0
    %5509 = vmatprep.subr.mxu0 0.0
    %5510 = vmatpush1.msra.mxu0 0.0
    %5511 = vmatprep.subr.mxu0 0.0
    %5512 = vmatpush1.msra.mxu0 0.0
    %5513 = vmatprep.subr.mxu0 0.0
    %5514 = vmatpush1.msra.mxu0 0.0
    %5515 = vmatprep.mubr.f32.mxu0 0.0
    %5516 = vmatmul.mubr.f32.gmra.mrb[0].mxu0 %v5366
    %v5517 = vpop.f32.mrb[0].mxu0
    %v5518 = vadd.f32 0.0, %v5517
    %v5519 = vpop.f32.mrb[0].mxu0
    %v5520 = vadd.f32 0.0, %v5519
    %5521 = vdwg.mxu0
    %v5522 = vld [vmem:[%s1452] ss:$8 sm:$0xf]
    %v5524 = vlaneseq
    %v5525 = vshrl.u32 %v5524, 7
    %v5526 = vsub.s32 0, %v5525
    %v5527 = vrot.slane %v5522, %v5526
    %v5528 = vlaneseq
    %v5529 = vshrl.u32 %v5528, 7
    %v5530 = vsub.s32 1, %v5529
    %v5531 = vrot.slane %v5522, %v5530
    %v5532 = vlaneseq
    %v5533 = vshrl.u32 %v5532, 7
    %v5534 = vsub.s32 2, %v5533
    %v5535 = vrot.slane %v5522, %v5534
    %v5536 = vlaneseq
    %v5537 = vshrl.u32 %v5536, 7
    %v5538 = vsub.s32 3, %v5537
    %v5539 = vrot.slane %v5522, %v5538
    %v5544 = vmul.f32 %v5527, %v5447
    %v5545 = vmul.f32 %v5531, %v5449
    %v5546 = vmul.f32 %v5535, %v5518
    %v5547 = vmul.f32 %v5539, %v5520
    %v5548 = vadd.f32 %v5324, %v5544
    %v5549 = vadd.f32 %v5325, %v5545
    %v5550 = vadd.f32 %v5326, %v5546
    %v5551 = vadd.f32 %v5327, %v5547
    %5552 = vrot.lane.b32.xlu0 %v4033, 112
    %v5553 = vpop.permute.xlu0 %5552
    %5554 = vrot.lane.b32.xlu0 %v4037, 112
    %v5555 = vpop.permute.xlu0 %5554
    %5556 = vrot.lane.b32.xlu0 %v4041, 112
    %v5557 = vpop.permute.xlu0 %5556
    %5558 = vrot.lane.b32.xlu0 %v4034, 112
    %v5559 = vpop.permute.xlu0 %5558
    %5560 = vrot.lane.b32.xlu0 %v4038, 112
    %v5561 = vpop.permute.xlu0 %5560
    %5562 = vrot.lane.b32.xlu0 %v4042, 112
    %v5563 = vpop.permute.xlu0 %5562
    %5564 = vrot.lane.b32.xlu0 %v4035, 112
    %v5565 = vpop.permute.xlu0 %5564
    %5566 = vrot.lane.b32.xlu0 %v4039, 112
    %v5567 = vpop.permute.xlu0 %5566
    %5568 = vrot.lane.b32.xlu0 %v4043, 112
    %v5569 = vpop.permute.xlu0 %5568
    %5570 = vrot.lane.b32.xlu0 %v4036, 112
    %v5571 = vpop.permute.xlu0 %5570
    %5572 = vrot.lane.b32.xlu0 %v4040, 112
    %v5573 = vpop.permute.xlu0 %5572
    %5574 = vrot.lane.b32.xlu0 %v4044, 112
    %v5575 = vpop.permute.xlu0 %5574
    %v5576 = vsel %vm1491, %v5565, %v5571
    %v5577 = vsel %vm1491, %v5567, %v5573
    %v5578 = vsel %vm1491, %v5569, %v5575
    %v5579 = vsel %vm1491, %v5559, %v5565
    %v5580 = vsel %vm1491, %v5561, %v5567
    %v5581 = vsel %vm1491, %v5563, %v5569
    %v5582 = vsel %vm1491, %v5553, %v5559
    %v5583 = vsel %vm1491, %v5555, %v5561
    %v5584 = vsel %vm1491, %v5557, %v5563
    %v5585 = vsel %vm1491, %v5571, %v5553
    %v5586 = vsel %vm1491, %v5573, %v5555
    %v5587 = vsel %vm1491, %v5575, %v5557
    %v5588 = vld [vmem:[%s10 + $0x38] sm:$0xff]
    %v5590 = vsel %vm4082, %v5588, 0
    %v5593 = vsel %vm57, %v5584, 0
    %v5596 = vsel %vm57, %v5581, 0
    %v5599 = vsel %vm57, %v5578, 0
    %v5602 = vsel %vm57, %v5587, 0
    %5604 = vmatprep.subr.mxu0 %v5579
    %5605 = vmatpush1.msra.mxu0 %v5582
    %5606 = vmatprep.subr.mxu0 %v5580
    %5607 = vmatpush1.msra.mxu0 %v5583
    %5608 = vmatprep.subr.mxu0 %v5596
    %5609 = vmatpush1.msra.mxu0 %v5593
    %5610 = vmatprep.subr.mxu0 0.0
    %5611 = vmatpush1.msra.mxu0 0.0
    %5612 = vmatprep.subr.mxu0 0.0
    %5613 = vmatpush1.msra.mxu0 0.0
    %5614 = vmatprep.subr.mxu0 0.0
    %5615 = vmatpush1.msra.mxu0 0.0
    %5616 = vmatprep.subr.mxu0 0.0
    %5617 = vmatpush1.msra.mxu0 0.0
    %5618 = vmatprep.subr.mxu0 0.0
    %5619 = vmatpush1.msra.mxu0 0.0
    %5620 = vmatprep.subr.mxu0 0.0
    %5621 = vmatpush1.msra.mxu0 0.0
    %5622 = vmatprep.subr.mxu0 0.0
    %5623 = vmatpush1.msra.mxu0 0.0
    %5624 = vmatprep.subr.mxu0 0.0
    %5625 = vmatpush1.msra.mxu0 0.0
    %5626 = vmatprep.subr.mxu0 0.0
    %5627 = vmatpush1.msra.mxu0 0.0
    %5628 = vmatprep.subr.mxu0 0.0
    %5629 = vmatpush1.msra.mxu0 0.0
    %5630 = vmatprep.subr.mxu0 0.0
    %5631 = vmatpush1.msra.mxu0 0.0
    %5632 = vmatprep.subr.mxu0 0.0
    %5633 = vmatpush1.msra.mxu0 0.0
    %5634 = vmatprep.subr.mxu0 0.0
    %5635 = vmatpush1.msra.mxu0 0.0
    %5636 = vmatprep.subr.mxu0 0.0
    %5637 = vmatpush1.msra.mxu0 0.0
    %5638 = vmatprep.subr.mxu0 0.0
    %5639 = vmatpush1.msra.mxu0 0.0
    %5640 = vmatprep.subr.mxu0 0.0
    %5641 = vmatpush1.msra.mxu0 0.0
    %5642 = vmatprep.subr.mxu0 0.0
    %5643 = vmatpush1.msra.mxu0 0.0
    %5644 = vmatprep.subr.mxu0 0.0
    %5645 = vmatpush1.msra.mxu0 0.0
    %5646 = vmatprep.subr.mxu0 0.0
    %5647 = vmatpush1.msra.mxu0 0.0
    %5648 = vmatprep.subr.mxu0 0.0
    %5649 = vmatpush1.msra.mxu0 0.0
    %5650 = vmatprep.subr.mxu0 0.0
    %5651 = vmatpush1.msra.mxu0 0.0
    %5652 = vmatprep.subr.mxu0 0.0
    %5653 = vmatpush1.msra.mxu0 0.0
    %5654 = vmatprep.subr.mxu0 0.0
    %5655 = vmatpush1.msra.mxu0 0.0
    %5656 = vmatprep.subr.mxu0 0.0
    %5657 = vmatpush1.msra.mxu0 0.0
    %5658 = vmatprep.subr.mxu0 0.0
    %5659 = vmatpush1.msra.mxu0 0.0
    %5660 = vmatprep.subr.mxu0 0.0
    %5661 = vmatpush1.msra.mxu0 0.0
    %5662 = vmatprep.subr.mxu0 0.0
    %5663 = vmatpush1.msra.mxu0 0.0
    %5664 = vmatprep.subr.mxu0 0.0
    %5665 = vmatpush1.msra.mxu0 0.0
    %5666 = vmatprep.subr.mxu0 0.0
    %5667 = vmatpush1.msra.mxu0 0.0
    %5668 = vmatprep.mubr.f32.mxu0 0.0
    %5669 = vmatmul.mubr.f32.gmra.mrb[0].mxu0 %v5590
    %v5670 = vpop.f32.mrb[0].mxu0
    %v5671 = vadd.f32 0.0, %v5670
    %v5672 = vpop.f32.mrb[0].mxu0
    %v5673 = vadd.f32 0.0, %v5672
    %5674 = vdwg.mxu0
    %5675 = vmatprep.subr.mxu0 %v5585
    %5676 = vmatpush1.msra.mxu0 %v5576
    %5677 = vmatprep.subr.mxu0 %v5586
    %5678 = vmatpush1.msra.mxu0 %v5577
    %5679 = vmatprep.subr.mxu0 %v5602
    %5680 = vmatpush1.msra.mxu0 %v5599
    %5681 = vmatprep.subr.mxu0 0.0
    %5682 = vmatpush1.msra.mxu0 0.0
    %5683 = vmatprep.subr.mxu0 0.0
    %5684 = vmatpush1.msra.mxu0 0.0
    %5685 = vmatprep.subr.mxu0 0.0
    %5686 = vmatpush1.msra.mxu0 0.0
    %5687 = vmatprep.subr.mxu0 0.0
    %5688 = vmatpush1.msra.mxu0 0.0
    %5689 = vmatprep.subr.mxu0 0.0
    %5690 = vmatpush1.msra.mxu0 0.0
    %5691 = vmatprep.subr.mxu0 0.0
    %5692 = vmatpush1.msra.mxu0 0.0
    %5693 = vmatprep.subr.mxu0 0.0
    %5694 = vmatpush1.msra.mxu0 0.0
    %5695 = vmatprep.subr.mxu0 0.0
    %5696 = vmatpush1.msra.mxu0 0.0
    %5697 = vmatprep.subr.mxu0 0.0
    %5698 = vmatpush1.msra.mxu0 0.0
    %5699 = vmatprep.subr.mxu0 0.0
    %5700 = vmatpush1.msra.mxu0 0.0
    %5701 = vmatprep.subr.mxu0 0.0
    %5702 = vmatpush1.msra.mxu0 0.0
    %5703 = vmatprep.subr.mxu0 0.0
    %5704 = vmatpush1.msra.mxu0 0.0
    %5705 = vmatprep.subr.mxu0 0.0
    %5706 = vmatpush1.msra.mxu0 0.0
    %5707 = vmatprep.subr.mxu0 0.0
    %5708 = vmatpush1.msra.mxu0 0.0
    %5709 = vmatprep.subr.mxu0 0.0
    %5710 = vmatpush1.msra.mxu0 0.0
    %5711 = vmatprep.subr.mxu0 0.0
    %5712 = vmatpush1.msra.mxu0 0.0
    %5713 = vmatprep.subr.mxu0 0.0
    %5714 = vmatpush1.msra.mxu0 0.0
    %5715 = vmatprep.subr.mxu0 0.0
    %5716 = vmatpush1.msra.mxu0 0.0
    %5717 = vmatprep.subr.mxu0 0.0
    %5718 = vmatpush1.msra.mxu0 0.0
    %5719 = vmatprep.subr.mxu0 0.0
    %5720 = vmatpush1.msra.mxu0 0.0
    %5721 = vmatprep.subr.mxu0 0.0
    %5722 = vmatpush1.msra.mxu0 0.0
    %5723 = vmatprep.subr.mxu0 0.0
    %5724 = vmatpush1.msra.mxu0 0.0
    %5725 = vmatprep.subr.mxu0 0.0
    %5726 = vmatpush1.msra.mxu0 0.0
    %5727 = vmatprep.subr.mxu0 0.0
    %5728 = vmatpush1.msra.mxu0 0.0
    %5729 = vmatprep.subr.mxu0 0.0
    %5730 = vmatpush1.msra.mxu0 0.0
    %5731 = vmatprep.subr.mxu0 0.0
    %5732 = vmatpush1.msra.mxu0 0.0
    %5733 = vmatprep.subr.mxu0 0.0
    %5734 = vmatpush1.msra.mxu0 0.0
    %5735 = vmatprep.subr.mxu0 0.0
    %5736 = vmatpush1.msra.mxu0 0.0
    %5737 = vmatprep.subr.mxu0 0.0
    %5738 = vmatpush1.msra.mxu0 0.0
    %5739 = vmatprep.mubr.f32.mxu0 0.0
    %5740 = vmatmul.mubr.f32.gmra.mrb[0].mxu0 %v5590
    %v5741 = vpop.f32.mrb[0].mxu0
    %v5742 = vadd.f32 0.0, %v5741
    %v5743 = vpop.f32.mrb[0].mxu0
    %v5744 = vadd.f32 0.0, %v5743
    %5745 = vdwg.mxu0
    %v5746 = vld [vmem:[%s1654] ss:$8 sm:$0xf]
    %v5748 = vlaneseq
    %v5749 = vshrl.u32 %v5748, 7
    %v5750 = vsub.s32 0, %v5749
    %v5751 = vrot.slane %v5746, %v5750
    %v5752 = vlaneseq
    %v5753 = vshrl.u32 %v5752, 7
    %v5754 = vsub.s32 1, %v5753
    %v5755 = vrot.slane %v5746, %v5754
    %v5756 = vlaneseq
    %v5757 = vshrl.u32 %v5756, 7
    %v5758 = vsub.s32 2, %v5757
    %v5759 = vrot.slane %v5746, %v5758
    %v5760 = vlaneseq
    %v5761 = vshrl.u32 %v5760, 7
    %v5762 = vsub.s32 3, %v5761
    %v5763 = vrot.slane %v5746, %v5762
    %v5768 = vmul.f32 %v5751, %v5671
    %v5769 = vmul.f32 %v5755, %v5673
    %v5770 = vmul.f32 %v5759, %v5742
    %v5771 = vmul.f32 %v5763, %v5744
    %v5772 = vadd.f32 %v5548, %v5768
    %v5773 = vadd.f32 %v5549, %v5769
    %v5774 = vadd.f32 %v5550, %v5770
    %v5775 = vadd.f32 %v5551, %v5771
    %5776 = vrot.lane.b32.xlu0 %v4033, 111
    %v5777 = vpop.permute.xlu0 %5776
    %5778 = vrot.lane.b32.xlu0 %v4037, 111
    %v5779 = vpop.permute.xlu0 %5778
    %5780 = vrot.lane.b32.xlu0 %v4041, 111
    %v5781 = vpop.permute.xlu0 %5780
    %5782 = vrot.lane.b32.xlu0 %v4034, 111
    %v5783 = vpop.permute.xlu0 %5782
    %5784 = vrot.lane.b32.xlu0 %v4038, 111
    %v5785 = vpop.permute.xlu0 %5784
    %5786 = vrot.lane.b32.xlu0 %v4042, 111
    %v5787 = vpop.permute.xlu0 %5786
    %5788 = vrot.lane.b32.xlu0 %v4035, 111
    %v5789 = vpop.permute.xlu0 %5788
    %5790 = vrot.lane.b32.xlu0 %v4039, 111
    %v5791 = vpop.permute.xlu0 %5790
    %5792 = vrot.lane.b32.xlu0 %v4043, 111
    %v5793 = vpop.permute.xlu0 %5792
    %5794 = vrot.lane.b32.xlu0 %v4036, 111
    %v5795 = vpop.permute.xlu0 %5794
    %5796 = vrot.lane.b32.xlu0 %v4040, 111
    %v5797 = vpop.permute.xlu0 %5796
    %5798 = vrot.lane.b32.xlu0 %v4044, 111
    %v5799 = vpop.permute.xlu0 %5798
    %v5800 = vsel %vm1693, %v5789, %v5795
    %v5801 = vsel %vm1693, %v5791, %v5797
    %v5802 = vsel %vm1693, %v5793, %v5799
    %v5803 = vsel %vm1693, %v5783, %v5789
    %v5804 = vsel %vm1693, %v5785, %v5791
    %v5805 = vsel %vm1693, %v5787, %v5793
    %v5806 = vsel %vm1693, %v5777, %v5783
    %v5807 = vsel %vm1693, %v5779, %v5785
    %v5808 = vsel %vm1693, %v5781, %v5787
    %v5809 = vsel %vm1693, %v5795, %v5777
    %v5810 = vsel %vm1693, %v5797, %v5779
    %v5811 = vsel %vm1693, %v5799, %v5781
    %v5812 = vld [vmem:[%s10 + $0x40] sm:$0xff]
    %v5814 = vsel %vm4082, %v5812, 0
    %v5817 = vsel %vm57, %v5808, 0
    %v5820 = vsel %vm57, %v5805, 0
    %v5823 = vsel %vm57, %v5802, 0
    %v5826 = vsel %vm57, %v5811, 0
    %5828 = vmatprep.subr.mxu0 %v5803
    %5829 = vmatpush1.msra.mxu0 %v5806
    %5830 = vmatprep.subr.mxu0 %v5804
    %5831 = vmatpush1.msra.mxu0 %v5807
    %5832 = vmatprep.subr.mxu0 %v5820
    %5833 = vmatpush1.msra.mxu0 %v5817
    %5834 = vmatprep.subr.mxu0 0.0
    %5835 = vmatpush1.msra.mxu0 0.0
    %5836 = vmatprep.subr.mxu0 0.0
    %5837 = vmatpush1.msra.mxu0 0.0
    %5838 = vmatprep.subr.mxu0 0.0
    %5839 = vmatpush1.msra.mxu0 0.0
    %5840 = vmatprep.subr.mxu0 0.0
    %5841 = vmatpush1.msra.mxu0 0.0
    %5842 = vmatprep.subr.mxu0 0.0
    %5843 = vmatpush1.msra.mxu0 0.0
    %5844 = vmatprep.subr.mxu0 0.0
    %5845 = vmatpush1.msra.mxu0 0.0
    %5846 = vmatprep.subr.mxu0 0.0
    %5847 = vmatpush1.msra.mxu0 0.0
    %5848 = vmatprep.subr.mxu0 0.0
    %5849 = vmatpush1.msra.mxu0 0.0
    %5850 = vmatprep.subr.mxu0 0.0
    %5851 = vmatpush1.msra.mxu0 0.0
    %5852 = vmatprep.subr.mxu0 0.0
    %5853 = vmatpush1.msra.mxu0 0.0
    %5854 = vmatprep.subr.mxu0 0.0
    %5855 = vmatpush1.msra.mxu0 0.0
    %5856 = vmatprep.subr.mxu0 0.0
    %5857 = vmatpush1.msra.mxu0 0.0
    %5858 = vmatprep.subr.mxu0 0.0
    %5859 = vmatpush1.msra.mxu0 0.0
    %5860 = vmatprep.subr.mxu0 0.0
    %5861 = vmatpush1.msra.mxu0 0.0
    %5862 = vmatprep.subr.mxu0 0.0
    %5863 = vmatpush1.msra.mxu0 0.0
    %5864 = vmatprep.subr.mxu0 0.0
    %5865 = vmatpush1.msra.mxu0 0.0
    %5866 = vmatprep.subr.mxu0 0.0
    %5867 = vmatpush1.msra.mxu0 0.0
    %5868 = vmatprep.subr.mxu0 0.0
    %5869 = vmatpush1.msra.mxu0 0.0
    %5870 = vmatprep.subr.mxu0 0.0
    %5871 = vmatpush1.msra.mxu0 0.0
    %5872 = vmatprep.subr.mxu0 0.0
    %5873 = vmatpush1.msra.mxu0 0.0
    %5874 = vmatprep.subr.mxu0 0.0
    %5875 = vmatpush1.msra.mxu0 0.0
    %5876 = vmatprep.subr.mxu0 0.0
    %5877 = vmatpush1.msra.mxu0 0.0
    %5878 = vmatprep.subr.mxu0 0.0
    %5879 = vmatpush1.msra.mxu0 0.0
    %5880 = vmatprep.subr.mxu0 0.0
    %5881 = vmatpush1.msra.mxu0 0.0
    %5882 = vmatprep.subr.mxu0 0.0
    %5883 = vmatpush1.msra.mxu0 0.0
    %5884 = vmatprep.subr.mxu0 0.0
    %5885 = vmatpush1.msra.mxu0 0.0
    %5886 = vmatprep.subr.mxu0 0.0
    %5887 = vmatpush1.msra.mxu0 0.0
    %5888 = vmatprep.subr.mxu0 0.0
    %5889 = vmatpush1.msra.mxu0 0.0
    %5890 = vmatprep.subr.mxu0 0.0
    %5891 = vmatpush1.msra.mxu0 0.0
    %5892 = vmatprep.mubr.f32.mxu0 0.0
    %5893 = vmatmul.mubr.f32.gmra.mrb[0].mxu0 %v5814
    %v5894 = vpop.f32.mrb[0].mxu0
    %v5895 = vadd.f32 0.0, %v5894
    %v5896 = vpop.f32.mrb[0].mxu0
    %v5897 = vadd.f32 0.0, %v5896
    %5898 = vdwg.mxu0
    %5899 = vmatprep.subr.mxu0 %v5809
    %5900 = vmatpush1.msra.mxu0 %v5800
    %5901 = vmatprep.subr.mxu0 %v5810
    %5902 = vmatpush1.msra.mxu0 %v5801
    %5903 = vmatprep.subr.mxu0 %v5826
    %5904 = vmatpush1.msra.mxu0 %v5823
    %5905 = vmatprep.subr.mxu0 0.0
    %5906 = vmatpush1.msra.mxu0 0.0
    %5907 = vmatprep.subr.mxu0 0.0
    %5908 = vmatpush1.msra.mxu0 0.0
    %5909 = vmatprep.subr.mxu0 0.0
    %5910 = vmatpush1.msra.mxu0 0.0
    %5911 = vmatprep.subr.mxu0 0.0
    %5912 = vmatpush1.msra.mxu0 0.0
    %5913 = vmatprep.subr.mxu0 0.0
    %5914 = vmatpush1.msra.mxu0 0.0
    %5915 = vmatprep.subr.mxu0 0.0
    %5916 = vmatpush1.msra.mxu0 0.0
    %5917 = vmatprep.subr.mxu0 0.0
    %5918 = vmatpush1.msra.mxu0 0.0
    %5919 = vmatprep.subr.mxu0 0.0
    %5920 = vmatpush1.msra.mxu0 0.0
    %5921 = vmatprep.subr.mxu0 0.0
    %5922 = vmatpush1.msra.mxu0 0.0
    %5923 = vmatprep.subr.mxu0 0.0
    %5924 = vmatpush1.msra.mxu0 0.0
    %5925 = vmatprep.subr.mxu0 0.0
    %5926 = vmatpush1.msra.mxu0 0.0
    %5927 = vmatprep.subr.mxu0 0.0
    %5928 = vmatpush1.msra.mxu0 0.0
    %5929 = vmatprep.subr.mxu0 0.0
    %5930 = vmatpush1.msra.mxu0 0.0
    %5931 = vmatprep.subr.mxu0 0.0
    %5932 = vmatpush1.msra.mxu0 0.0
    %5933 = vmatprep.subr.mxu0 0.0
    %5934 = vmatpush1.msra.mxu0 0.0
    %5935 = vmatprep.subr.mxu0 0.0
    %5936 = vmatpush1.msra.mxu0 0.0
    %5937 = vmatprep.subr.mxu0 0.0
    %5938 = vmatpush1.msra.mxu0 0.0
    %5939 = vmatprep.subr.mxu0 0.0
    %5940 = vmatpush1.msra.mxu0 0.0
    %5941 = vmatprep.subr.mxu0 0.0
    %5942 = vmatpush1.msra.mxu0 0.0
    %5943 = vmatprep.subr.mxu0 0.0
    %5944 = vmatpush1.msra.mxu0 0.0
    %5945 = vmatprep.subr.mxu0 0.0
    %5946 = vmatpush1.msra.mxu0 0.0
    %5947 = vmatprep.subr.mxu0 0.0
    %5948 = vmatpush1.msra.mxu0 0.0
    %5949 = vmatprep.subr.mxu0 0.0
    %5950 = vmatpush1.msra.mxu0 0.0
    %5951 = vmatprep.subr.mxu0 0.0
    %5952 = vmatpush1.msra.mxu0 0.0
    %5953 = vmatprep.subr.mxu0 0.0
    %5954 = vmatpush1.msra.mxu0 0.0
    %5955 = vmatprep.subr.mxu0 0.0
    %5956 = vmatpush1.msra.mxu0 0.0
    %5957 = vmatprep.subr.mxu0 0.0
    %5958 = vmatpush1.msra.mxu0 0.0
    %5959 = vmatprep.subr.mxu0 0.0
    %5960 = vmatpush1.msra.mxu0 0.0
    %5961 = vmatprep.subr.mxu0 0.0
    %5962 = vmatpush1.msra.mxu0 0.0
    %5963 = vmatprep.mubr.f32.mxu0 0.0
    %5964 = vmatmul.mubr.f32.gmra.mrb[0].mxu0 %v5814
    %v5965 = vpop.f32.mrb[0].mxu0
    %v5966 = vadd.f32 0.0, %v5965
    %v5967 = vpop.f32.mrb[0].mxu0
    %v5968 = vadd.f32 0.0, %v5967
    %5969 = vdwg.mxu0
    %v5970 = vld [vmem:[%s1856] ss:$8 sm:$0xf]
    %v5972 = vlaneseq
    %v5973 = vshrl.u32 %v5972, 7
    %v5974 = vsub.s32 0, %v5973
    %v5975 = vrot.slane %v5970, %v5974
    %v5976 = vlaneseq
    %v5977 = vshrl.u32 %v5976, 7
    %v5978 = vsub.s32 1, %v5977
    %v5979 = vrot.slane %v5970, %v5978
    %v5980 = vlaneseq
    %v5981 = vshrl.u32 %v5980, 7
    %v5982 = vsub.s32 2, %v5981
    %v5983 = vrot.slane %v5970, %v5982
    %v5984 = vlaneseq
    %v5985 = vshrl.u32 %v5984, 7
    %v5986 = vsub.s32 3, %v5985
    %v5987 = vrot.slane %v5970, %v5986
    %v5992 = vmul.f32 %v5975, %v5895
    %v5993 = vmul.f32 %v5979, %v5897
    %v5994 = vmul.f32 %v5983, %v5966
    %v5995 = vmul.f32 %v5987, %v5968
    %v5996 = vadd.f32 %v5772, %v5992
    %v5997 = vadd.f32 %v5773, %v5993
    %v5998 = vadd.f32 %v5774, %v5994
    %v5999 = vadd.f32 %v5775, %v5995
    %v6004 = vrot.slane %v5996, 4
    %v6005 = vrot.slane %v5997, 4
    %v6006 = vrot.slane %v5998, 4
    %v6007 = vrot.slane %v5999, 4
    %6012 = vst [vmem:[#allocation2 + $0x40] sm:$0xf0] %v6004
    %6013 = vst [vmem:[#allocation2 + $0x48] sm:$0xf0] %v6005
    %6014 = vst [vmem:[#allocation2 + $0x50] sm:$0xf0] %v6006
    %6015 = vst [vmem:[#allocation2 + $0x58] sm:$0xf0] %v6007
    %6016 = vst [vmem:[#allocation2 + $0x60] sm:$0xf] %v6004
    %6017 = vst [vmem:[#allocation2 + $0x68] sm:$0xf] %v6005
    %6018 = vst [vmem:[#allocation2 + $0x70] sm:$0xf] %v6006
    %6019 = vst [vmem:[#allocation2 + $0x78] sm:$0xf] %v6007
    // Predicated region
    $region46: #{tpu_custom_call.1} parent=1 // pred_check
      _
    $region47: #{tpu_custom_call.1} parent=1 // pred_check_branch
      %6021 = sbr.rel (0) target = $region49
    $region48: #{tpu_custom_call.1} parent=1 // pred_region
      %s6023 = ssub.s32 2048, 2048
      %6024 = vsyncadd [#allocation3], %s6023
      %s6025 = sshll.u32 [#allocation2], 4
      %s6026 = int_to_ptr.vmem [resolvable:$true] %s6025
      %6031 = dma.vmem_to_hbm [thread:$0]  %s6026, 2048, %s11, [#allocation3], 512, 512, 32
    $region49: #{tpu_custom_call.1} parent=1 // pred_fallthru
      _
    // Predicated region
    $region50: #{tpu_custom_call.1} parent=1 // pred_check
      _
    $region51: #{tpu_custom_call.1} parent=1 // pred_check_branch
      %6033 = sbr.rel (0) target = $region53
    $region52: #{tpu_custom_call.1} parent=1 // pred_region
      %6034 = dma.done [#allocation3], 2048
    $region53: #{tpu_custom_call.1} parent=1 // pred_fallthru
      _
    %6035 = vsyncpa [#allocation3], 1

</llo_original>
